<compile_context>
chip_gen: v5e
topology: v5e:2x2
jax: 0.10.0
libtpu: 0.0.40
codegen_flags: <defaults>
</compile_context>

<pallas_src>
import functools
import math

import jax
import jax.numpy as jnp
from jax.experimental import pallas as pl
from jax.experimental.pallas import tpu as pltpu

EPS = 1e-5  # torch nn.LayerNorm default eps


# ---------------------------------------------------------------------------
# In-kernel helpers
# ---------------------------------------------------------------------------
def _layernorm(x, g, b):
    mu = jnp.mean(x, axis=-1, keepdims=True)
    var = jnp.mean((x - mu) ** 2, axis=-1, keepdims=True)  # biased, like torch
    return (x - mu) * jax.lax.rsqrt(var + EPS) * g + b


def _gelu_exact(x):
    # nn.GELU() default = exact erf formulation (kept for semantics parity).
    return 0.5 * x * (1.0 + jax.lax.erf(x * (1.0 / math.sqrt(2.0))))


# ---------------------------------------------------------------------------
# Fused ViT kernel: embedding (d==0) -> encoder layer d -> head (d==depth-1)
# Processes BB images per grid step; residual stream is (BB*Sp, D) in VMEM.
# ---------------------------------------------------------------------------
def vit_kernel(patch_ref, pw_ref, pb_ref, cls_ref, pos_ref,
               ln1g, ln1b, wqkv, bqkv, ln2g, ln2b, w1, b1, w2, b2,
               hg, hb, hw, hbias,
               o_ref, x_vmem, attn_vmem,
               *, n_heads, depth, bb, seq, seq_pad):
    d_idx = pl.program_id(1)
    D = x_vmem.shape[-1]
    S, Sp = seq, seq_pad           # real rows per image / padded rows per image
    N = S - 1                      # number of patch tokens
    H = n_heads
    dh = D // H
    scale = 1.0 / math.sqrt(dh)

    # --- depth step 0: patch projection + cls token + positional embedding ---
    @pl.when(d_idx == 0)
    def _embed():
        # Zero both scratches (pad rows stay zero for the whole batch block).
        x_vmem[...] = jnp.zeros_like(x_vmem)
        attn_vmem[...] = jnp.zeros_like(attn_vmem)
        pos = pos_ref[...]                                   # (S, D)
        cls_row = cls_ref[...] + pos[0:1, :]                 # (1, D)
        for bi in range(bb):                                 # unrolled, once/block
            r0 = bi * Sp                                     # sublane-tile aligned
            proj = jnp.dot(patch_ref[bi], pw_ref[...],
                           preferred_element_type=jnp.float32) + pb_ref[...]
            x_vmem[r0:r0 + 1, :] = cls_row                   # cls token row
            x_vmem[r0 + 1:r0 + 1 + N, :] = proj + pos[1:, :]  # patch rows

    x = x_vmem[...]                                 # (bb*Sp, D) f32, VMEM-resident

    # --- multi-head self-attention (pre-LN; module has no output projection) --
    xn = _layernorm(x, ln1g[...], ln1b[...])
    # Fused QKV projection with M = bb*Sp (weights reused across all BB images).
    qkv = jnp.dot(xn.astype(jnp.bfloat16), wqkv[...],
                  preferred_element_type=jnp.float32) + bqkv[...]     # (bb*Sp, 3D)
    for bi in range(bb):                            # unrolled over images
        r0 = bi * Sp
        qkv_i = qkv[r0:r0 + S, :]                   # (S, 3D), tile-aligned start
        for h in range(H):                          # unrolled over heads
            qh = qkv_i[:, h * dh:(h + 1) * dh].astype(jnp.bfloat16)
            kh = qkv_i[:, D + h * dh:D + (h + 1) * dh].astype(jnp.bfloat16)
            vh = qkv_i[:, 2 * D + h * dh:2 * D + (h + 1) * dh].astype(jnp.bfloat16)
            s = jax.lax.dot_general(qh, kh, (((1,), (1,)), ((), ())),
                                    preferred_element_type=jnp.float32) * scale
            s = s - jnp.max(s, axis=-1, keepdims=True)
            p = jnp.exp(s)
            p = p * pl.reciprocal(jnp.sum(p, axis=-1, keepdims=True), approx=True)
            attn_vmem[r0:r0 + S, h * dh:(h + 1) * dh] = jnp.dot(
                p.astype(jnp.bfloat16), vh, preferred_element_type=jnp.float32)
    x = x + attn_vmem[...]

    # --- MLP (pre-LN), M = bb*Sp matmuls ---
    xn2 = _layernorm(x, ln2g[...], ln2b[...])
    hid = _gelu_exact(jnp.dot(xn2.astype(jnp.bfloat16), w1[...],
                              preferred_element_type=jnp.float32) + b1[...])
    x = x + jnp.dot(hid.astype(jnp.bfloat16), w2[...],
                    preferred_element_type=jnp.float32) + b2[...]
    x_vmem[...] = x

    # --- last depth step: LayerNorm + Linear head on each image's CLS row ---
    @pl.when(d_idx == depth - 1)
    def _head():
        for bi in range(bb):
            cls = x[bi * Sp:bi * Sp + 1, :]                     # (1, D)
            cn = _layernorm(cls, hg[...], hb[...])
            o_ref[bi] = jnp.dot(cn.astype(jnp.bfloat16), hw[...],
                                preferred_element_type=jnp.float32) + hbias[...]


# ---------------------------------------------------------------------------
# Wrapper: patching glue, weight packing, pallas_call plumbing
# ---------------------------------------------------------------------------
_EMBED_ORDER = ["pw", "pb", "cls", "pos"]
_LAYER_ORDER = ["ln1_g", "ln1_b", "wqkv", "bqkv", "ln2_g", "ln2_b",
                "w1", "b1", "w2", "b2"]
_HEAD_ORDER = ["hg", "hb", "hw", "hbias"]


def _pack_params(params):
    """Stack per-layer weights along a depth axis; cast matmul weights to bf16."""
    bf16 = jnp.bfloat16
    layers = params["layers"]
    stack = lambda name: jnp.stack([lyr[name] for lyr in layers], axis=0)
    return {
        "pw": params["proj_w"].astype(bf16),
        "pb": params["proj_b"],
        "cls": params["cls"],
        "pos": params["pos"],
        "ln1_g": stack("ln1_g"), "ln1_b": stack("ln1_b"),
        "wqkv": jnp.stack([jnp.concatenate([l["wq"], l["wk"], l["wv"]], axis=1)
                           for l in layers], axis=0).astype(bf16),
        "bqkv": jnp.stack([jnp.concatenate([l["bq"], l["bk"], l["bv"]], axis=1)
                           for l in layers], axis=0),
        "ln2_g": stack("ln2_g"), "ln2_b": stack("ln2_b"),
        "w1": stack("w1").astype(bf16), "b1": stack("b1"),
        "w2": stack("w2").astype(bf16), "b2": stack("b2"),
        "hg": params["head_g"], "hb": params["head_b"],
        "hw": params["head_w"].astype(bf16), "hbias": params["head_bias"],
    }


def patchify(img, patch_size):
    # einops 'b c (h ph) (w pw) -> b (h w) (ph pw c)'  (host-side layout glue)
    B, C, Hh, Ww = img.shape
    h, w = Hh // patch_size, Ww // patch_size
    x = img.reshape(B, C, h, patch_size, w, patch_size)
    x = x.transpose(0, 2, 4, 3, 5, 1)            # b h w ph pw c
    return x.reshape(B, h * w, patch_size * patch_size * C)


def _round_up(x, m):
    return (x + m - 1) // m * m


def _vmem_capacity_bytes():
    try:
        return int(pltpu.get_tpu_info().vmem_capacity_bytes)
    except Exception:
        return 64 * 1024 * 1024          # conservative default (v7x-sized)


def _pick_bb(batch):
    # Generation-aware batch-block: BB<=4 on 64 MiB-VMEM parts (v7x), else BB<=8.
    # (On v7x, also keep B//BB >= 2 when possible so both TCs stay busy.)
    bb_max = 4 if _vmem_capacity_bytes() <= 64 * 1024 * 1024 else 8
    bb = 1
    for cand in range(1, min(batch, bb_max) + 1):
        if batch % cand == 0:
            bb = cand
    return bb


def _pick_vmem_limit():
    cap = _vmem_capacity_bytes()
    return min(cap * 7 // 8, 100 * 1024 * 1024)   # ~56 MiB on v7x, 100 MB on v5e/v6e


def vit_forward(img, params, *, patch_size, n_heads, batch_block=None):
    p = _pack_params(params)
    patches = patchify(img, patch_size).astype(jnp.bfloat16)   # bf16 patch DMA
    B, N, PD = patches.shape
    S, D = p["pos"].shape
    assert D % n_heads == 0, "dim must be divisible by n_heads"
    depth = p["ln1_g"].shape[0]
    C = p["hw"].shape[1]
    bb = batch_block if batch_block is not None else _pick_bb(B)
    assert B % bb == 0, "batch_block must divide batch"
    Sp = _round_up(S, 8)                   # pad seq so per-image rows are tile-aligned

    def layer_spec(arr):                   # stream layer d's slice via the depth axis
        rest = arr.shape[1:]
        zeros = (0,) * len(rest)
        return pl.BlockSpec((None,) + rest, lambda b, d: (d,) + zeros)

    def const_spec(arr):                   # grid-invariant (resident) block
        zeros = (0,) * arr.ndim
        return pl.BlockSpec(arr.shape, lambda b, d: zeros)

    in_specs = ([pl.BlockSpec((bb, N, PD), lambda b, d: (b, 0, 0))]
                + [const_spec(p[k]) for k in _EMBED_ORDER]
                + [layer_spec(p[k]) for k in _LAYER_ORDER]
                + [const_spec(p[k]) for k in _HEAD_ORDER])

    out = pl.pallas_call(
        functools.partial(vit_kernel, n_heads=n_heads, depth=depth,
                          bb=bb, seq=S, seq_pad=Sp),
        out_shape=jax.ShapeDtypeStruct((B, 1, C), jnp.float32),
        grid=(B // bb, depth),
        in_specs=in_specs,
        out_specs=pl.BlockSpec((bb, 1, C), lambda b, d: (b, 0, 0)),
        scratch_shapes=[pltpu.VMEM((bb * Sp, D), jnp.float32),   # residual stream
                        pltpu.VMEM((bb * Sp, D), jnp.float32)],  # attention output
        compiler_params=pltpu.CompilerParams(
            dimension_semantics=("parallel", "arbitrary"),
            vmem_limit_bytes=_pick_vmem_limit()),
    )(patches,
      *(p[k] for k in _EMBED_ORDER),
      *(p[k] for k in _LAYER_ORDER),
      *(p[k] for k in _HEAD_ORDER))
    return out.reshape(B, C)


# ---------------------------------------------------------------------------
# Pure-JAX reference (f32, exact ops) for a correctness check
# ---------------------------------------------------------------------------
def vit_reference(img, params, *, patch_size, n_heads):
    def ln(z, g, b):
        mu = z.mean(-1, keepdims=True)
        var = ((z - mu) ** 2).mean(-1, keepdims=True)
        return (z - mu) / jnp.sqrt(var + EPS) * g + b

    x = patchify(img, patch_size)
    x = x @ params["proj_w"] + params["proj_b"]                 # (B, N, D)
    B, _, D = x.shape
    H = n_heads
    dh = D // H
    cls = jnp.broadcast_to(params["cls"][None], (B, 1, D))
    x = jnp.concatenate([cls, x], axis=1) + params["pos"][None]
    for lyr in params["layers"]:
        xn = ln(x, lyr["ln1_g"], lyr["ln1_b"])
        q = xn @ lyr["wq"] + lyr["bq"]
        k = xn @ lyr["wk"] + lyr["bk"]
        v = xn @ lyr["wv"] + lyr["bv"]
        split = lambda t: t.reshape(B, -1, H, dh).transpose(0, 2, 1, 3)
        q, k, v = split(q), split(k), split(v)
        att = jax.nn.softmax(
            jnp.einsum("bhqd,bhkd->bhqk", q, k) * dh ** -0.5, axis=-1)
        ctx = jnp.einsum("bhqk,bhkd->bhqd", att, v)
        x = x + ctx.transpose(0, 2, 1, 3).reshape(B, -1, D)
        xn2 = ln(x, lyr["ln2_g"], lyr["ln2_b"])
        hid = jax.nn.gelu(xn2 @ lyr["w1"] + lyr["b1"], approximate=False)
        x = x + hid @ lyr["w2"] + lyr["b2"]
    cls_out = ln(x[:, 0, :], params["head_g"], params["head_b"])
    return cls_out @ params["head_w"] + params["head_bias"]


# ---------------------------------------------------------------------------
# Deterministic parameter init (shapes follow the PyTorch module __init__;
# linear weights stored as [in, out] so kernels compute x @ W + b)
# ---------------------------------------------------------------------------
def init_params(key, *, image_size, patch_size, channels, dim, depth,
                n_heads, mlp_dim, n_classes):
    n_patches = (image_size // patch_size) ** 2
    patch_dim = channels * patch_size * patch_size
    keys = list(jax.random.split(key, 8 + depth * 12))
    it = iter(keys)

    def nrm(shape, scale=0.02):
        return (scale * jax.random.normal(next(it), shape)).astype(jnp.float32)

    params = {
        "proj_w": nrm((patch_dim, dim)),
        "proj_b": nrm((1, dim)),
        "cls": jax.random.normal(next(it), (1, dim), jnp.float32),
        "pos": jax.random.normal(next(it), (n_patches + 1, dim), jnp.float32),
        "layers": [],
        "head_g": jnp.ones((1, dim), jnp.float32),
        "head_b": jnp.zeros((1, dim), jnp.float32),
        "head_w": nrm((dim, n_classes)),
        "head_bias": nrm((1, n_classes)),
    }
    for _ in range(depth):
        params["layers"].append({
            "ln1_g": jnp.ones((1, dim), jnp.float32),
            "ln1_b": jnp.zeros((1, dim), jnp.float32),
            "wq": nrm((dim, dim)), "bq": nrm((1, dim)),
            "wk": nrm((dim, dim)), "bk": nrm((1, dim)),
            "wv": nrm((dim, dim)), "bv": nrm((1, dim)),
            "ln2_g": jnp.ones((1, dim), jnp.float32),
            "ln2_b": jnp.zeros((1, dim), jnp.float32),
            "w1": nrm((dim, mlp_dim)), "b1": nrm((1, mlp_dim)),
            "w2": nrm((mlp_dim, dim)), "b2": nrm((1, dim)),
        })
    return params


# ---------------------------------------------------------------------------
if __name__ == "__main__":
    image_size, patch_size, channels = 16, 4, 3
    n_classes, dim, depth, n_heads, mlp_dim = 8, 32, 2, 4, 64
    batch = 2

    key = jax.random.PRNGKey(0)
    k_img, k_par = jax.random.split(key)
    img = jax.random.normal(k_img, (batch, channels, image_size, image_size),
                            jnp.float32)
    params = init_params(k_par, image_size=image_size, patch_size=patch_size,
                         channels=channels, dim=dim, depth=depth,
                         n_heads=n_heads, mlp_dim=mlp_dim, n_classes=n_classes)

    fwd = jax.jit(functools.partial(vit_forward, patch_size=patch_size,
                                    n_heads=n_heads))
    out = jax.block_until_ready(fwd(img, params))
    assert out.shape == (batch, n_classes), out.shape
    assert bool(jnp.all(jnp.isfinite(out)))

    # Loose tolerance: kernel uses bf16 matmul weights + approx softmax recip.
    ref = vit_reference(img, params, patch_size=patch_size, n_heads=n_heads)
    assert bool(jnp.allclose(out, ref, rtol=3e-2, atol=3e-2)), (
        float(jnp.max(jnp.abs(out - ref))))
    print("KERNEL_OK")
</pallas_src>

<mosaic_0001>
module attributes {stable_mosaic.version = 11 : i64} {
  func.func @vit_kernel(%arg0: i32, %arg1: i32, %arg2: memref<2x16x48xbf16, #tpu.memory_space<vmem>>, %arg3: memref<48x32xbf16, #tpu.memory_space<vmem>>, %arg4: memref<1x32xf32, #tpu.memory_space<vmem>>, %arg5: memref<1x32xf32, #tpu.memory_space<vmem>>, %arg6: memref<17x32xf32, #tpu.memory_space<vmem>>, %arg7: memref<1x1x32xf32, #tpu.memory_space<vmem>>, %arg8: memref<1x1x32xf32, #tpu.memory_space<vmem>>, %arg9: memref<1x32x96xbf16, #tpu.memory_space<vmem>>, %arg10: memref<1x1x96xf32, #tpu.memory_space<vmem>>, %arg11: memref<1x1x32xf32, #tpu.memory_space<vmem>>, %arg12: memref<1x1x32xf32, #tpu.memory_space<vmem>>, %arg13: memref<1x32x64xbf16, #tpu.memory_space<vmem>>, %arg14: memref<1x1x64xf32, #tpu.memory_space<vmem>>, %arg15: memref<1x64x32xbf16, #tpu.memory_space<vmem>>, %arg16: memref<1x1x32xf32, #tpu.memory_space<vmem>>, %arg17: memref<1x32xf32, #tpu.memory_space<vmem>>, %arg18: memref<1x32xf32, #tpu.memory_space<vmem>>, %arg19: memref<32x8xbf16, #tpu.memory_space<vmem>>, %arg20: memref<1x8xf32, #tpu.memory_space<vmem>>, %arg21: memref<2x1x8xf32, #tpu.memory_space<vmem>>, %arg22: memref<48x32xf32, #tpu.memory_space<vmem>>, %arg23: memref<48x32xf32, #tpu.memory_space<vmem>>) attributes {dimension_semantics = [#tpu.dimension_semantics<parallel>, #tpu.dimension_semantics<arbitrary>], iteration_bounds = array<i64: 1, 2>, scalar_prefetch = 0 : i64, scratch_operands = 2 : i64, tpu.core_type = #tpu.core_type<tc>, window_params = [{transform_indices = @transform_0, window_bounds = array<i64: 2, 16, 48>}, {pipeline_mode = #tpu.pipeline_mode<synchronous>, transform_indices = @transform_1, window_bounds = array<i64: 48, 32>}, {pipeline_mode = #tpu.pipeline_mode<synchronous>, transform_indices = @transform_2, window_bounds = array<i64: 1, 32>}, {pipeline_mode = #tpu.pipeline_mode<synchronous>, transform_indices = @transform_3, window_bounds = array<i64: 1, 32>}, {pipeline_mode = #tpu.pipeline_mode<synchronous>, transform_indices = @transform_4, window_bounds = array<i64: 17, 32>}, {transform_indices = @transform_5, window_bounds = array<i64: 1, 1, 32>}, {transform_indices = @transform_6, window_bounds = array<i64: 1, 1, 32>}, {transform_indices = @transform_7, window_bounds = array<i64: 1, 32, 96>}, {transform_indices = @transform_8, window_bounds = array<i64: 1, 1, 96>}, {transform_indices = @transform_9, window_bounds = array<i64: 1, 1, 32>}, {transform_indices = @transform_10, window_bounds = array<i64: 1, 1, 32>}, {transform_indices = @transform_11, window_bounds = array<i64: 1, 32, 64>}, {transform_indices = @transform_12, window_bounds = array<i64: 1, 1, 64>}, {transform_indices = @transform_13, window_bounds = array<i64: 1, 64, 32>}, {transform_indices = @transform_14, window_bounds = array<i64: 1, 1, 32>}, {pipeline_mode = #tpu.pipeline_mode<synchronous>, transform_indices = @transform_15, window_bounds = array<i64: 1, 32>}, {pipeline_mode = #tpu.pipeline_mode<synchronous>, transform_indices = @transform_16, window_bounds = array<i64: 1, 32>}, {pipeline_mode = #tpu.pipeline_mode<synchronous>, transform_indices = @transform_17, window_bounds = array<i64: 32, 8>}, {pipeline_mode = #tpu.pipeline_mode<synchronous>, transform_indices = @transform_18, window_bounds = array<i64: 1, 8>}, {transform_indices = @transform_19, window_bounds = array<i64: 2, 1, 8>}]} {
    %c0_i32 = arith.constant 0 : i32
    %0 = arith.cmpi eq, %arg1, %c0_i32 : i32
    %1 = arith.extui %0 : i1 to i32
    %c0_i32_0 = arith.constant 0 : i32
    %2 = arith.cmpi ne, %1, %c0_i32_0 : i32
    scf.if %2 {
      %cst_105 = arith.constant 0.000000e+00 : f32
      %273 = vector.broadcast %cst_105 : f32 to vector<48x32xf32>
      %c0_106 = arith.constant 0 : index
      %c0_107 = arith.constant 0 : index
      %274 = vector.load %arg22[%c0_106, %c0_107] : memref<48x32xf32, #tpu.memory_space<vmem>>, vector<48x32xf32>
      tpu.vector_store %arg22[%c0_106, %c0_107], %273 {strides = array<i32>} : memref<48x32xf32, #tpu.memory_space<vmem>>, vector<48x32xf32>,
      %cst_108 = arith.constant 0.000000e+00 : f32
      %275 = vector.broadcast %cst_108 : f32 to vector<48x32xf32>
      %c0_109 = arith.constant 0 : index
      %c0_110 = arith.constant 0 : index
      %276 = vector.load %arg23[%c0_109, %c0_110] : memref<48x32xf32, #tpu.memory_space<vmem>>, vector<48x32xf32>
      tpu.vector_store %arg23[%c0_109, %c0_110], %275 {strides = array<i32>} : memref<48x32xf32, #tpu.memory_space<vmem>>, vector<48x32xf32>,
      %c0_111 = arith.constant 0 : index
      %c0_112 = arith.constant 0 : index
      %277 = vector.load %arg6[%c0_111, %c0_112] : memref<17x32xf32, #tpu.memory_space<vmem>>, vector<17x32xf32>
      %c0_113 = arith.constant 0 : index
      %c0_114 = arith.constant 0 : index
      %278 = vector.load %arg5[%c0_113, %c0_114] : memref<1x32xf32, #tpu.memory_space<vmem>>, vector<1x32xf32>
      %279 = vector.extract_strided_slice %277 {offsets = [0, 0], sizes = [1, 32], strides = [1, 1]} : vector<17x32xf32> to vector<1x32xf32>
      %280 = arith.addf %278, %279 : vector<1x32xf32>
      %c0_115 = arith.constant 0 : index
      %c0_116 = arith.constant 0 : index
      %c0_117 = arith.constant 0 : index
      %281 = vector.load %arg2[%c0_115, %c0_116, %c0_117] : memref<2x16x48xbf16, #tpu.memory_space<vmem>>, vector<1x16x48xbf16>
      %282 = vector.shape_cast %281 : vector<1x16x48xbf16> to vector<16x48xbf16>
      %c0_118 = arith.constant 0 : index
      %c0_119 = arith.constant 0 : index
      %283 = vector.load %arg3[%c0_118, %c0_119] : memref<48x32xbf16, #tpu.memory_space<vmem>>, vector<48x32xbf16>
      %cst_120 = arith.constant dense<0.000000e+00> : vector<16x32xf32>
      %284 = tpu.matmul %282, %283, %cst_120 {dimension_numbers = #tpu.dot_dimension_numbers<[1], [0], [0], [1], [0, 0, 1, 1], [], []>} : vector<16x48xbf16>, vector<48x32xbf16>, vector<16x32xf32> -> vector<16x32xf32>
      %c0_121 = arith.constant 0 : index
      %c0_122 = arith.constant 0 : index
      %285 = vector.load %arg4[%c0_121, %c0_122] : memref<1x32xf32, #tpu.memory_space<vmem>>, vector<1x32xf32>
      %286 = vector.broadcast %285 : vector<1x32xf32> to vector<16x32xf32>
      %287 = arith.addf %284, %286 : vector<16x32xf32>
      %c0_123 = arith.constant 0 : index
      %c0_124 = arith.constant 0 : index
      %288 = vector.load %arg22[%c0_123, %c0_124] : memref<48x32xf32, #tpu.memory_space<vmem>>, vector<1x32xf32>
      tpu.vector_store %arg22[%c0_123, %c0_124], %280 {strides = array<i32>} : memref<48x32xf32, #tpu.memory_space<vmem>>, vector<1x32xf32>,
      %289 = vector.extract_strided_slice %277 {offsets = [1, 0], sizes = [16, 32], strides = [1, 1]} : vector<17x32xf32> to vector<16x32xf32>
      %290 = arith.addf %287, %289 : vector<16x32xf32>
      %c1 = arith.constant 1 : index
      %c0_125 = arith.constant 0 : index
      %291 = vector.load %arg22[%c1, %c0_125] : memref<48x32xf32, #tpu.memory_space<vmem>>, vector<16x32xf32>
      tpu.vector_store %arg22[%c1, %c0_125], %290 {strides = array<i32>} : memref<48x32xf32, #tpu.memory_space<vmem>>, vector<16x32xf32>,
      %c1_126 = arith.constant 1 : index
      %c0_127 = arith.constant 0 : index
      %c0_128 = arith.constant 0 : index
      %292 = vector.load %arg2[%c1_126, %c0_127, %c0_128] : memref<2x16x48xbf16, #tpu.memory_space<vmem>>, vector<1x16x48xbf16>
      %293 = vector.shape_cast %292 : vector<1x16x48xbf16> to vector<16x48xbf16>
      %c0_129 = arith.constant 0 : index
      %c0_130 = arith.constant 0 : index
      %294 = vector.load %arg3[%c0_129, %c0_130] : memref<48x32xbf16, #tpu.memory_space<vmem>>, vector<48x32xbf16>
      %cst_131 = arith.constant dense<0.000000e+00> : vector<16x32xf32>
      %295 = tpu.matmul %293, %294, %cst_131 {dimension_numbers = #tpu.dot_dimension_numbers<[1], [0], [0], [1], [0, 0, 1, 1], [], []>} : vector<16x48xbf16>, vector<48x32xbf16>, vector<16x32xf32> -> vector<16x32xf32>
      %c0_132 = arith.constant 0 : index
      %c0_133 = arith.constant 0 : index
      %296 = vector.load %arg4[%c0_132, %c0_133] : memref<1x32xf32, #tpu.memory_space<vmem>>, vector<1x32xf32>
      %297 = vector.broadcast %296 : vector<1x32xf32> to vector<16x32xf32>
      %298 = arith.addf %295, %297 : vector<16x32xf32>
      %c24_134 = arith.constant 24 : index
      %c0_135 = arith.constant 0 : index
      %299 = vector.load %arg22[%c24_134, %c0_135] : memref<48x32xf32, #tpu.memory_space<vmem>>, vector<1x32xf32>
      tpu.vector_store %arg22[%c24_134, %c0_135], %280 {strides = array<i32>} : memref<48x32xf32, #tpu.memory_space<vmem>>, vector<1x32xf32>,
      %300 = vector.extract_strided_slice %277 {offsets = [1, 0], sizes = [16, 32], strides = [1, 1]} : vector<17x32xf32> to vector<16x32xf32>
      %301 = arith.addf %298, %300 : vector<16x32xf32>
      %c25 = arith.constant 25 : index
      %c0_136 = arith.constant 0 : index
      %302 = vector.load %arg22[%c25, %c0_136] : memref<48x32xf32, #tpu.memory_space<vmem>>, vector<16x32xf32>
      tpu.vector_store %arg22[%c25, %c0_136], %301 {strides = array<i32>} : memref<48x32xf32, #tpu.memory_space<vmem>>, vector<16x32xf32>,
    } else {
    }
    %c0 = arith.constant 0 : index
    %c0_1 = arith.constant 0 : index
    %3 = vector.load %arg22[%c0, %c0_1] : memref<48x32xf32, #tpu.memory_space<vmem>>, vector<48x32xf32>
    %c0_2 = arith.constant 0 : index
    %c0_3 = arith.constant 0 : index
    %c0_4 = arith.constant 0 : index
    %4 = vector.load %arg7[%c0_2, %c0_3, %c0_4] : memref<1x1x32xf32, #tpu.memory_space<vmem>>, vector<1x1x32xf32>
    %5 = vector.shape_cast %4 : vector<1x1x32xf32> to vector<1x32xf32>
    %c0_5 = arith.constant 0 : index
    %c0_6 = arith.constant 0 : index
    %c0_7 = arith.constant 0 : index
    %6 = vector.load %arg8[%c0_5, %c0_6, %c0_7] : memref<1x1x32xf32, #tpu.memory_space<vmem>>, vector<1x1x32xf32>
    %7 = vector.shape_cast %6 : vector<1x1x32xf32> to vector<1x32xf32>
    %cst = arith.constant dense<0.000000e+00> : vector<48xf32>
    %8 = vector.multi_reduction <add>, %3, %cst [1] : vector<48x32xf32> to vector<48xf32>
    %9 = vector.shape_cast %8 : vector<48xf32> to vector<48x1xf32>
    %cst_8 = arith.constant 3.200000e+01 : f32
    %10 = vector.broadcast %cst_8 : f32 to vector<48x1xf32>
    %11 = arith.divf %9, %10 : vector<48x1xf32>
    %12 = vector.broadcast %11 : vector<48x1xf32> to vector<48x32xf32>
    %13 = arith.subf %3, %12 : vector<48x32xf32>
    %14 = arith.mulf %13, %13 : vector<48x32xf32>
    %cst_9 = arith.constant dense<0.000000e+00> : vector<48xf32>
    %15 = vector.multi_reduction <add>, %14, %cst_9 [1] : vector<48x32xf32> to vector<48xf32>
    %16 = vector.shape_cast %15 : vector<48xf32> to vector<48x1xf32>
    %cst_10 = arith.constant 3.200000e+01 : f32
    %17 = vector.broadcast %cst_10 : f32 to vector<48x1xf32>
    %18 = arith.divf %16, %17 : vector<48x1xf32>
    %19 = vector.broadcast %11 : vector<48x1xf32> to vector<48x32xf32>
    %20 = arith.subf %3, %19 : vector<48x32xf32>
    %cst_11 = arith.constant 9.99999974E-6 : f32
    %21 = vector.broadcast %cst_11 : f32 to vector<48x1xf32>
    %22 = arith.addf %18, %21 : vector<48x1xf32>
    %23 = math.rsqrt %22 : vector<48x1xf32>
    %24 = vector.broadcast %23 : vector<48x1xf32> to vector<48x32xf32>
    %25 = arith.mulf %20, %24 : vector<48x32xf32>
    %26 = vector.broadcast %5 : vector<1x32xf32> to vector<48x32xf32>
    %27 = arith.mulf %25, %26 : vector<48x32xf32>
    %28 = vector.broadcast %7 : vector<1x32xf32> to vector<48x32xf32>
    %29 = arith.addf %27, %28 : vector<48x32xf32>
    %30 = arith.truncf %29 : vector<48x32xf32> to vector<48x32xbf16>
    %c0_12 = arith.constant 0 : index
    %c0_13 = arith.constant 0 : index
    %c0_14 = arith.constant 0 : index
    %31 = vector.load %arg9[%c0_12, %c0_13, %c0_14] : memref<1x32x96xbf16, #tpu.memory_space<vmem>>, vector<1x32x96xbf16>
    %32 = vector.shape_cast %31 : vector<1x32x96xbf16> to vector<32x96xbf16>
    %cst_15 = arith.constant dense<0.000000e+00> : vector<48x96xf32>
    %33 = tpu.matmul %30, %32, %cst_15 {dimension_numbers = #tpu.dot_dimension_numbers<[1], [0], [0], [1], [0, 0, 1, 1], [], []>} : vector<48x32xbf16>, vector<32x96xbf16>, vector<48x96xf32> -> vector<48x96xf32>
    %c0_16 = arith.constant 0 : index
    %c0_17 = arith.constant 0 : index
    %c0_18 = arith.constant 0 : index
    %34 = vector.load %arg10[%c0_16, %c0_17, %c0_18] : memref<1x1x96xf32, #tpu.memory_space<vmem>>, vector<1x1x96xf32>
    %35 = vector.shape_cast %34 : vector<1x1x96xf32> to vector<1x96xf32>
    %36 = vector.broadcast %35 : vector<1x96xf32> to vector<48x96xf32>
    %37 = arith.addf %33, %36 : vector<48x96xf32>
    %38 = vector.extract_strided_slice %37 {offsets = [0, 0], sizes = [17, 96], strides = [1, 1]} : vector<48x96xf32> to vector<17x96xf32>
    %39 = vector.extract_strided_slice %38 {offsets = [0, 0], sizes = [17, 8], strides = [1, 1]} : vector<17x96xf32> to vector<17x8xf32>
    %40 = arith.truncf %39 : vector<17x8xf32> to vector<17x8xbf16>
    %41 = vector.extract_strided_slice %38 {offsets = [0, 32], sizes = [17, 8], strides = [1, 1]} : vector<17x96xf32> to vector<17x8xf32>
    %42 = arith.truncf %41 : vector<17x8xf32> to vector<17x8xbf16>
    %43 = vector.extract_strided_slice %38 {offsets = [0, 64], sizes = [17, 8], strides = [1, 1]} : vector<17x96xf32> to vector<17x8xf32>
    %44 = arith.truncf %43 : vector<17x8xf32> to vector<17x8xbf16>
    %cst_19 = arith.constant dense<0.000000e+00> : vector<17x17xf32>
    %45 = tpu.matmul %40, %42, %cst_19 {dimension_numbers = #tpu.dot_dimension_numbers<[1], [1], [0], [0], [0, 0, 1, 0], [], []>} : vector<17x8xbf16>, vector<17x8xbf16>, vector<17x17xf32> -> vector<17x17xf32>
    %cst_20 = arith.constant 0.353553385 : f32
    %46 = vector.broadcast %cst_20 : f32 to vector<17x17xf32>
    %47 = arith.mulf %45, %46 : vector<17x17xf32>
    %cst_21 = arith.constant dense<0xFF800000> : vector<17xf32>
    %48 = vector.multi_reduction <maximumf>, %47, %cst_21 [1] : vector<17x17xf32> to vector<17xf32>
    %49 = vector.shape_cast %48 : vector<17xf32> to vector<17x1xf32>
    %50 = vector.broadcast %49 : vector<17x1xf32> to vector<17x17xf32>
    %51 = arith.subf %47, %50 : vector<17x17xf32>
    %52 = math.exp %51 : vector<17x17xf32>
    %cst_22 = arith.constant dense<0.000000e+00> : vector<17xf32>
    %53 = vector.multi_reduction <add>, %52, %cst_22 [1] : vector<17x17xf32> to vector<17xf32>
    %54 = vector.shape_cast %53 : vector<17xf32> to vector<17x1xf32>
    %55 = tpu.reciprocal %54 {approx = true} : vector<17x1xf32> -> vector<17x1xf32>
    %56 = vector.broadcast %55 : vector<17x1xf32> to vector<17x17xf32>
    %57 = arith.mulf %52, %56 : vector<17x17xf32>
    %58 = arith.truncf %57 : vector<17x17xf32> to vector<17x17xbf16>
    %cst_23 = arith.constant dense<0.000000e+00> : vector<17x8xf32>
    %59 = tpu.matmul %58, %44, %cst_23 {dimension_numbers = #tpu.dot_dimension_numbers<[1], [0], [0], [1], [0, 0, 1, 1], [], []>} : vector<17x17xbf16>, vector<17x8xbf16>, vector<17x8xf32> -> vector<17x8xf32>
    %c0_24 = arith.constant 0 : index
    %c0_25 = arith.constant 0 : index
    %60 = vector.load %arg23[%c0_24, %c0_25] : memref<48x32xf32, #tpu.memory_space<vmem>>, vector<17x8xf32>
    tpu.vector_store %arg23[%c0_24, %c0_25], %59 {strides = array<i32>} : memref<48x32xf32, #tpu.memory_space<vmem>>, vector<17x8xf32>,
    %61 = vector.extract_strided_slice %38 {offsets = [0, 8], sizes = [17, 8], strides = [1, 1]} : vector<17x96xf32> to vector<17x8xf32>
    %62 = arith.truncf %61 : vector<17x8xf32> to vector<17x8xbf16>
    %63 = vector.extract_strided_slice %38 {offsets = [0, 40], sizes = [17, 8], strides = [1, 1]} : vector<17x96xf32> to vector<17x8xf32>
    %64 = arith.truncf %63 : vector<17x8xf32> to vector<17x8xbf16>
    %65 = vector.extract_strided_slice %38 {offsets = [0, 72], sizes = [17, 8], strides = [1, 1]} : vector<17x96xf32> to vector<17x8xf32>
    %66 = arith.truncf %65 : vector<17x8xf32> to vector<17x8xbf16>
    %cst_26 = arith.constant dense<0.000000e+00> : vector<17x17xf32>
    %67 = tpu.matmul %62, %64, %cst_26 {dimension_numbers = #tpu.dot_dimension_numbers<[1], [1], [0], [0], [0, 0, 1, 0], [], []>} : vector<17x8xbf16>, vector<17x8xbf16>, vector<17x17xf32> -> vector<17x17xf32>
    %cst_27 = arith.constant 0.353553385 : f32
    %68 = vector.broadcast %cst_27 : f32 to vector<17x17xf32>
    %69 = arith.mulf %67, %68 : vector<17x17xf32>
    %cst_28 = arith.constant dense<0xFF800000> : vector<17xf32>
    %70 = vector.multi_reduction <maximumf>, %69, %cst_28 [1] : vector<17x17xf32> to vector<17xf32>
    %71 = vector.shape_cast %70 : vector<17xf32> to vector<17x1xf32>
    %72 = vector.broadcast %71 : vector<17x1xf32> to vector<17x17xf32>
    %73 = arith.subf %69, %72 : vector<17x17xf32>
    %74 = math.exp %73 : vector<17x17xf32>
    %cst_29 = arith.constant dense<0.000000e+00> : vector<17xf32>
    %75 = vector.multi_reduction <add>, %74, %cst_29 [1] : vector<17x17xf32> to vector<17xf32>
    %76 = vector.shape_cast %75 : vector<17xf32> to vector<17x1xf32>
    %77 = tpu.reciprocal %76 {approx = true} : vector<17x1xf32> -> vector<17x1xf32>
    %78 = vector.broadcast %77 : vector<17x1xf32> to vector<17x17xf32>
    %79 = arith.mulf %74, %78 : vector<17x17xf32>
    %80 = arith.truncf %79 : vector<17x17xf32> to vector<17x17xbf16>
    %cst_30 = arith.constant dense<0.000000e+00> : vector<17x8xf32>
    %81 = tpu.matmul %80, %66, %cst_30 {dimension_numbers = #tpu.dot_dimension_numbers<[1], [0], [0], [1], [0, 0, 1, 1], [], []>} : vector<17x17xbf16>, vector<17x8xbf16>, vector<17x8xf32> -> vector<17x8xf32>
    %c0_31 = arith.constant 0 : index
    %c8 = arith.constant 8 : index
    %82 = vector.load %arg23[%c0_31, %c8] : memref<48x32xf32, #tpu.memory_space<vmem>>, vector<17x8xf32>
    tpu.vector_store %arg23[%c0_31, %c8], %81 {strides = array<i32>} : memref<48x32xf32, #tpu.memory_space<vmem>>, vector<17x8xf32>,
    %83 = vector.extract_strided_slice %38 {offsets = [0, 16], sizes = [17, 8], strides = [1, 1]} : vector<17x96xf32> to vector<17x8xf32>
    %84 = arith.truncf %83 : vector<17x8xf32> to vector<17x8xbf16>
    %85 = vector.extract_strided_slice %38 {offsets = [0, 48], sizes = [17, 8], strides = [1, 1]} : vector<17x96xf32> to vector<17x8xf32>
    %86 = arith.truncf %85 : vector<17x8xf32> to vector<17x8xbf16>
    %87 = vector.extract_strided_slice %38 {offsets = [0, 80], sizes = [17, 8], strides = [1, 1]} : vector<17x96xf32> to vector<17x8xf32>
    %88 = arith.truncf %87 : vector<17x8xf32> to vector<17x8xbf16>
    %cst_32 = arith.constant dense<0.000000e+00> : vector<17x17xf32>
    %89 = tpu.matmul %84, %86, %cst_32 {dimension_numbers = #tpu.dot_dimension_numbers<[1], [1], [0], [0], [0, 0, 1, 0], [], []>} : vector<17x8xbf16>, vector<17x8xbf16>, vector<17x17xf32> -> vector<17x17xf32>
    %cst_33 = arith.constant 0.353553385 : f32
    %90 = vector.broadcast %cst_33 : f32 to vector<17x17xf32>
    %91 = arith.mulf %89, %90 : vector<17x17xf32>
    %cst_34 = arith.constant dense<0xFF800000> : vector<17xf32>
    %92 = vector.multi_reduction <maximumf>, %91, %cst_34 [1] : vector<17x17xf32> to vector<17xf32>
    %93 = vector.shape_cast %92 : vector<17xf32> to vector<17x1xf32>
    %94 = vector.broadcast %93 : vector<17x1xf32> to vector<17x17xf32>
    %95 = arith.subf %91, %94 : vector<17x17xf32>
    %96 = math.exp %95 : vector<17x17xf32>
    %cst_35 = arith.constant dense<0.000000e+00> : vector<17xf32>
    %97 = vector.multi_reduction <add>, %96, %cst_35 [1] : vector<17x17xf32> to vector<17xf32>
    %98 = vector.shape_cast %97 : vector<17xf32> to vector<17x1xf32>
    %99 = tpu.reciprocal %98 {approx = true} : vector<17x1xf32> -> vector<17x1xf32>
    %100 = vector.broadcast %99 : vector<17x1xf32> to vector<17x17xf32>
    %101 = arith.mulf %96, %100 : vector<17x17xf32>
    %102 = arith.truncf %101 : vector<17x17xf32> to vector<17x17xbf16>
    %cst_36 = arith.constant dense<0.000000e+00> : vector<17x8xf32>
    %103 = tpu.matmul %102, %88, %cst_36 {dimension_numbers = #tpu.dot_dimension_numbers<[1], [0], [0], [1], [0, 0, 1, 1], [], []>} : vector<17x17xbf16>, vector<17x8xbf16>, vector<17x8xf32> -> vector<17x8xf32>
    %c0_37 = arith.constant 0 : index
    %c16 = arith.constant 16 : index
    %104 = vector.load %arg23[%c0_37, %c16] : memref<48x32xf32, #tpu.memory_space<vmem>>, vector<17x8xf32>
    tpu.vector_store %arg23[%c0_37, %c16], %103 {strides = array<i32>} : memref<48x32xf32, #tpu.memory_space<vmem>>, vector<17x8xf32>,
    %105 = vector.extract_strided_slice %38 {offsets = [0, 24], sizes = [17, 8], strides = [1, 1]} : vector<17x96xf32> to vector<17x8xf32>
    %106 = arith.truncf %105 : vector<17x8xf32> to vector<17x8xbf16>
    %107 = vector.extract_strided_slice %38 {offsets = [0, 56], sizes = [17, 8], strides = [1, 1]} : vector<17x96xf32> to vector<17x8xf32>
    %108 = arith.truncf %107 : vector<17x8xf32> to vector<17x8xbf16>
    %109 = vector.extract_strided_slice %38 {offsets = [0, 88], sizes = [17, 8], strides = [1, 1]} : vector<17x96xf32> to vector<17x8xf32>
    %110 = arith.truncf %109 : vector<17x8xf32> to vector<17x8xbf16>
    %cst_38 = arith.constant dense<0.000000e+00> : vector<17x17xf32>
    %111 = tpu.matmul %106, %108, %cst_38 {dimension_numbers = #tpu.dot_dimension_numbers<[1], [1], [0], [0], [0, 0, 1, 0], [], []>} : vector<17x8xbf16>, vector<17x8xbf16>, vector<17x17xf32> -> vector<17x17xf32>
    %cst_39 = arith.constant 0.353553385 : f32
    %112 = vector.broadcast %cst_39 : f32 to vector<17x17xf32>
    %113 = arith.mulf %111, %112 : vector<17x17xf32>
    %cst_40 = arith.constant dense<0xFF800000> : vector<17xf32>
    %114 = vector.multi_reduction <maximumf>, %113, %cst_40 [1] : vector<17x17xf32> to vector<17xf32>
    %115 = vector.shape_cast %114 : vector<17xf32> to vector<17x1xf32>
    %116 = vector.broadcast %115 : vector<17x1xf32> to vector<17x17xf32>
    %117 = arith.subf %113, %116 : vector<17x17xf32>
    %118 = math.exp %117 : vector<17x17xf32>
    %cst_41 = arith.constant dense<0.000000e+00> : vector<17xf32>
    %119 = vector.multi_reduction <add>, %118, %cst_41 [1] : vector<17x17xf32> to vector<17xf32>
    %120 = vector.shape_cast %119 : vector<17xf32> to vector<17x1xf32>
    %121 = tpu.reciprocal %120 {approx = true} : vector<17x1xf32> -> vector<17x1xf32>
    %122 = vector.broadcast %121 : vector<17x1xf32> to vector<17x17xf32>
    %123 = arith.mulf %118, %122 : vector<17x17xf32>
    %124 = arith.truncf %123 : vector<17x17xf32> to vector<17x17xbf16>
    %cst_42 = arith.constant dense<0.000000e+00> : vector<17x8xf32>
    %125 = tpu.matmul %124, %110, %cst_42 {dimension_numbers = #tpu.dot_dimension_numbers<[1], [0], [0], [1], [0, 0, 1, 1], [], []>} : vector<17x17xbf16>, vector<17x8xbf16>, vector<17x8xf32> -> vector<17x8xf32>
    %c0_43 = arith.constant 0 : index
    %c24 = arith.constant 24 : index
    %126 = vector.load %arg23[%c0_43, %c24] : memref<48x32xf32, #tpu.memory_space<vmem>>, vector<17x8xf32>
    tpu.vector_store %arg23[%c0_43, %c24], %125 {strides = array<i32>} : memref<48x32xf32, #tpu.memory_space<vmem>>, vector<17x8xf32>,
    %127 = vector.extract_strided_slice %37 {offsets = [24, 0], sizes = [17, 96], strides = [1, 1]} : vector<48x96xf32> to vector<17x96xf32>
    %128 = vector.extract_strided_slice %127 {offsets = [0, 0], sizes = [17, 8], strides = [1, 1]} : vector<17x96xf32> to vector<17x8xf32>
    %129 = arith.truncf %128 : vector<17x8xf32> to vector<17x8xbf16>
    %130 = vector.extract_strided_slice %127 {offsets = [0, 32], sizes = [17, 8], strides = [1, 1]} : vector<17x96xf32> to vector<17x8xf32>
    %131 = arith.truncf %130 : vector<17x8xf32> to vector<17x8xbf16>
    %132 = vector.extract_strided_slice %127 {offsets = [0, 64], sizes = [17, 8], strides = [1, 1]} : vector<17x96xf32> to vector<17x8xf32>
    %133 = arith.truncf %132 : vector<17x8xf32> to vector<17x8xbf16>
    %cst_44 = arith.constant dense<0.000000e+00> : vector<17x17xf32>
    %134 = tpu.matmul %129, %131, %cst_44 {dimension_numbers = #tpu.dot_dimension_numbers<[1], [1], [0], [0], [0, 0, 1, 0], [], []>} : vector<17x8xbf16>, vector<17x8xbf16>, vector<17x17xf32> -> vector<17x17xf32>
    %cst_45 = arith.constant 0.353553385 : f32
    %135 = vector.broadcast %cst_45 : f32 to vector<17x17xf32>
    %136 = arith.mulf %134, %135 : vector<17x17xf32>
    %cst_46 = arith.constant dense<0xFF800000> : vector<17xf32>
    %137 = vector.multi_reduction <maximumf>, %136, %cst_46 [1] : vector<17x17xf32> to vector<17xf32>
    %138 = vector.shape_cast %137 : vector<17xf32> to vector<17x1xf32>
    %139 = vector.broadcast %138 : vector<17x1xf32> to vector<17x17xf32>
    %140 = arith.subf %136, %139 : vector<17x17xf32>
    %141 = math.exp %140 : vector<17x17xf32>
    %cst_47 = arith.constant dense<0.000000e+00> : vector<17xf32>
    %142 = vector.multi_reduction <add>, %141, %cst_47 [1] : vector<17x17xf32> to vector<17xf32>
    %143 = vector.shape_cast %142 : vector<17xf32> to vector<17x1xf32>
    %144 = tpu.reciprocal %143 {approx = true} : vector<17x1xf32> -> vector<17x1xf32>
    %145 = vector.broadcast %144 : vector<17x1xf32> to vector<17x17xf32>
    %146 = arith.mulf %141, %145 : vector<17x17xf32>
    %147 = arith.truncf %146 : vector<17x17xf32> to vector<17x17xbf16>
    %cst_48 = arith.constant dense<0.000000e+00> : vector<17x8xf32>
    %148 = tpu.matmul %147, %133, %cst_48 {dimension_numbers = #tpu.dot_dimension_numbers<[1], [0], [0], [1], [0, 0, 1, 1], [], []>} : vector<17x17xbf16>, vector<17x8xbf16>, vector<17x8xf32> -> vector<17x8xf32>
    %c24_49 = arith.constant 24 : index
    %c0_50 = arith.constant 0 : index
    %149 = vector.load %arg23[%c24_49, %c0_50] : memref<48x32xf32, #tpu.memory_space<vmem>>, vector<17x8xf32>
    tpu.vector_store %arg23[%c24_49, %c0_50], %148 {strides = array<i32>} : memref<48x32xf32, #tpu.memory_space<vmem>>, vector<17x8xf32>,
    %150 = vector.extract_strided_slice %127 {offsets = [0, 8], sizes = [17, 8], strides = [1, 1]} : vector<17x96xf32> to vector<17x8xf32>
    %151 = arith.truncf %150 : vector<17x8xf32> to vector<17x8xbf16>
    %152 = vector.extract_strided_slice %127 {offsets = [0, 40], sizes = [17, 8], strides = [1, 1]} : vector<17x96xf32> to vector<17x8xf32>
    %153 = arith.truncf %152 : vector<17x8xf32> to vector<17x8xbf16>
    %154 = vector.extract_strided_slice %127 {offsets = [0, 72], sizes = [17, 8], strides = [1, 1]} : vector<17x96xf32> to vector<17x8xf32>
    %155 = arith.truncf %154 : vector<17x8xf32> to vector<17x8xbf16>
    %cst_51 = arith.constant dense<0.000000e+00> : vector<17x17xf32>
    %156 = tpu.matmul %151, %153, %cst_51 {dimension_numbers = #tpu.dot_dimension_numbers<[1], [1], [0], [0], [0, 0, 1, 0], [], []>} : vector<17x8xbf16>, vector<17x8xbf16>, vector<17x17xf32> -> vector<17x17xf32>
    %cst_52 = arith.constant 0.353553385 : f32
    %157 = vector.broadcast %cst_52 : f32 to vector<17x17xf32>
    %158 = arith.mulf %156, %157 : vector<17x17xf32>
    %cst_53 = arith.constant dense<0xFF800000> : vector<17xf32>
    %159 = vector.multi_reduction <maximumf>, %158, %cst_53 [1] : vector<17x17xf32> to vector<17xf32>
    %160 = vector.shape_cast %159 : vector<17xf32> to vector<17x1xf32>
    %161 = vector.broadcast %160 : vector<17x1xf32> to vector<17x17xf32>
    %162 = arith.subf %158, %161 : vector<17x17xf32>
    %163 = math.exp %162 : vector<17x17xf32>
    %cst_54 = arith.constant dense<0.000000e+00> : vector<17xf32>
    %164 = vector.multi_reduction <add>, %163, %cst_54 [1] : vector<17x17xf32> to vector<17xf32>
    %165 = vector.shape_cast %164 : vector<17xf32> to vector<17x1xf32>
    %166 = tpu.reciprocal %165 {approx = true} : vector<17x1xf32> -> vector<17x1xf32>
    %167 = vector.broadcast %166 : vector<17x1xf32> to vector<17x17xf32>
    %168 = arith.mulf %163, %167 : vector<17x17xf32>
    %169 = arith.truncf %168 : vector<17x17xf32> to vector<17x17xbf16>
    %cst_55 = arith.constant dense<0.000000e+00> : vector<17x8xf32>
    %170 = tpu.matmul %169, %155, %cst_55 {dimension_numbers = #tpu.dot_dimension_numbers<[1], [0], [0], [1], [0, 0, 1, 1], [], []>} : vector<17x17xbf16>, vector<17x8xbf16>, vector<17x8xf32> -> vector<17x8xf32>
    %c24_56 = arith.constant 24 : index
    %c8_57 = arith.constant 8 : index
    %171 = vector.load %arg23[%c24_56, %c8_57] : memref<48x32xf32, #tpu.memory_space<vmem>>, vector<17x8xf32>
    tpu.vector_store %arg23[%c24_56, %c8_57], %170 {strides = array<i32>} : memref<48x32xf32, #tpu.memory_space<vmem>>, vector<17x8xf32>,
    %172 = vector.extract_strided_slice %127 {offsets = [0, 16], sizes = [17, 8], strides = [1, 1]} : vector<17x96xf32> to vector<17x8xf32>
    %173 = arith.truncf %172 : vector<17x8xf32> to vector<17x8xbf16>
    %174 = vector.extract_strided_slice %127 {offsets = [0, 48], sizes = [17, 8], strides = [1, 1]} : vector<17x96xf32> to vector<17x8xf32>
    %175 = arith.truncf %174 : vector<17x8xf32> to vector<17x8xbf16>
    %176 = vector.extract_strided_slice %127 {offsets = [0, 80], sizes = [17, 8], strides = [1, 1]} : vector<17x96xf32> to vector<17x8xf32>
    %177 = arith.truncf %176 : vector<17x8xf32> to vector<17x8xbf16>
    %cst_58 = arith.constant dense<0.000000e+00> : vector<17x17xf32>
    %178 = tpu.matmul %173, %175, %cst_58 {dimension_numbers = #tpu.dot_dimension_numbers<[1], [1], [0], [0], [0, 0, 1, 0], [], []>} : vector<17x8xbf16>, vector<17x8xbf16>, vector<17x17xf32> -> vector<17x17xf32>
    %cst_59 = arith.constant 0.353553385 : f32
    %179 = vector.broadcast %cst_59 : f32 to vector<17x17xf32>
    %180 = arith.mulf %178, %179 : vector<17x17xf32>
    %cst_60 = arith.constant dense<0xFF800000> : vector<17xf32>
    %181 = vector.multi_reduction <maximumf>, %180, %cst_60 [1] : vector<17x17xf32> to vector<17xf32>
    %182 = vector.shape_cast %181 : vector<17xf32> to vector<17x1xf32>
    %183 = vector.broadcast %182 : vector<17x1xf32> to vector<17x17xf32>
    %184 = arith.subf %180, %183 : vector<17x17xf32>
    %185 = math.exp %184 : vector<17x17xf32>
    %cst_61 = arith.constant dense<0.000000e+00> : vector<17xf32>
    %186 = vector.multi_reduction <add>, %185, %cst_61 [1] : vector<17x17xf32> to vector<17xf32>
    %187 = vector.shape_cast %186 : vector<17xf32> to vector<17x1xf32>
    %188 = tpu.reciprocal %187 {approx = true} : vector<17x1xf32> -> vector<17x1xf32>
    %189 = vector.broadcast %188 : vector<17x1xf32> to vector<17x17xf32>
    %190 = arith.mulf %185, %189 : vector<17x17xf32>
    %191 = arith.truncf %190 : vector<17x17xf32> to vector<17x17xbf16>
    %cst_62 = arith.constant dense<0.000000e+00> : vector<17x8xf32>
    %192 = tpu.matmul %191, %177, %cst_62 {dimension_numbers = #tpu.dot_dimension_numbers<[1], [0], [0], [1], [0, 0, 1, 1], [], []>} : vector<17x17xbf16>, vector<17x8xbf16>, vector<17x8xf32> -> vector<17x8xf32>
    %c24_63 = arith.constant 24 : index
    %c16_64 = arith.constant 16 : index
    %193 = vector.load %arg23[%c24_63, %c16_64] : memref<48x32xf32, #tpu.memory_space<vmem>>, vector<17x8xf32>
    tpu.vector_store %arg23[%c24_63, %c16_64], %192 {strides = array<i32>} : memref<48x32xf32, #tpu.memory_space<vmem>>, vector<17x8xf32>,
    %194 = vector.extract_strided_slice %127 {offsets = [0, 24], sizes = [17, 8], strides = [1, 1]} : vector<17x96xf32> to vector<17x8xf32>
    %195 = arith.truncf %194 : vector<17x8xf32> to vector<17x8xbf16>
    %196 = vector.extract_strided_slice %127 {offsets = [0, 56], sizes = [17, 8], strides = [1, 1]} : vector<17x96xf32> to vector<17x8xf32>
    %197 = arith.truncf %196 : vector<17x8xf32> to vector<17x8xbf16>
    %198 = vector.extract_strided_slice %127 {offsets = [0, 88], sizes = [17, 8], strides = [1, 1]} : vector<17x96xf32> to vector<17x8xf32>
    %199 = arith.truncf %198 : vector<17x8xf32> to vector<17x8xbf16>
    %cst_65 = arith.constant dense<0.000000e+00> : vector<17x17xf32>
    %200 = tpu.matmul %195, %197, %cst_65 {dimension_numbers = #tpu.dot_dimension_numbers<[1], [1], [0], [0], [0, 0, 1, 0], [], []>} : vector<17x8xbf16>, vector<17x8xbf16>, vector<17x17xf32> -> vector<17x17xf32>
    %cst_66 = arith.constant 0.353553385 : f32
    %201 = vector.broadcast %cst_66 : f32 to vector<17x17xf32>
    %202 = arith.mulf %200, %201 : vector<17x17xf32>
    %cst_67 = arith.constant dense<0xFF800000> : vector<17xf32>
    %203 = vector.multi_reduction <maximumf>, %202, %cst_67 [1] : vector<17x17xf32> to vector<17xf32>
    %204 = vector.shape_cast %203 : vector<17xf32> to vector<17x1xf32>
    %205 = vector.broadcast %204 : vector<17x1xf32> to vector<17x17xf32>
    %206 = arith.subf %202, %205 : vector<17x17xf32>
    %207 = math.exp %206 : vector<17x17xf32>
    %cst_68 = arith.constant dense<0.000000e+00> : vector<17xf32>
    %208 = vector.multi_reduction <add>, %207, %cst_68 [1] : vector<17x17xf32> to vector<17xf32>
    %209 = vector.shape_cast %208 : vector<17xf32> to vector<17x1xf32>
    %210 = tpu.reciprocal %209 {approx = true} : vector<17x1xf32> -> vector<17x1xf32>
    %211 = vector.broadcast %210 : vector<17x1xf32> to vector<17x17xf32>
    %212 = arith.mulf %207, %211 : vector<17x17xf32>
    %213 = arith.truncf %212 : vector<17x17xf32> to vector<17x17xbf16>
    %cst_69 = arith.constant dense<0.000000e+00> : vector<17x8xf32>
    %214 = tpu.matmul %213, %199, %cst_69 {dimension_numbers = #tpu.dot_dimension_numbers<[1], [0], [0], [1], [0, 0, 1, 1], [], []>} : vector<17x17xbf16>, vector<17x8xbf16>, vector<17x8xf32> -> vector<17x8xf32>
    %c24_70 = arith.constant 24 : index
    %c24_71 = arith.constant 24 : index
    %215 = vector.load %arg23[%c24_70, %c24_71] : memref<48x32xf32, #tpu.memory_space<vmem>>, vector<17x8xf32>
    tpu.vector_store %arg23[%c24_70, %c24_71], %214 {strides = array<i32>} : memref<48x32xf32, #tpu.memory_space<vmem>>, vector<17x8xf32>,
    %c0_72 = arith.constant 0 : index
    %c0_73 = arith.constant 0 : index
    %216 = vector.load %arg23[%c0_72, %c0_73] : memref<48x32xf32, #tpu.memory_space<vmem>>, vector<48x32xf32>
    %217 = arith.addf %3, %216 : vector<48x32xf32>
    %c0_74 = arith.constant 0 : index
    %c0_75 = arith.constant 0 : index
    %c0_76 = arith.constant 0 : index
    %218 = vector.load %arg11[%c0_74, %c0_75, %c0_76] : memref<1x1x32xf32, #tpu.memory_space<vmem>>, vector<1x1x32xf32>
    %219 = vector.shape_cast %218 : vector<1x1x32xf32> to vector<1x32xf32>
    %c0_77 = arith.constant 0 : index
    %c0_78 = arith.constant 0 : index
    %c0_79 = arith.constant 0 : index
    %220 = vector.load %arg12[%c0_77, %c0_78, %c0_79] : memref<1x1x32xf32, #tpu.memory_space<vmem>>, vector<1x1x32xf32>
    %221 = vector.shape_cast %220 : vector<1x1x32xf32> to vector<1x32xf32>
    %cst_80 = arith.constant dense<0.000000e+00> : vector<48xf32>
    %222 = vector.multi_reduction <add>, %217, %cst_80 [1] : vector<48x32xf32> to vector<48xf32>
    %223 = vector.shape_cast %222 : vector<48xf32> to vector<48x1xf32>
    %cst_81 = arith.constant 3.200000e+01 : f32
    %224 = vector.broadcast %cst_81 : f32 to vector<48x1xf32>
    %225 = arith.divf %223, %224 : vector<48x1xf32>
    %226 = vector.broadcast %225 : vector<48x1xf32> to vector<48x32xf32>
    %227 = arith.subf %217, %226 : vector<48x32xf32>
    %228 = arith.mulf %227, %227 : vector<48x32xf32>
    %cst_82 = arith.constant dense<0.000000e+00> : vector<48xf32>
    %229 = vector.multi_reduction <add>, %228, %cst_82 [1] : vector<48x32xf32> to vector<48xf32>
    %230 = vector.shape_cast %229 : vector<48xf32> to vector<48x1xf32>
    %cst_83 = arith.constant 3.200000e+01 : f32
    %231 = vector.broadcast %cst_83 : f32 to vector<48x1xf32>
    %232 = arith.divf %230, %231 : vector<48x1xf32>
    %233 = vector.broadcast %225 : vector<48x1xf32> to vector<48x32xf32>
    %234 = arith.subf %217, %233 : vector<48x32xf32>
    %cst_84 = arith.constant 9.99999974E-6 : f32
    %235 = vector.broadcast %cst_84 : f32 to vector<48x1xf32>
    %236 = arith.addf %232, %235 : vector<48x1xf32>
    %237 = math.rsqrt %236 : vector<48x1xf32>
    %238 = vector.broadcast %237 : vector<48x1xf32> to vector<48x32xf32>
    %239 = arith.mulf %234, %238 : vector<48x32xf32>
    %240 = vector.broadcast %219 : vector<1x32xf32> to vector<48x32xf32>
    %241 = arith.mulf %239, %240 : vector<48x32xf32>
    %242 = vector.broadcast %221 : vector<1x32xf32> to vector<48x32xf32>
    %243 = arith.addf %241, %242 : vector<48x32xf32>
    %244 = arith.truncf %243 : vector<48x32xf32> to vector<48x32xbf16>
    %c0_85 = arith.constant 0 : index
    %c0_86 = arith.constant 0 : index
    %c0_87 = arith.constant 0 : index
    %245 = vector.load %arg13[%c0_85, %c0_86, %c0_87] : memref<1x32x64xbf16, #tpu.memory_space<vmem>>, vector<1x32x64xbf16>
    %246 = vector.shape_cast %245 : vector<1x32x64xbf16> to vector<32x64xbf16>
    %cst_88 = arith.constant dense<0.000000e+00> : vector<48x64xf32>
    %247 = tpu.matmul %244, %246, %cst_88 {dimension_numbers = #tpu.dot_dimension_numbers<[1], [0], [0], [1], [0, 0, 1, 1], [], []>} : vector<48x32xbf16>, vector<32x64xbf16>, vector<48x64xf32> -> vector<48x64xf32>
    %c0_89 = arith.constant 0 : index
    %c0_90 = arith.constant 0 : index
    %c0_91 = arith.constant 0 : index
    %248 = vector.load %arg14[%c0_89, %c0_90, %c0_91] : memref<1x1x64xf32, #tpu.memory_space<vmem>>, vector<1x1x64xf32>
    %249 = vector.shape_cast %248 : vector<1x1x64xf32> to vector<1x64xf32>
    %250 = vector.broadcast %249 : vector<1x64xf32> to vector<48x64xf32>
    %251 = arith.addf %247, %250 : vector<48x64xf32>
    %cst_92 = arith.constant 5.000000e-01 : f32
    %252 = vector.broadcast %cst_92 : f32 to vector<48x64xf32>
    %253 = arith.mulf %252, %251 : vector<48x64xf32>
    %cst_93 = arith.constant 0.707106769 : f32
    %254 = vector.broadcast %cst_93 : f32 to vector<48x64xf32>
    %255 = arith.mulf %251, %254 : vector<48x64xf32>
    %256 = math.erf %255 : vector<48x64xf32>
    %cst_94 = arith.constant 1.000000e+00 : f32
    %257 = vector.broadcast %cst_94 : f32 to vector<48x64xf32>
    %258 = arith.addf %257, %256 : vector<48x64xf32>
    %259 = arith.mulf %253, %258 : vector<48x64xf32>
    %260 = arith.truncf %259 : vector<48x64xf32> to vector<48x64xbf16>
    %c0_95 = arith.constant 0 : index
    %c0_96 = arith.constant 0 : index
    %c0_97 = arith.constant 0 : index
    %261 = vector.load %arg15[%c0_95, %c0_96, %c0_97] : memref<1x64x32xbf16, #tpu.memory_space<vmem>>, vector<1x64x32xbf16>
    %262 = vector.shape_cast %261 : vector<1x64x32xbf16> to vector<64x32xbf16>
    %cst_98 = arith.constant dense<0.000000e+00> : vector<48x32xf32>
    %263 = tpu.matmul %260, %262, %cst_98 {dimension_numbers = #tpu.dot_dimension_numbers<[1], [0], [0], [1], [0, 0, 1, 1], [], []>} : vector<48x64xbf16>, vector<64x32xbf16>, vector<48x32xf32> -> vector<48x32xf32>
    %264 = arith.addf %217, %263 : vector<48x32xf32>
    %c0_99 = arith.constant 0 : index
    %c0_100 = arith.constant 0 : index
    %c0_101 = arith.constant 0 : index
    %265 = vector.load %arg16[%c0_99, %c0_100, %c0_101] : memref<1x1x32xf32, #tpu.memory_space<vmem>>, vector<1x1x32xf32>
    %266 = vector.shape_cast %265 : vector<1x1x32xf32> to vector<1x32xf32>
    %267 = vector.broadcast %266 : vector<1x32xf32> to vector<48x32xf32>
    %268 = arith.addf %264, %267 : vector<48x32xf32>
    %c0_102 = arith.constant 0 : index
    %c0_103 = arith.constant 0 : index
    %269 = vector.load %arg22[%c0_102, %c0_103] : memref<48x32xf32, #tpu.memory_space<vmem>>, vector<48x32xf32>
    tpu.vector_store %arg22[%c0_102, %c0_103], %268 {strides = array<i32>} : memref<48x32xf32, #tpu.memory_space<vmem>>, vector<48x32xf32>,
    %c1_i32 = arith.constant 1 : i32
    %270 = arith.cmpi eq, %arg1, %c1_i32 : i32
    %271 = arith.extui %270 : i1 to i32
    %c0_i32_104 = arith.constant 0 : i32
    %272 = arith.cmpi ne, %271, %c0_i32_104 : i32
    scf.if %272 {
      %273 = vector.extract_strided_slice %268 {offsets = [0, 0], sizes = [1, 32], strides = [1, 1]} : vector<48x32xf32> to vector<1x32xf32>
      %c0_105 = arith.constant 0 : index
      %c0_106 = arith.constant 0 : index
      %274 = vector.load %arg17[%c0_105, %c0_106] : memref<1x32xf32, #tpu.memory_space<vmem>>, vector<1x32xf32>
      %c0_107 = arith.constant 0 : index
      %c0_108 = arith.constant 0 : index
      %275 = vector.load %arg18[%c0_107, %c0_108] : memref<1x32xf32, #tpu.memory_space<vmem>>, vector<1x32xf32>
      %cst_109 = arith.constant dense<0.000000e+00> : vector<1xf32>
      %276 = vector.multi_reduction <add>, %273, %cst_109 [1] : vector<1x32xf32> to vector<1xf32>
      %277 = vector.shape_cast %276 : vector<1xf32> to vector<1x1xf32>
      %cst_110 = arith.constant 3.200000e+01 : f32
      %278 = vector.broadcast %cst_110 : f32 to vector<1x1xf32>
      %279 = arith.divf %277, %278 : vector<1x1xf32>
      %280 = vector.broadcast %279 : vector<1x1xf32> to vector<1x32xf32>
      %281 = arith.subf %273, %280 : vector<1x32xf32>
      %282 = arith.mulf %281, %281 : vector<1x32xf32>
      %cst_111 = arith.constant dense<0.000000e+00> : vector<1xf32>
      %283 = vector.multi_reduction <add>, %282, %cst_111 [1] : vector<1x32xf32> to vector<1xf32>
      %284 = vector.shape_cast %283 : vector<1xf32> to vector<1x1xf32>
      %cst_112 = arith.constant 3.200000e+01 : f32
      %285 = vector.broadcast %cst_112 : f32 to vector<1x1xf32>
      %286 = arith.divf %284, %285 : vector<1x1xf32>
      %287 = vector.broadcast %279 : vector<1x1xf32> to vector<1x32xf32>
      %288 = arith.subf %273, %287 : vector<1x32xf32>
      %cst_113 = arith.constant 9.99999974E-6 : f32
      %289 = vector.broadcast %cst_113 : f32 to vector<1x1xf32>
      %290 = arith.addf %286, %289 : vector<1x1xf32>
      %291 = math.rsqrt %290 : vector<1x1xf32>
      %292 = vector.broadcast %291 : vector<1x1xf32> to vector<1x32xf32>
      %293 = arith.mulf %288, %292 : vector<1x32xf32>
      %294 = arith.mulf %293, %274 : vector<1x32xf32>
      %295 = arith.addf %294, %275 : vector<1x32xf32>
      %296 = arith.truncf %295 : vector<1x32xf32> to vector<1x32xbf16>
      %c0_114 = arith.constant 0 : index
      %c0_115 = arith.constant 0 : index
      %297 = vector.load %arg19[%c0_114, %c0_115] : memref<32x8xbf16, #tpu.memory_space<vmem>>, vector<32x8xbf16>
      %cst_116 = arith.constant dense<0.000000e+00> : vector<1x8xf32>
      %298 = tpu.matmul %296, %297, %cst_116 {dimension_numbers = #tpu.dot_dimension_numbers<[1], [0], [0], [1], [0, 0, 1, 1], [], []>} : vector<1x32xbf16>, vector<32x8xbf16>, vector<1x8xf32> -> vector<1x8xf32>
      %c0_117 = arith.constant 0 : index
      %c0_118 = arith.constant 0 : index
      %299 = vector.load %arg20[%c0_117, %c0_118] : memref<1x8xf32, #tpu.memory_space<vmem>>, vector<1x8xf32>
      %300 = arith.addf %298, %299 : vector<1x8xf32>
      %c0_119 = arith.constant 0 : index
      %c0_120 = arith.constant 0 : index
      %c0_121 = arith.constant 0 : index
      %301 = vector.load %arg21[%c0_119, %c0_120, %c0_121] : memref<2x1x8xf32, #tpu.memory_space<vmem>>, vector<1x1x8xf32>
      %302 = vector.shape_cast %301 : vector<1x1x8xf32> to vector<1x8xf32>
      %303 = vector.shape_cast %300 : vector<1x8xf32> to vector<1x1x8xf32>
      tpu.vector_store %arg21[%c0_119, %c0_120, %c0_121], %303 {strides = array<i32>} : memref<2x1x8xf32, #tpu.memory_space<vmem>>, vector<1x1x8xf32>,
      %304 = vector.extract_strided_slice %268 {offsets = [24, 0], sizes = [1, 32], strides = [1, 1]} : vector<48x32xf32> to vector<1x32xf32>
      %c0_122 = arith.constant 0 : index
      %c0_123 = arith.constant 0 : index
      %305 = vector.load %arg17[%c0_122, %c0_123] : memref<1x32xf32, #tpu.memory_space<vmem>>, vector<1x32xf32>
      %c0_124 = arith.constant 0 : index
      %c0_125 = arith.constant 0 : index
      %306 = vector.load %arg18[%c0_124, %c0_125] : memref<1x32xf32, #tpu.memory_space<vmem>>, vector<1x32xf32>
      %cst_126 = arith.constant dense<0.000000e+00> : vector<1xf32>
      %307 = vector.multi_reduction <add>, %304, %cst_126 [1] : vector<1x32xf32> to vector<1xf32>
      %308 = vector.shape_cast %307 : vector<1xf32> to vector<1x1xf32>
      %cst_127 = arith.constant 3.200000e+01 : f32
      %309 = vector.broadcast %cst_127 : f32 to vector<1x1xf32>
      %310 = arith.divf %308, %309 : vector<1x1xf32>
      %311 = vector.broadcast %310 : vector<1x1xf32> to vector<1x32xf32>
      %312 = arith.subf %304, %311 : vector<1x32xf32>
      %313 = arith.mulf %312, %312 : vector<1x32xf32>
      %cst_128 = arith.constant dense<0.000000e+00> : vector<1xf32>
      %314 = vector.multi_reduction <add>, %313, %cst_128 [1] : vector<1x32xf32> to vector<1xf32>
      %315 = vector.shape_cast %314 : vector<1xf32> to vector<1x1xf32>
      %cst_129 = arith.constant 3.200000e+01 : f32
      %316 = vector.broadcast %cst_129 : f32 to vector<1x1xf32>
      %317 = arith.divf %315, %316 : vector<1x1xf32>
      %318 = vector.broadcast %310 : vector<1x1xf32> to vector<1x32xf32>
      %319 = arith.subf %304, %318 : vector<1x32xf32>
      %cst_130 = arith.constant 9.99999974E-6 : f32
      %320 = vector.broadcast %cst_130 : f32 to vector<1x1xf32>
      %321 = arith.addf %317, %320 : vector<1x1xf32>
      %322 = math.rsqrt %321 : vector<1x1xf32>
      %323 = vector.broadcast %322 : vector<1x1xf32> to vector<1x32xf32>
      %324 = arith.mulf %319, %323 : vector<1x32xf32>
      %325 = arith.mulf %324, %305 : vector<1x32xf32>
      %326 = arith.addf %325, %306 : vector<1x32xf32>
      %327 = arith.truncf %326 : vector<1x32xf32> to vector<1x32xbf16>
      %c0_131 = arith.constant 0 : index
      %c0_132 = arith.constant 0 : index
      %328 = vector.load %arg19[%c0_131, %c0_132] : memref<32x8xbf16, #tpu.memory_space<vmem>>, vector<32x8xbf16>
      %cst_133 = arith.constant dense<0.000000e+00> : vector<1x8xf32>
      %329 = tpu.matmul %327, %328, %cst_133 {dimension_numbers = #tpu.dot_dimension_numbers<[1], [0], [0], [1], [0, 0, 1, 1], [], []>} : vector<1x32xbf16>, vector<32x8xbf16>, vector<1x8xf32> -> vector<1x8xf32>
      %c0_134 = arith.constant 0 : index
      %c0_135 = arith.constant 0 : index
      %330 = vector.load %arg20[%c0_134, %c0_135] : memref<1x8xf32, #tpu.memory_space<vmem>>, vector<1x8xf32>
      %331 = arith.addf %329, %330 : vector<1x8xf32>
      %c1 = arith.constant 1 : index
      %c0_136 = arith.constant 0 : index
      %c0_137 = arith.constant 0 : index
      %332 = vector.load %arg21[%c1, %c0_136, %c0_137] : memref<2x1x8xf32, #tpu.memory_space<vmem>>, vector<1x1x8xf32>
      %333 = vector.shape_cast %332 : vector<1x1x8xf32> to vector<1x8xf32>
      %334 = vector.shape_cast %331 : vector<1x8xf32> to vector<1x1x8xf32>
      tpu.vector_store %arg21[%c1, %c0_136, %c0_137], %334 {strides = array<i32>} : memref<2x1x8xf32, #tpu.memory_space<vmem>>, vector<1x1x8xf32>,
    } else {
    }
    return
  }
  func.func @transform_0(%arg0: i32, %arg1: i32) -> (i32, i32, i32) {
    %c0_i32 = arith.constant 0 : i32
    %c0_i32_0 = arith.constant 0 : i32
    %c0_i32_1 = arith.constant 0 : i32
    return %arg0, %c0_i32, %c0_i32_0 : i32, i32, i32
  }
  func.func @transform_1(%arg0: i32, %arg1: i32) -> (i32, i32) {
    %c0_i32 = arith.constant 0 : i32
    %c0_i32_0 = arith.constant 0 : i32
    %c0_i32_1 = arith.constant 0 : i32
    return %c0_i32, %c0_i32_0 : i32, i32
  }
  func.func @transform_2(%arg0: i32, %arg1: i32) -> (i32, i32) {
    %c0_i32 = arith.constant 0 : i32
    %c0_i32_0 = arith.constant 0 : i32
    %c0_i32_1 = arith.constant 0 : i32
    return %c0_i32, %c0_i32_0 : i32, i32
  }
  func.func @transform_3(%arg0: i32, %arg1: i32) -> (i32, i32) {
    %c0_i32 = arith.constant 0 : i32
    %c0_i32_0 = arith.constant 0 : i32
    %c0_i32_1 = arith.constant 0 : i32
    return %c0_i32, %c0_i32_0 : i32, i32
  }
  func.func @transform_4(%arg0: i32, %arg1: i32) -> (i32, i32) {
    %c0_i32 = arith.constant 0 : i32
    %c0_i32_0 = arith.constant 0 : i32
    %c0_i32_1 = arith.constant 0 : i32
    return %c0_i32, %c0_i32_0 : i32, i32
  }
  func.func @transform_5(%arg0: i32, %arg1: i32) -> (i32, i32, i32) {
    %c0_i32 = arith.constant 0 : i32
    %c0_i32_0 = arith.constant 0 : i32
    %c0_i32_1 = arith.constant 0 : i32
    return %arg1, %c0_i32, %c0_i32_0 : i32, i32, i32
  }
  func.func @transform_6(%arg0: i32, %arg1: i32) -> (i32, i32, i32) {
    %c0_i32 = arith.constant 0 : i32
    %c0_i32_0 = arith.constant 0 : i32
    %c0_i32_1 = arith.constant 0 : i32
    return %arg1, %c0_i32, %c0_i32_0 : i32, i32, i32
  }
  func.func @transform_7(%arg0: i32, %arg1: i32) -> (i32, i32, i32) {
    %c0_i32 = arith.constant 0 : i32
    %c0_i32_0 = arith.constant 0 : i32
    %c0_i32_1 = arith.constant 0 : i32
    return %arg1, %c0_i32, %c0_i32_0 : i32, i32, i32
  }
  func.func @transform_8(%arg0: i32, %arg1: i32) -> (i32, i32, i32) {
    %c0_i32 = arith.constant 0 : i32
    %c0_i32_0 = arith.constant 0 : i32
    %c0_i32_1 = arith.constant 0 : i32
    return %arg1, %c0_i32, %c0_i32_0 : i32, i32, i32
  }
  func.func @transform_9(%arg0: i32, %arg1: i32) -> (i32, i32, i32) {
    %c0_i32 = arith.constant 0 : i32
    %c0_i32_0 = arith.constant 0 : i32
    %c0_i32_1 = arith.constant 0 : i32
    return %arg1, %c0_i32, %c0_i32_0 : i32, i32, i32
  }
  func.func @transform_10(%arg0: i32, %arg1: i32) -> (i32, i32, i32) {
    %c0_i32 = arith.constant 0 : i32
    %c0_i32_0 = arith.constant 0 : i32
    %c0_i32_1 = arith.constant 0 : i32
    return %arg1, %c0_i32, %c0_i32_0 : i32, i32, i32
  }
  func.func @transform_11(%arg0: i32, %arg1: i32) -> (i32, i32, i32) {
    %c0_i32 = arith.constant 0 : i32
    %c0_i32_0 = arith.constant 0 : i32
    %c0_i32_1 = arith.constant 0 : i32
    return %arg1, %c0_i32, %c0_i32_0 : i32, i32, i32
  }
  func.func @transform_12(%arg0: i32, %arg1: i32) -> (i32, i32, i32) {
    %c0_i32 = arith.constant 0 : i32
    %c0_i32_0 = arith.constant 0 : i32
    %c0_i32_1 = arith.constant 0 : i32
    return %arg1, %c0_i32, %c0_i32_0 : i32, i32, i32
  }
  func.func @transform_13(%arg0: i32, %arg1: i32) -> (i32, i32, i32) {
    %c0_i32 = arith.constant 0 : i32
    %c0_i32_0 = arith.constant 0 : i32
    %c0_i32_1 = arith.constant 0 : i32
    return %arg1, %c0_i32, %c0_i32_0 : i32, i32, i32
  }
  func.func @transform_14(%arg0: i32, %arg1: i32) -> (i32, i32, i32) {
    %c0_i32 = arith.constant 0 : i32
    %c0_i32_0 = arith.constant 0 : i32
    %c0_i32_1 = arith.constant 0 : i32
    return %arg1, %c0_i32, %c0_i32_0 : i32, i32, i32
  }
  func.func @transform_15(%arg0: i32, %arg1: i32) -> (i32, i32) {
    %c0_i32 = arith.constant 0 : i32
    %c0_i32_0 = arith.constant 0 : i32
    %c0_i32_1 = arith.constant 0 : i32
    return %c0_i32, %c0_i32_0 : i32, i32
  }
  func.func @transform_16(%arg0: i32, %arg1: i32) -> (i32, i32) {
    %c0_i32 = arith.constant 0 : i32
    %c0_i32_0 = arith.constant 0 : i32
    %c0_i32_1 = arith.constant 0 : i32
    return %c0_i32, %c0_i32_0 : i32, i32
  }
  func.func @transform_17(%arg0: i32, %arg1: i32) -> (i32, i32) {
    %c0_i32 = arith.constant 0 : i32
    %c0_i32_0 = arith.constant 0 : i32
    %c0_i32_1 = arith.constant 0 : i32
    return %c0_i32, %c0_i32_0 : i32, i32
  }
  func.func @transform_18(%arg0: i32, %arg1: i32) -> (i32, i32) {
    %c0_i32 = arith.constant 0 : i32
    %c0_i32_0 = arith.constant 0 : i32
    %c0_i32_1 = arith.constant 0 : i32
    return %c0_i32, %c0_i32_0 : i32, i32
  }
  func.func @transform_19(%arg0: i32, %arg1: i32) -> (i32, i32, i32) {
    %c0_i32 = arith.constant 0 : i32
    %c0_i32_0 = arith.constant 0 : i32
    %c0_i32_1 = arith.constant 0 : i32
    return %arg0, %c0_i32, %c0_i32_0 : i32, i32, i32
  }
}

</mosaic_0001>

<llo_original>
// kernel: vit_forward.1
$region0: #{vit_forward.1}
  #allocation0 [shape = 'u32[]', space=smem, size = 0x4, offset = 0x4, fixed_abs, tag = 'smem constant byte address 0x4 - core index']
  #allocation1 [shape = 'u32[72,128]{1,0:T(1,128)}', space=vmem, size = 0x9000, scoped, tag = 'internal scratch']
  #allocation2 [shape = 'f32[48,32]{1,0:T(8,128)}', space=vmem, size = 0x6000, scoped, tag = 'scratch operand']
  #allocation3 [shape = 'f32[48,32]{1,0:T(8,128)}', space=vmem, size = 0x6000, scoped, tag = 'scratch operand']
  %s0 = inlined_call_operand.vmem [shape: bf16[2,16,48], index: 0, kind: input, shape index: {}]
  %s1 = inlined_call_operand.vmem [shape: bf16[48,32], index: 1, kind: input, shape index: {}]
  %s2 = inlined_call_operand.vmem [shape: f32[1,32], index: 2, kind: input, shape index: {}]
  %s3 = inlined_call_operand.vmem [shape: f32[1,32], index: 3, kind: input, shape index: {}]
  %s4 = inlined_call_operand.vmem [shape: f32[17,32], index: 4, kind: input, shape index: {}]
  %s5 = inlined_call_operand.vmem [shape: f32[2,1,32], index: 5, kind: input, shape index: {}]
  %s6 = inlined_call_operand.vmem [shape: f32[2,1,32], index: 6, kind: input, shape index: {}]
  %s7 = inlined_call_operand.vmem [shape: bf16[2,32,96], index: 7, kind: input, shape index: {}]
  %s8 = inlined_call_operand.vmem [shape: f32[2,1,96], index: 8, kind: input, shape index: {}]
  %s9 = inlined_call_operand.vmem [shape: f32[2,1,32], index: 9, kind: input, shape index: {}]
  %s10 = inlined_call_operand.vmem [shape: f32[2,1,32], index: 10, kind: input, shape index: {}]
  %s11 = inlined_call_operand.vmem [shape: bf16[2,32,64], index: 11, kind: input, shape index: {}]
  %s12 = inlined_call_operand.vmem [shape: f32[2,1,64], index: 12, kind: input, shape index: {}]
  %s13 = inlined_call_operand.vmem [shape: bf16[2,64,32], index: 13, kind: input, shape index: {}]
  %s14 = inlined_call_operand.vmem [shape: f32[2,1,32], index: 14, kind: input, shape index: {}]
  %s15 = inlined_call_operand.vmem [shape: f32[1,32], index: 15, kind: input, shape index: {}]
  %s16 = inlined_call_operand.vmem [shape: f32[1,32], index: 16, kind: input, shape index: {}]
  %s17 = inlined_call_operand.vmem [shape: bf16[32,8], index: 17, kind: input, shape index: {}]
  %s18 = inlined_call_operand.vmem [shape: f32[1,8], index: 18, kind: input, shape index: {}]
  %s19 = inlined_call_operand.hbm [shape: f32[2,1,8], index: 19, kind: output, shape index: {}]
  %s20 = sld [smem:[#allocation0]]
  $region117: #{vit_forward.1} parent=0
    _
  %s22 = ssub.s32 1, %s20
  %s23 = scalar_select 0, %s22, %s20
  $region1: #{vit_forward.1} parent=0
    #allocation4 [shape = 'u8[1024]{0}', space=vmem, size = 0x400, scoped, tag = 'output window, operand 0, single buffered']
    #allocation5 [shape = 's32[2]{0}', space=sflag, size = 0x8, scoped, tag = 'scoped memory for vit_forward.1']
    %24 = vsyncpa [#allocation5], 0
    loop: start=0, step=1, limit=4
    $region2: #{vit_forward.1} parent=1 // loop_pre_header
      _
    $region3: #{vit_forward.1} parent=1 // loop_header
      %s26 = sphi 0, %s30
      %p27 = scmp.ge.s32.totalorder %s26, 4
      %s33 = sphi 0, %s45
      %s34 = sphi 0, %s41
      %s35 = sphi 0, %s33
      %s36 = sphi 0, %s34
      %s37 = sphi 0, %s35
      %s38 = sphi 0, %s36
      %s48 = sphi 0, %s50
      %s51 = sphi 0, %s48
      %s52 = sphi 0, %s51
      %s68 = sphi 0, %s52
      %s72 = sphi 0, %s72
      %s74 = sphi 0, %s72
      %s75 = sphi 0, %s74
      %s89 = sphi 0, %s75
      %s93 = sphi 0, %s93
      %s95 = sphi 0, %s93
      %s96 = sphi 0, %s95
      %s110 = sphi 0, %s96
      %s114 = sphi 0, %s114
      %s116 = sphi 0, %s114
      %s117 = sphi 0, %s116
      %s131 = sphi 0, %s117
      %s135 = sphi 0, %s135
      %s137 = sphi 0, %s135
      %s138 = sphi 0, %s137
      %s152 = sphi 0, %s138
      %s158 = sphi 0, %s160
      %s161 = sphi 0, %s158
      %s162 = sphi 0, %s161
      %s178 = sphi 0, %s162
      %s184 = sphi 0, %s186
      %s187 = sphi 0, %s184
      %s188 = sphi 0, %s187
      %s204 = sphi 0, %s188
      %s210 = sphi 0, %s212
      %s213 = sphi 0, %s210
      %s214 = sphi 0, %s213
      %s230 = sphi 0, %s214
      %s236 = sphi 0, %s238
      %s239 = sphi 0, %s236
      %s240 = sphi 0, %s239
      %s256 = sphi 0, %s240
      %s262 = sphi 0, %s264
      %s265 = sphi 0, %s262
      %s266 = sphi 0, %s265
      %s282 = sphi 0, %s266
      %s288 = sphi 0, %s290
      %s291 = sphi 0, %s288
      %s292 = sphi 0, %s291
      %s308 = sphi 0, %s292
      %s314 = sphi 0, %s316
      %s317 = sphi 0, %s314
      %s318 = sphi 0, %s317
      %s334 = sphi 0, %s318
      %s340 = sphi 0, %s342
      %s343 = sphi 0, %s340
      %s344 = sphi 0, %s343
      %s360 = sphi 0, %s344
      %s366 = sphi 0, %s368
      %s369 = sphi 0, %s366
      %s370 = sphi 0, %s369
      %s386 = sphi 0, %s370
      %s392 = sphi 0, %s394
      %s395 = sphi 0, %s392
      %s396 = sphi 0, %s395
      %s412 = sphi 0, %s396
      %s416 = sphi 0, %s416
      %s418 = sphi 0, %s416
      %s419 = sphi 0, %s418
      %s433 = sphi 0, %s419
      %s437 = sphi 0, %s437
      %s439 = sphi 0, %s437
      %s440 = sphi 0, %s439
      %s454 = sphi 0, %s440
      %s458 = sphi 0, %s458
      %s460 = sphi 0, %s458
      %s461 = sphi 0, %s460
      %s475 = sphi 0, %s461
      %s479 = sphi 0, %s479
      %s481 = sphi 0, %s479
      %s482 = sphi 0, %s481
      %s496 = sphi 0, %s482
      %s502 = sphi 0, %s504
      %s505 = sphi 0, %s502
      %s506 = sphi 0, %s505
      %s522 = sphi 0, %s506
    $region4: #{vit_forward.1} parent=1 // loop_header_branch
      %29 = sbr.rel (%p27) target = $region8
    $region5: #{vit_forward.1} parent=1 // loop_body
      %s31 = ssub.s32 %s26, 1
      %s32 = ssub.s32 %s26, 2
      %s39 = sadd.s32 1, %s34
      %p40 = scmp.ge.s32.totalorder %s39, 2
      %s41 = scalar_select %p40, 0, %s39
      %s42 = sadd.s32 1, %s33
      %s43 = scalar_select %p40, %s42, %s33
      %p44 = scmp.ge.s32.totalorder %s43, 1
      %s45 = scalar_select %p44, 0, %s43
      %s46 = ssub.s32 %s33, %s45
      %p47 = scmp.eq.s32.totalorder %s46, 0
      %s49 = sadd.s32 %s48, 1
      %s50 = scalar_select %p47, %s48, %s49
      %p53 = pneg %p47
      %p54 = scmp.eq.s32.totalorder %s26, 1
      %p55 = por %p53, %p54
      %p56 = scmp.ne.s32.totalorder %s48, %s51
      %p57 = scmp.eq.s32.totalorder %s26, 0
      %p58 = por %p56, %p57
      %p59 = scmp.ne.s32.totalorder %s48, %s51
      %p60 = scmp.eq.s32.totalorder %s31, 1
      %p61 = por %p59, %p60
      %p62 = scmp.ne.s32.totalorder %s51, %s52
      %p63 = scmp.eq.s32.totalorder %s31, 0
      %p64 = por %p62, %p63
      %p65 = scmp.ne.s32.totalorder %s51, %s52
      %p66 = scmp.eq.s32.totalorder %s32, 1
      %p67 = por %p65, %p66
      %p69 = scmp.ne.s32.totalorder %s52, %s68
      %p70 = scmp.eq.s32.totalorder %s32, 0
      %p71 = por %p69, %p70
      %s73 = sadd.s32 %s72, 1
      %p76 = scmp.eq.s32.totalorder %s26, 1
      %p77 = scmp.ne.s32.totalorder %s72, %s74
      %p78 = scmp.eq.s32.totalorder %s26, 0
      %p79 = por %p77, %p78
      %p80 = scmp.ne.s32.totalorder %s72, %s74
      %p81 = scmp.eq.s32.totalorder %s31, 1
      %p82 = por %p80, %p81
      %p83 = scmp.ne.s32.totalorder %s74, %s75
      %p84 = scmp.eq.s32.totalorder %s31, 0
      %p85 = por %p83, %p84
      %p86 = scmp.ne.s32.totalorder %s74, %s75
      %p87 = scmp.eq.s32.totalorder %s32, 1
      %p88 = por %p86, %p87
      %p90 = scmp.ne.s32.totalorder %s75, %s89
      %p91 = scmp.eq.s32.totalorder %s32, 0
      %p92 = por %p90, %p91
      %s94 = sadd.s32 %s93, 1
      %p97 = scmp.eq.s32.totalorder %s26, 1
      %p98 = scmp.ne.s32.totalorder %s93, %s95
      %p99 = scmp.eq.s32.totalorder %s26, 0
      %p100 = por %p98, %p99
      %p101 = scmp.ne.s32.totalorder %s93, %s95
      %p102 = scmp.eq.s32.totalorder %s31, 1
      %p103 = por %p101, %p102
      %p104 = scmp.ne.s32.totalorder %s95, %s96
      %p105 = scmp.eq.s32.totalorder %s31, 0
      %p106 = por %p104, %p105
      %p107 = scmp.ne.s32.totalorder %s95, %s96
      %p108 = scmp.eq.s32.totalorder %s32, 1
      %p109 = por %p107, %p108
      %p111 = scmp.ne.s32.totalorder %s96, %s110
      %p112 = scmp.eq.s32.totalorder %s32, 0
      %p113 = por %p111, %p112
      %s115 = sadd.s32 %s114, 1
      %p118 = scmp.eq.s32.totalorder %s26, 1
      %p119 = scmp.ne.s32.totalorder %s114, %s116
      %p120 = scmp.eq.s32.totalorder %s26, 0
      %p121 = por %p119, %p120
      %p122 = scmp.ne.s32.totalorder %s114, %s116
      %p123 = scmp.eq.s32.totalorder %s31, 1
      %p124 = por %p122, %p123
      %p125 = scmp.ne.s32.totalorder %s116, %s117
      %p126 = scmp.eq.s32.totalorder %s31, 0
      %p127 = por %p125, %p126
      %p128 = scmp.ne.s32.totalorder %s116, %s117
      %p129 = scmp.eq.s32.totalorder %s32, 1
      %p130 = por %p128, %p129
      %p132 = scmp.ne.s32.totalorder %s117, %s131
      %p133 = scmp.eq.s32.totalorder %s32, 0
      %p134 = por %p132, %p133
      %s136 = sadd.s32 %s135, 1
      %p139 = scmp.eq.s32.totalorder %s26, 1
      %p140 = scmp.ne.s32.totalorder %s135, %s137
      %p141 = scmp.eq.s32.totalorder %s26, 0
      %p142 = por %p140, %p141
      %p143 = scmp.ne.s32.totalorder %s135, %s137
      %p144 = scmp.eq.s32.totalorder %s31, 1
      %p145 = por %p143, %p144
      %p146 = scmp.ne.s32.totalorder %s137, %s138
      %p147 = scmp.eq.s32.totalorder %s31, 0
      %p148 = por %p146, %p147
      %p149 = scmp.ne.s32.totalorder %s137, %s138
      %p150 = scmp.eq.s32.totalorder %s32, 1
      %p151 = por %p149, %p150
      %p153 = scmp.ne.s32.totalorder %s138, %s152
      %p154 = scmp.eq.s32.totalorder %s32, 0
      %p155 = por %p153, %p154
      %s156 = ssub.s32 %s34, %s41
      %p157 = scmp.eq.s32.totalorder %s156, 0
      %s159 = sadd.s32 %s158, 1
      %s160 = scalar_select %p157, %s158, %s159
      %p163 = pneg %p157
      %p164 = scmp.eq.s32.totalorder %s26, 1
      %p165 = por %p163, %p164
      %p166 = scmp.ne.s32.totalorder %s158, %s161
      %p167 = scmp.eq.s32.totalorder %s26, 0
      %p168 = por %p166, %p167
      %p169 = scmp.ne.s32.totalorder %s158, %s161
      %p170 = scmp.eq.s32.totalorder %s31, 1
      %p171 = por %p169, %p170
      %p172 = scmp.ne.s32.totalorder %s161, %s162
      %p173 = scmp.eq.s32.totalorder %s31, 0
      %p174 = por %p172, %p173
      %p175 = scmp.ne.s32.totalorder %s161, %s162
      %p176 = scmp.eq.s32.totalorder %s32, 1
      %p177 = por %p175, %p176
      %p179 = scmp.ne.s32.totalorder %s162, %s178
      %p180 = scmp.eq.s32.totalorder %s32, 0
      %p181 = por %p179, %p180
      %s182 = ssub.s32 %s34, %s41
      %p183 = scmp.eq.s32.totalorder %s182, 0
      %s185 = sadd.s32 %s184, 1
      %s186 = scalar_select %p183, %s184, %s185
      %p189 = pneg %p183
      %p190 = scmp.eq.s32.totalorder %s26, 1
      %p191 = por %p189, %p190
      %p192 = scmp.ne.s32.totalorder %s184, %s187
      %p193 = scmp.eq.s32.totalorder %s26, 0
      %p194 = por %p192, %p193
      %p195 = scmp.ne.s32.totalorder %s184, %s187
      %p196 = scmp.eq.s32.totalorder %s31, 1
      %p197 = por %p195, %p196
      %p198 = scmp.ne.s32.totalorder %s187, %s188
      %p199 = scmp.eq.s32.totalorder %s31, 0
      %p200 = por %p198, %p199
      %p201 = scmp.ne.s32.totalorder %s187, %s188
      %p202 = scmp.eq.s32.totalorder %s32, 1
      %p203 = por %p201, %p202
      %p205 = scmp.ne.s32.totalorder %s188, %s204
      %p206 = scmp.eq.s32.totalorder %s32, 0
      %p207 = por %p205, %p206
      %s208 = ssub.s32 %s34, %s41
      %p209 = scmp.eq.s32.totalorder %s208, 0
      %s211 = sadd.s32 %s210, 1
      %s212 = scalar_select %p209, %s210, %s211
      %p215 = pneg %p209
      %p216 = scmp.eq.s32.totalorder %s26, 1
      %p217 = por %p215, %p216
      %p218 = scmp.ne.s32.totalorder %s210, %s213
      %p219 = scmp.eq.s32.totalorder %s26, 0
      %p220 = por %p218, %p219
      %p221 = scmp.ne.s32.totalorder %s210, %s213
      %p222 = scmp.eq.s32.totalorder %s31, 1
      %p223 = por %p221, %p222
      %p224 = scmp.ne.s32.totalorder %s213, %s214
      %p225 = scmp.eq.s32.totalorder %s31, 0
      %p226 = por %p224, %p225
      %p227 = scmp.ne.s32.totalorder %s213, %s214
      %p228 = scmp.eq.s32.totalorder %s32, 1
      %p229 = por %p227, %p228
      %p231 = scmp.ne.s32.totalorder %s214, %s230
      %p232 = scmp.eq.s32.totalorder %s32, 0
      %p233 = por %p231, %p232
      %s234 = ssub.s32 %s34, %s41
      %p235 = scmp.eq.s32.totalorder %s234, 0
      %s237 = sadd.s32 %s236, 1
      %s238 = scalar_select %p235, %s236, %s237
      %p241 = pneg %p235
      %p242 = scmp.eq.s32.totalorder %s26, 1
      %p243 = por %p241, %p242
      %p244 = scmp.ne.s32.totalorder %s236, %s239
      %p245 = scmp.eq.s32.totalorder %s26, 0
      %p246 = por %p244, %p245
      %p247 = scmp.ne.s32.totalorder %s236, %s239
      %p248 = scmp.eq.s32.totalorder %s31, 1
      %p249 = por %p247, %p248
      %p250 = scmp.ne.s32.totalorder %s239, %s240
      %p251 = scmp.eq.s32.totalorder %s31, 0
      %p252 = por %p250, %p251
      %p253 = scmp.ne.s32.totalorder %s239, %s240
      %p254 = scmp.eq.s32.totalorder %s32, 1
      %p255 = por %p253, %p254
      %p257 = scmp.ne.s32.totalorder %s240, %s256
      %p258 = scmp.eq.s32.totalorder %s32, 0
      %p259 = por %p257, %p258
      %s260 = ssub.s32 %s34, %s41
      %p261 = scmp.eq.s32.totalorder %s260, 0
      %s263 = sadd.s32 %s262, 1
      %s264 = scalar_select %p261, %s262, %s263
      %p267 = pneg %p261
      %p268 = scmp.eq.s32.totalorder %s26, 1
      %p269 = por %p267, %p268
      %p270 = scmp.ne.s32.totalorder %s262, %s265
      %p271 = scmp.eq.s32.totalorder %s26, 0
      %p272 = por %p270, %p271
      %p273 = scmp.ne.s32.totalorder %s262, %s265
      %p274 = scmp.eq.s32.totalorder %s31, 1
      %p275 = por %p273, %p274
      %p276 = scmp.ne.s32.totalorder %s265, %s266
      %p277 = scmp.eq.s32.totalorder %s31, 0
      %p278 = por %p276, %p277
      %p279 = scmp.ne.s32.totalorder %s265, %s266
      %p280 = scmp.eq.s32.totalorder %s32, 1
      %p281 = por %p279, %p280
      %p283 = scmp.ne.s32.totalorder %s266, %s282
      %p284 = scmp.eq.s32.totalorder %s32, 0
      %p285 = por %p283, %p284
      %s286 = ssub.s32 %s34, %s41
      %p287 = scmp.eq.s32.totalorder %s286, 0
      %s289 = sadd.s32 %s288, 1
      %s290 = scalar_select %p287, %s288, %s289
      %p293 = pneg %p287
      %p294 = scmp.eq.s32.totalorder %s26, 1
      %p295 = por %p293, %p294
      %p296 = scmp.ne.s32.totalorder %s288, %s291
      %p297 = scmp.eq.s32.totalorder %s26, 0
      %p298 = por %p296, %p297
      %p299 = scmp.ne.s32.totalorder %s288, %s291
      %p300 = scmp.eq.s32.totalorder %s31, 1
      %p301 = por %p299, %p300
      %p302 = scmp.ne.s32.totalorder %s291, %s292
      %p303 = scmp.eq.s32.totalorder %s31, 0
      %p304 = por %p302, %p303
      %p305 = scmp.ne.s32.totalorder %s291, %s292
      %p306 = scmp.eq.s32.totalorder %s32, 1
      %p307 = por %p305, %p306
      %p309 = scmp.ne.s32.totalorder %s292, %s308
      %p310 = scmp.eq.s32.totalorder %s32, 0
      %p311 = por %p309, %p310
      %s312 = ssub.s32 %s34, %s41
      %p313 = scmp.eq.s32.totalorder %s312, 0
      %s315 = sadd.s32 %s314, 1
      %s316 = scalar_select %p313, %s314, %s315
      %p319 = pneg %p313
      %p320 = scmp.eq.s32.totalorder %s26, 1
      %p321 = por %p319, %p320
      %p322 = scmp.ne.s32.totalorder %s314, %s317
      %p323 = scmp.eq.s32.totalorder %s26, 0
      %p324 = por %p322, %p323
      %p325 = scmp.ne.s32.totalorder %s314, %s317
      %p326 = scmp.eq.s32.totalorder %s31, 1
      %p327 = por %p325, %p326
      %p328 = scmp.ne.s32.totalorder %s317, %s318
      %p329 = scmp.eq.s32.totalorder %s31, 0
      %p330 = por %p328, %p329
      %p331 = scmp.ne.s32.totalorder %s317, %s318
      %p332 = scmp.eq.s32.totalorder %s32, 1
      %p333 = por %p331, %p332
      %p335 = scmp.ne.s32.totalorder %s318, %s334
      %p336 = scmp.eq.s32.totalorder %s32, 0
      %p337 = por %p335, %p336
      %s338 = ssub.s32 %s34, %s41
      %p339 = scmp.eq.s32.totalorder %s338, 0
      %s341 = sadd.s32 %s340, 1
      %s342 = scalar_select %p339, %s340, %s341
      %p345 = pneg %p339
      %p346 = scmp.eq.s32.totalorder %s26, 1
      %p347 = por %p345, %p346
      %p348 = scmp.ne.s32.totalorder %s340, %s343
      %p349 = scmp.eq.s32.totalorder %s26, 0
      %p350 = por %p348, %p349
      %p351 = scmp.ne.s32.totalorder %s340, %s343
      %p352 = scmp.eq.s32.totalorder %s31, 1
      %p353 = por %p351, %p352
      %p354 = scmp.ne.s32.totalorder %s343, %s344
      %p355 = scmp.eq.s32.totalorder %s31, 0
      %p356 = por %p354, %p355
      %p357 = scmp.ne.s32.totalorder %s343, %s344
      %p358 = scmp.eq.s32.totalorder %s32, 1
      %p359 = por %p357, %p358
      %p361 = scmp.ne.s32.totalorder %s344, %s360
      %p362 = scmp.eq.s32.totalorder %s32, 0
      %p363 = por %p361, %p362
      %s364 = ssub.s32 %s34, %s41
      %p365 = scmp.eq.s32.totalorder %s364, 0
      %s367 = sadd.s32 %s366, 1
      %s368 = scalar_select %p365, %s366, %s367
      %p371 = pneg %p365
      %p372 = scmp.eq.s32.totalorder %s26, 1
      %p373 = por %p371, %p372
      %p374 = scmp.ne.s32.totalorder %s366, %s369
      %p375 = scmp.eq.s32.totalorder %s26, 0
      %p376 = por %p374, %p375
      %p377 = scmp.ne.s32.totalorder %s366, %s369
      %p378 = scmp.eq.s32.totalorder %s31, 1
      %p379 = por %p377, %p378
      %p380 = scmp.ne.s32.totalorder %s369, %s370
      %p381 = scmp.eq.s32.totalorder %s31, 0
      %p382 = por %p380, %p381
      %p383 = scmp.ne.s32.totalorder %s369, %s370
      %p384 = scmp.eq.s32.totalorder %s32, 1
      %p385 = por %p383, %p384
      %p387 = scmp.ne.s32.totalorder %s370, %s386
      %p388 = scmp.eq.s32.totalorder %s32, 0
      %p389 = por %p387, %p388
      %s390 = ssub.s32 %s34, %s41
      %p391 = scmp.eq.s32.totalorder %s390, 0
      %s393 = sadd.s32 %s392, 1
      %s394 = scalar_select %p391, %s392, %s393
      %p397 = pneg %p391
      %p398 = scmp.eq.s32.totalorder %s26, 1
      %p399 = por %p397, %p398
      %p400 = scmp.ne.s32.totalorder %s392, %s395
      %p401 = scmp.eq.s32.totalorder %s26, 0
      %p402 = por %p400, %p401
      %p403 = scmp.ne.s32.totalorder %s392, %s395
      %p404 = scmp.eq.s32.totalorder %s31, 1
      %p405 = por %p403, %p404
      %p406 = scmp.ne.s32.totalorder %s395, %s396
      %p407 = scmp.eq.s32.totalorder %s31, 0
      %p408 = por %p406, %p407
      %p409 = scmp.ne.s32.totalorder %s395, %s396
      %p410 = scmp.eq.s32.totalorder %s32, 1
      %p411 = por %p409, %p410
      %p413 = scmp.ne.s32.totalorder %s396, %s412
      %p414 = scmp.eq.s32.totalorder %s32, 0
      %p415 = por %p413, %p414
      %s417 = sadd.s32 %s416, 1
      %p420 = scmp.eq.s32.totalorder %s26, 1
      %p421 = scmp.ne.s32.totalorder %s416, %s418
      %p422 = scmp.eq.s32.totalorder %s26, 0
      %p423 = por %p421, %p422
      %p424 = scmp.ne.s32.totalorder %s416, %s418
      %p425 = scmp.eq.s32.totalorder %s31, 1
      %p426 = por %p424, %p425
      %p427 = scmp.ne.s32.totalorder %s418, %s419
      %p428 = scmp.eq.s32.totalorder %s31, 0
      %p429 = por %p427, %p428
      %p430 = scmp.ne.s32.totalorder %s418, %s419
      %p431 = scmp.eq.s32.totalorder %s32, 1
      %p432 = por %p430, %p431
      %p434 = scmp.ne.s32.totalorder %s419, %s433
      %p435 = scmp.eq.s32.totalorder %s32, 0
      %p436 = por %p434, %p435
      %s438 = sadd.s32 %s437, 1
      %p441 = scmp.eq.s32.totalorder %s26, 1
      %p442 = scmp.ne.s32.totalorder %s437, %s439
      %p443 = scmp.eq.s32.totalorder %s26, 0
      %p444 = por %p442, %p443
      %p445 = scmp.ne.s32.totalorder %s437, %s439
      %p446 = scmp.eq.s32.totalorder %s31, 1
      %p447 = por %p445, %p446
      %p448 = scmp.ne.s32.totalorder %s439, %s440
      %p449 = scmp.eq.s32.totalorder %s31, 0
      %p450 = por %p448, %p449
      %p451 = scmp.ne.s32.totalorder %s439, %s440
      %p452 = scmp.eq.s32.totalorder %s32, 1
      %p453 = por %p451, %p452
      %p455 = scmp.ne.s32.totalorder %s440, %s454
      %p456 = scmp.eq.s32.totalorder %s32, 0
      %p457 = por %p455, %p456
      %s459 = sadd.s32 %s458, 1
      %p462 = scmp.eq.s32.totalorder %s26, 1
      %p463 = scmp.ne.s32.totalorder %s458, %s460
      %p464 = scmp.eq.s32.totalorder %s26, 0
      %p465 = por %p463, %p464
      %p466 = scmp.ne.s32.totalorder %s458, %s460
      %p467 = scmp.eq.s32.totalorder %s31, 1
      %p468 = por %p466, %p467
      %p469 = scmp.ne.s32.totalorder %s460, %s461
      %p470 = scmp.eq.s32.totalorder %s31, 0
      %p471 = por %p469, %p470
      %p472 = scmp.ne.s32.totalorder %s460, %s461
      %p473 = scmp.eq.s32.totalorder %s32, 1
      %p474 = por %p472, %p473
      %p476 = scmp.ne.s32.totalorder %s461, %s475
      %p477 = scmp.eq.s32.totalorder %s32, 0
      %p478 = por %p476, %p477
      %s480 = sadd.s32 %s479, 1
      %p483 = scmp.eq.s32.totalorder %s26, 1
      %p484 = scmp.ne.s32.totalorder %s479, %s481
      %p485 = scmp.eq.s32.totalorder %s26, 0
      %p486 = por %p484, %p485
      %p487 = scmp.ne.s32.totalorder %s479, %s481
      %p488 = scmp.eq.s32.totalorder %s31, 1
      %p489 = por %p487, %p488
      %p490 = scmp.ne.s32.totalorder %s481, %s482
      %p491 = scmp.eq.s32.totalorder %s31, 0
      %p492 = por %p490, %p491
      %p493 = scmp.ne.s32.totalorder %s481, %s482
      %p494 = scmp.eq.s32.totalorder %s32, 1
      %p495 = por %p493, %p494
      %p497 = scmp.ne.s32.totalorder %s482, %s496
      %p498 = scmp.eq.s32.totalorder %s32, 0
      %p499 = por %p497, %p498
      %s500 = ssub.s32 %s33, %s45
      %p501 = scmp.eq.s32.totalorder %s500, 0
      %s503 = sadd.s32 %s502, 1
      %s504 = scalar_select %p501, %s502, %s503
      %p507 = pneg %p501
      %p508 = scmp.eq.s32.totalorder %s26, 1
      %p509 = por %p507, %p508
      %p510 = scmp.ne.s32.totalorder %s502, %s505
      %p511 = scmp.eq.s32.totalorder %s26, 0
      %p512 = por %p510, %p511
      %p513 = scmp.ne.s32.totalorder %s502, %s505
      %p514 = scmp.eq.s32.totalorder %s31, 1
      %p515 = por %p513, %p514
      %p516 = scmp.ne.s32.totalorder %s505, %s506
      %p517 = scmp.eq.s32.totalorder %s31, 0
      %p518 = por %p516, %p517
      %p519 = scmp.ne.s32.totalorder %s505, %s506
      %p520 = scmp.eq.s32.totalorder %s32, 1
      %p521 = por %p519, %p520
      %p523 = scmp.ne.s32.totalorder %s506, %s522
      %p524 = scmp.eq.s32.totalorder %s32, 0
      %p525 = por %p523, %p524
      %p526 = scmp.le.s32.totalorder 1, %s26
      %p527 = scmp.lt.s32.totalorder %s26, 3
      %p528 = pnand %p526, %p527
      %p529 = pneg %p528
      // Predicated region
      $region9: #{vit_forward.1} parent=5 // pred_check
        _
      $region10: #{vit_forward.1} parent=5 // pred_check_branch
        %531 = sbr.rel (%p528) target = $region12
      $region11: #{vit_forward.1} parent=5 // pred_region
        %s532 = ssub.s32 %s26, 1
        // Predicated region
        $region13: #{vit_forward.1} parent=11 // pred_check
          %p533 = pneg %p64
        $region14: #{vit_forward.1} parent=11 // pred_check_branch
          %535 = sbr.rel (%p533) target = $region16
        $region15: #{vit_forward.1} parent=11 // pred_region
          %s536 = smul.u32 2, %s35
          %p537 = scmp.lt.s32.totalorder %s536, 1
          %s538 = scalar_select %p537, %s536, 1
          %s539 = smul.addr %s538, 2
          %s540 = smul.addr %s539, 4
          %s541 = scalar_lea.vmem %s0, %s540
          %s542 = smul.u32 2, %s35
        $region16: #{vit_forward.1} parent=11 // pred_fallthru
          _
        // Predicated region
        $region17: #{vit_forward.1} parent=11 // pred_check
          %p543 = pneg %p85
        $region18: #{vit_forward.1} parent=11 // pred_check_branch
          %545 = sbr.rel (%p543) target = $region20
        $region19: #{vit_forward.1} parent=11 // pred_region
          _
        $region20: #{vit_forward.1} parent=11 // pred_fallthru
          _
        // Predicated region
        $region21: #{vit_forward.1} parent=11 // pred_check
          %p546 = pneg %p106
        $region22: #{vit_forward.1} parent=11 // pred_check_branch
          %548 = sbr.rel (%p546) target = $region24
        $region23: #{vit_forward.1} parent=11 // pred_region
          _
        $region24: #{vit_forward.1} parent=11 // pred_fallthru
          _
        // Predicated region
        $region25: #{vit_forward.1} parent=11 // pred_check
          %p549 = pneg %p127
        $region26: #{vit_forward.1} parent=11 // pred_check_branch
          %551 = sbr.rel (%p549) target = $region28
        $region27: #{vit_forward.1} parent=11 // pred_region
          _
        $region28: #{vit_forward.1} parent=11 // pred_fallthru
          _
        // Predicated region
        $region29: #{vit_forward.1} parent=11 // pred_check
          %p552 = pneg %p148
        $region30: #{vit_forward.1} parent=11 // pred_check_branch
          %554 = sbr.rel (%p552) target = $region32
        $region31: #{vit_forward.1} parent=11 // pred_region
          _
        $region32: #{vit_forward.1} parent=11 // pred_fallthru
          _
        // Predicated region
        $region33: #{vit_forward.1} parent=11 // pred_check
          %p555 = pneg %p429
        $region34: #{vit_forward.1} parent=11 // pred_check_branch
          %557 = sbr.rel (%p555) target = $region36
        $region35: #{vit_forward.1} parent=11 // pred_region
          _
        $region36: #{vit_forward.1} parent=11 // pred_fallthru
          _
        // Predicated region
        $region37: #{vit_forward.1} parent=11 // pred_check
          %p558 = pneg %p450
        $region38: #{vit_forward.1} parent=11 // pred_check_branch
          %560 = sbr.rel (%p558) target = $region40
        $region39: #{vit_forward.1} parent=11 // pred_region
          _
        $region40: #{vit_forward.1} parent=11 // pred_fallthru
          _
        // Predicated region
        $region41: #{vit_forward.1} parent=11 // pred_check
          %p561 = pneg %p471
        $region42: #{vit_forward.1} parent=11 // pred_check_branch
          %563 = sbr.rel (%p561) target = $region44
        $region43: #{vit_forward.1} parent=11 // pred_region
          _
        $region44: #{vit_forward.1} parent=11 // pred_fallthru
          _
        // Predicated region
        $region45: #{vit_forward.1} parent=11 // pred_check
          %p564 = pneg %p492
        $region46: #{vit_forward.1} parent=11 // pred_check_branch
          %566 = sbr.rel (%p564) target = $region48
        $region47: #{vit_forward.1} parent=11 // pred_region
          _
        $region48: #{vit_forward.1} parent=11 // pred_fallthru
          _
      $region12: #{vit_forward.1} parent=5 // pred_fallthru
        _
      %p567 = scmp.lt.s32.totalorder %s26, 2
      // Predicated region
      $region49: #{vit_forward.1} parent=5 // pred_check
        %p568 = pneg %p567
      $region50: #{vit_forward.1} parent=5 // pred_check_branch
        %570 = sbr.rel (%p568) target = $region52
      $region51: #{vit_forward.1} parent=5 // pred_region
        // Predicated region
        $region53: #{vit_forward.1} parent=51 // pred_check
          %p571 = pneg %p168
        $region54: #{vit_forward.1} parent=51 // pred_check_branch
          %573 = sbr.rel (%p571) target = $region56
        $region55: #{vit_forward.1} parent=51 // pred_region
          %p574 = scmp.lt.s32.totalorder %s34, 1
          %s575 = scalar_select %p574, %s34, 1
          %s576 = scalar_lea.vmem %s5, %s575
        $region56: #{vit_forward.1} parent=51 // pred_fallthru
          _
        // Predicated region
        $region57: #{vit_forward.1} parent=51 // pred_check
          %p577 = pneg %p194
        $region58: #{vit_forward.1} parent=51 // pred_check_branch
          %579 = sbr.rel (%p577) target = $region60
        $region59: #{vit_forward.1} parent=51 // pred_region
          %p580 = scmp.lt.s32.totalorder %s34, 1
          %s581 = scalar_select %p580, %s34, 1
          %s582 = scalar_lea.vmem %s6, %s581
        $region60: #{vit_forward.1} parent=51 // pred_fallthru
          _
        // Predicated region
        $region61: #{vit_forward.1} parent=51 // pred_check
          %p583 = pneg %p220
        $region62: #{vit_forward.1} parent=51 // pred_check_branch
          %585 = sbr.rel (%p583) target = $region64
        $region63: #{vit_forward.1} parent=51 // pred_region
          %p586 = scmp.lt.s32.totalorder %s34, 1
          %s587 = scalar_select %p586, %s34, 1
          %s588 = smul.addr %s587, 4
          %s589 = smul.addr %s588, 4
          %s590 = scalar_lea.vmem %s7, %s589
        $region64: #{vit_forward.1} parent=51 // pred_fallthru
          _
        // Predicated region
        $region65: #{vit_forward.1} parent=51 // pred_check
          %p591 = pneg %p246
        $region66: #{vit_forward.1} parent=51 // pred_check_branch
          %593 = sbr.rel (%p591) target = $region68
        $region67: #{vit_forward.1} parent=51 // pred_region
          %p594 = scmp.lt.s32.totalorder %s34, 1
          %s595 = scalar_select %p594, %s34, 1
          %s596 = scalar_lea.vmem %s8, %s595
        $region68: #{vit_forward.1} parent=51 // pred_fallthru
          _
        // Predicated region
        $region69: #{vit_forward.1} parent=51 // pred_check
          %p597 = pneg %p272
        $region70: #{vit_forward.1} parent=51 // pred_check_branch
          %599 = sbr.rel (%p597) target = $region72
        $region71: #{vit_forward.1} parent=51 // pred_region
          %p600 = scmp.lt.s32.totalorder %s34, 1
          %s601 = scalar_select %p600, %s34, 1
          %s602 = scalar_lea.vmem %s9, %s601
        $region72: #{vit_forward.1} parent=51 // pred_fallthru
          _
        // Predicated region
        $region73: #{vit_forward.1} parent=51 // pred_check
          %p603 = pneg %p298
        $region74: #{vit_forward.1} parent=51 // pred_check_branch
          %605 = sbr.rel (%p603) target = $region76
        $region75: #{vit_forward.1} parent=51 // pred_region
          %p606 = scmp.lt.s32.totalorder %s34, 1
          %s607 = scalar_select %p606, %s34, 1
          %s608 = scalar_lea.vmem %s10, %s607
        $region76: #{vit_forward.1} parent=51 // pred_fallthru
          _
        // Predicated region
        $region77: #{vit_forward.1} parent=51 // pred_check
          %p609 = pneg %p324
        $region78: #{vit_forward.1} parent=51 // pred_check_branch
          %611 = sbr.rel (%p609) target = $region80
        $region79: #{vit_forward.1} parent=51 // pred_region
          %p612 = scmp.lt.s32.totalorder %s34, 1
          %s613 = scalar_select %p612, %s34, 1
          %s614 = smul.addr %s613, 4
          %s615 = smul.addr %s614, 4
          %s616 = scalar_lea.vmem %s11, %s615
        $region80: #{vit_forward.1} parent=51 // pred_fallthru
          _
        // Predicated region
        $region81: #{vit_forward.1} parent=51 // pred_check
          %p617 = pneg %p350
        $region82: #{vit_forward.1} parent=51 // pred_check_branch
          %619 = sbr.rel (%p617) target = $region84
        $region83: #{vit_forward.1} parent=51 // pred_region
          %p620 = scmp.lt.s32.totalorder %s34, 1
          %s621 = scalar_select %p620, %s34, 1
          %s622 = scalar_lea.vmem %s12, %s621
        $region84: #{vit_forward.1} parent=51 // pred_fallthru
          _
        // Predicated region
        $region85: #{vit_forward.1} parent=51 // pred_check
          %p623 = pneg %p376
        $region86: #{vit_forward.1} parent=51 // pred_check_branch
          %625 = sbr.rel (%p623) target = $region88
        $region87: #{vit_forward.1} parent=51 // pred_region
          %p626 = scmp.lt.s32.totalorder %s34, 1
          %s627 = scalar_select %p626, %s34, 1
          %s628 = smul.addr %s627, 8
          %s629 = smul.addr %s628, 4
          %s630 = scalar_lea.vmem %s13, %s629
        $region88: #{vit_forward.1} parent=51 // pred_fallthru
          _
        // Predicated region
        $region89: #{vit_forward.1} parent=51 // pred_check
          %p631 = pneg %p402
        $region90: #{vit_forward.1} parent=51 // pred_check_branch
          %633 = sbr.rel (%p631) target = $region92
        $region91: #{vit_forward.1} parent=51 // pred_region
          %p634 = scmp.lt.s32.totalorder %s34, 1
          %s635 = scalar_select %p634, %s34, 1
          %s636 = scalar_lea.vmem %s14, %s635
        $region92: #{vit_forward.1} parent=51 // pred_fallthru
          _
      $region52: #{vit_forward.1} parent=5 // pred_fallthru
        _
      %p637 = scmp.le.s32.totalorder 1, %s26
      %p638 = scmp.lt.s32.totalorder %s26, 3
      %p639 = pnand %p637, %p638
      %p640 = pneg %p639
      // Predicated region
      $region93: #{vit_forward.1} parent=5 // pred_check
        _
      $region94: #{vit_forward.1} parent=5 // pred_check_branch
        %642 = sbr.rel (%p639) target = $region96
      $region95: #{vit_forward.1} parent=5 // pred_region
        %s643 = ssub.s32 %s26, 1
        %s644 = smul.u32 2, %s35
        %p645 = scmp.lt.s32.totalorder %s644, 1
        %s646 = scalar_select %p645, %s644, 1
        %s647 = smul.addr %s646, 2
        %s648 = smul.addr %s647, 4
        %s649 = scalar_lea.vmem %s0, %s648
        %p650 = pneg %p64
        %p651 = pneg %p61
        %p652 = pneg %p85
        %p653 = pneg %p82
        %p654 = pneg %p106
        %p655 = pneg %p103
        %p656 = pneg %p127
        %p657 = pneg %p124
        %p658 = pneg %p148
        %p659 = pneg %p145
        %p660 = scmp.lt.s32.totalorder %s36, 1
        %s661 = scalar_select %p660, %s36, 1
        %s662 = scalar_lea.vmem %s5, %s661
        %p663 = pneg %p174
        %p664 = pneg %p171
        %p665 = scmp.lt.s32.totalorder %s36, 1
        %s666 = scalar_select %p665, %s36, 1
        %s667 = scalar_lea.vmem %s6, %s666
        %p668 = pneg %p200
        %p669 = pneg %p197
        %p670 = scmp.lt.s32.totalorder %s36, 1
        %s671 = scalar_select %p670, %s36, 1
        %s672 = smul.addr %s671, 4
        %s673 = smul.addr %s672, 4
        %s674 = scalar_lea.vmem %s7, %s673
        %p675 = pneg %p226
        %p676 = pneg %p223
        %p677 = scmp.lt.s32.totalorder %s36, 1
        %s678 = scalar_select %p677, %s36, 1
        %s679 = scalar_lea.vmem %s8, %s678
        %p680 = pneg %p252
        %p681 = pneg %p249
        %p682 = scmp.lt.s32.totalorder %s36, 1
        %s683 = scalar_select %p682, %s36, 1
        %s684 = scalar_lea.vmem %s9, %s683
        %p685 = pneg %p278
        %p686 = pneg %p275
        %p687 = scmp.lt.s32.totalorder %s36, 1
        %s688 = scalar_select %p687, %s36, 1
        %s689 = scalar_lea.vmem %s10, %s688
        %p690 = pneg %p304
        %p691 = pneg %p301
        %p692 = scmp.lt.s32.totalorder %s36, 1
        %s693 = scalar_select %p692, %s36, 1
        %s694 = smul.addr %s693, 4
        %s695 = smul.addr %s694, 4
        %s696 = scalar_lea.vmem %s11, %s695
        %p697 = pneg %p330
        %p698 = pneg %p327
        %p699 = scmp.lt.s32.totalorder %s36, 1
        %s700 = scalar_select %p699, %s36, 1
        %s701 = scalar_lea.vmem %s12, %s700
        %p702 = pneg %p356
        %p703 = pneg %p353
        %p704 = scmp.lt.s32.totalorder %s36, 1
        %s705 = scalar_select %p704, %s36, 1
        %s706 = smul.addr %s705, 8
        %s707 = smul.addr %s706, 4
        %s708 = scalar_lea.vmem %s13, %s707
        %p709 = pneg %p382
        %p710 = pneg %p379
        %p711 = scmp.lt.s32.totalorder %s36, 1
        %s712 = scalar_select %p711, %s36, 1
        %s713 = scalar_lea.vmem %s14, %s712
        %p714 = pneg %p408
        %p715 = pneg %p405
        %p716 = pneg %p429
        %p717 = pneg %p426
        %p718 = pneg %p450
        %p719 = pneg %p447
        %p720 = pneg %p471
        %p721 = pneg %p468
        %p722 = pneg %p492
        %p723 = pneg %p489
        %p724 = pneg %p518
        %p725 = pneg %p515
        %s726 = smul.u32 2, %s35
        %p727 = scmp.lt.s32.totalorder %s726, 1
        %s728 = scalar_select %p727, %s726, 1
        %s729 = smul.addr %s728, 2
        %s730 = smul.addr %s729, 4
        %s731 = scalar_lea.vmem %s0, %s730
        %s732 = smul.u32 2, %s35
        %p733 = scmp.lt.s32.totalorder %s36, 1
        %s734 = scalar_select %p733, %s36, 1
        %s735 = scalar_lea.vmem %s5, %s734
        %p736 = scmp.lt.s32.totalorder %s36, 1
        %s737 = scalar_select %p736, %s36, 1
        %s738 = scalar_lea.vmem %s6, %s737
        %p739 = scmp.lt.s32.totalorder %s36, 1
        %s740 = scalar_select %p739, %s36, 1
        %s741 = smul.addr %s740, 4
        %s742 = smul.addr %s741, 4
        %s743 = scalar_lea.vmem %s7, %s742
        %p744 = scmp.lt.s32.totalorder %s36, 1
        %s745 = scalar_select %p744, %s36, 1
        %s746 = scalar_lea.vmem %s8, %s745
        %p747 = scmp.lt.s32.totalorder %s36, 1
        %s748 = scalar_select %p747, %s36, 1
        %s749 = scalar_lea.vmem %s9, %s748
        %p750 = scmp.lt.s32.totalorder %s36, 1
        %s751 = scalar_select %p750, %s36, 1
        %s752 = scalar_lea.vmem %s10, %s751
        %p753 = scmp.lt.s32.totalorder %s36, 1
        %s754 = scalar_select %p753, %s36, 1
        %s755 = smul.addr %s754, 4
        %s756 = smul.addr %s755, 4
        %s757 = scalar_lea.vmem %s11, %s756
        %p758 = scmp.lt.s32.totalorder %s36, 1
        %s759 = scalar_select %p758, %s36, 1
        %s760 = scalar_lea.vmem %s12, %s759
        %p761 = scmp.lt.s32.totalorder %s36, 1
        %s762 = scalar_select %p761, %s36, 1
        %s763 = smul.addr %s762, 8
        %s764 = smul.addr %s763, 4
        %s765 = scalar_lea.vmem %s13, %s764
        %p766 = scmp.lt.s32.totalorder %s36, 1
        %s767 = scalar_select %p766, %s36, 1
        %s768 = scalar_lea.vmem %s14, %s767
        %s769 = smul.u32 2, %s35
        %p771 = scmp.eq.s32.totalorder %s36, 0
        // Predicated region
        $region97: #{vit_forward.1} parent=95 // pred_check
          %p772 = pneg %p771
        $region98: #{vit_forward.1} parent=95 // pred_check_branch
          %774 = sbr.rel (%p772) target = $region100
        $region99: #{vit_forward.1} parent=95 // pred_region
          %vm775 = vcmask 261120
          %776 = vst.msk [vmem:[#allocation2] sm:$0xff] %vm775, 0.0
          %777 = vst.msk [vmem:[#allocation2 + $0x8] sm:$0xff] %vm775, 0.0
          %778 = vst.msk [vmem:[#allocation2 + $0x10] sm:$0xff] %vm775, 0.0
          %779 = vst.msk [vmem:[#allocation2 + $0x18] sm:$0xff] %vm775, 0.0
          %780 = vst.msk [vmem:[#allocation2 + $0x20] sm:$0xff] %vm775, 0.0
          %781 = vst.msk [vmem:[#allocation2 + $0x28] sm:$0xff] %vm775, 0.0
          %782 = vst.msk [vmem:[#allocation3] sm:$0xff] %vm775, 0.0
          %783 = vst.msk [vmem:[#allocation3 + $0x8] sm:$0xff] %vm775, 0.0
          %784 = vst.msk [vmem:[#allocation3 + $0x10] sm:$0xff] %vm775, 0.0
          %785 = vst.msk [vmem:[#allocation3 + $0x18] sm:$0xff] %vm775, 0.0
          %786 = vst.msk [vmem:[#allocation3 + $0x20] sm:$0xff] %vm775, 0.0
          %787 = vst.msk [vmem:[#allocation3 + $0x28] sm:$0xff] %vm775, 0.0
          %v788 = vld [vmem:[%s4] sm:$0xff]
          %v789 = vld [vmem:[%s4 + $0x8] sm:$0xff]
          %v790 = vld [vmem:[%s4 + $0x10] sm:$0x1]
          %v791 = vld [vmem:[%s3] sm:$0x1]
          %v792 = vadd.f32 %v791, %v788
          %v793 = vld [vmem:[%s731] sm:$0xf]
          %v794 = vld [vmem:[%s731 + $0x4] sm:$0xf]
          %v795 = vld [vmem:[%s1] sm:$0xf]
          %v796 = vld [vmem:[%s1 + $0x4] sm:$0xf]
          %v797 = vld [vmem:[%s1 + $0x8] sm:$0xf]
          %v798 = vld [vmem:[%s1 + $0xc] sm:$0xf]
          %v799 = vld [vmem:[%s1 + $0x10] sm:$0xf]
          %v800 = vld [vmem:[%s1 + $0x14] sm:$0xf]
          %v801 = vld [vmem:[%s2] sm:$0x1]
          %v803 = vperm.slane %v801, 0
          %v807 = vunpack.c.l.b16 %v793
          %v808 = vunpack.c.l.b16 %v794
          %v809 = vpack.c.b16 %v808, %v807
          %v816 = vunpack.c.l.b16 %v795
          %v817 = vunpack.c.l.b16 %v796
          %v818 = vunpack.c.l.b16 %v797
          %v819 = vunpack.c.l.b16 %v798
          %v820 = vunpack.c.l.b16 %v799
          %v821 = vunpack.c.l.b16 %v800
          %v822 = vpack.c.b16 %v817, %v816
          %v823 = vpack.c.b16 %v819, %v818
          %v824 = vpack.c.b16 %v821, %v820
          %vm828 = vcmask 392192
          %v830 = vsel %vm828, %v809, 0
          %832 = vmatpush.bf16.msra.mxu0 0
          %833 = vmatpush.bf16.msra.mxu0 0
          %834 = vmatpush.bf16.msra.mxu0 0
          %835 = vmatpush.bf16.msra.mxu0 0
          %836 = vmatpush.bf16.msra.mxu0 0
          %837 = vmatpush.bf16.msra.mxu0 %v824
          %838 = vmatpush.bf16.msra.mxu0 %v823
          %839 = vmatpush.bf16.msra.mxu0 %v822
          %840 = vmatmul.bf16.gmra.mxu0 %v830
          %v841 = vpop.f32.mrf.mxu0
          %v842 = vadd.f32 %v803, %v841
          %v843 = vpop.f32.mrf.mxu0
          %v844 = vadd.f32 %v803, %v843
          %845 = vdwg.mxu0
          %vm846 = vcmask 253952
          %847 = vst.msk [vmem:[#allocation2] sm:$0x1] %vm846, %v792
          %vm851 = vcmask 1046528
          %v852 = vrot.slane %v788, 1
          %v853 = vrot.slane %v789, 1
          %v854 = vsel %vm851, %v852, %v853
          %v855 = vrot.slane %v790, 1
          %v856 = vsel %vm851, %v853, %v855
          %v859 = vadd.f32 %v842, %v854
          %v860 = vadd.f32 %v844, %v856
          %861 = vst.msk [vmem:[#allocation2 + $0x1] sm:$0xff] %vm775, %v859
          %862 = vst.msk [vmem:[#allocation2 + $0x9] sm:$0xff] %vm775, %v860
          %s863 = scalar_lea.vmem %s731, 8
          %v864 = vld [vmem:[%s863] sm:$0xf]
          %v865 = vld [vmem:[%s863 + $0x4] sm:$0xf]
          %v866 = vld [vmem:[%s1] sm:$0xf]
          %v867 = vld [vmem:[%s1 + $0x4] sm:$0xf]
          %v868 = vld [vmem:[%s1 + $0x8] sm:$0xf]
          %v869 = vld [vmem:[%s1 + $0xc] sm:$0xf]
          %v870 = vld [vmem:[%s1 + $0x10] sm:$0xf]
          %v871 = vld [vmem:[%s1 + $0x14] sm:$0xf]
          %v872 = vld [vmem:[%s2] sm:$0x1]
          %v874 = vperm.slane %v872, 0
          %v878 = vunpack.c.l.b16 %v864
          %v879 = vunpack.c.l.b16 %v865
          %v880 = vpack.c.b16 %v879, %v878
          %v887 = vunpack.c.l.b16 %v866
          %v888 = vunpack.c.l.b16 %v867
          %v889 = vunpack.c.l.b16 %v868
          %v890 = vunpack.c.l.b16 %v869
          %v891 = vunpack.c.l.b16 %v870
          %v892 = vunpack.c.l.b16 %v871
          %v893 = vpack.c.b16 %v888, %v887
          %v894 = vpack.c.b16 %v890, %v889
          %v895 = vpack.c.b16 %v892, %v891
          %v900 = vsel %vm828, %v880, 0
          %902 = vmatpush.bf16.msra.mxu0 0
          %903 = vmatpush.bf16.msra.mxu0 0
          %904 = vmatpush.bf16.msra.mxu0 0
          %905 = vmatpush.bf16.msra.mxu0 0
          %906 = vmatpush.bf16.msra.mxu0 0
          %907 = vmatpush.bf16.msra.mxu0 %v895
          %908 = vmatpush.bf16.msra.mxu0 %v894
          %909 = vmatpush.bf16.msra.mxu0 %v893
          %910 = vmatmul.bf16.gmra.mxu0 %v900
          %v911 = vpop.f32.mrf.mxu0
          %v912 = vadd.f32 %v874, %v911
          %v913 = vpop.f32.mrf.mxu0
          %v914 = vadd.f32 %v874, %v913
          %915 = vdwg.mxu0
          %916 = vst.msk [vmem:[#allocation2 + $0x18] sm:$0x1] %vm846, %v792
          %v917 = vadd.f32 %v912, %v854
          %v918 = vadd.f32 %v914, %v856
          %919 = vst.msk [vmem:[#allocation2 + $0x19] sm:$0xff] %vm775, %v917
          %920 = vst.msk [vmem:[#allocation2 + $0x21] sm:$0xff] %vm775, %v918
        $region100: #{vit_forward.1} parent=95 // pred_fallthru
          _
        %v921 = vld [vmem:[#allocation2] sm:$0xff]
        %v922 = vld [vmem:[#allocation2 + $0x8] sm:$0xff]
        %v923 = vld [vmem:[#allocation2 + $0x10] sm:$0xff]
        %v924 = vld [vmem:[#allocation2 + $0x18] sm:$0xff]
        %v925 = vld [vmem:[#allocation2 + $0x20] sm:$0xff]
        %v926 = vld [vmem:[#allocation2 + $0x28] sm:$0xff]
        %v927 = vld [vmem:[%s735] sm:$0x1]
        %v928 = vld [vmem:[%s738] sm:$0x1]
        %vm929 = vcmask 261120
        %v930 = vsel %vm929, %v921, 0.0
        %931 = vadd.xlane.f32.xlu0 %v930
        %v932 = vpop.xlane.xlu0 %931
        %v933 = vsel %vm929, %v922, 0.0
        %934 = vadd.xlane.f32.xlu0 %v933
        %v935 = vpop.xlane.xlu0 %934
        %v936 = vsel %vm929, %v923, 0.0
        %937 = vadd.xlane.f32.xlu0 %v936
        %v938 = vpop.xlane.xlu0 %937
        %v939 = vsel %vm929, %v924, 0.0
        %940 = vadd.xlane.f32.xlu0 %v939
        %v941 = vpop.xlane.xlu0 %940
        %v942 = vsel %vm929, %v925, 0.0
        %943 = vadd.xlane.f32.xlu0 %v942
        %v944 = vpop.xlane.xlu0 %943
        %v945 = vsel %vm929, %v926, 0.0
        %946 = vadd.xlane.f32.xlu0 %v945
        %v947 = vpop.xlane.xlu0 %946
        %v948 = vrcp.pop 32.0
        %v949 = vmul.f32 32.0, %v948
        %v950 = vsub.f32 1.0, %v949
        %v951 = vmul.f32 %v948, %v950
        %v952 = vadd.f32 %v948, %v951
        %vm953 = vweird.f32 %v948
        %v954 = vsel %vm953, %v948, %v952
        %v955 = vmul.f32 %v932, %v954
        %v956 = vmul.f32 %v935, %v954
        %v957 = vmul.f32 %v938, %v954
        %v958 = vmul.f32 %v941, %v954
        %v959 = vmul.f32 %v944, %v954
        %v960 = vmul.f32 %v947, %v954
        %v961 = vsub.f32 %v921, %v955
        %v962 = vsub.f32 %v922, %v956
        %v963 = vsub.f32 %v923, %v957
        %v964 = vsub.f32 %v924, %v958
        %v965 = vsub.f32 %v925, %v959
        %v966 = vsub.f32 %v926, %v960
        %v967 = vmul.f32 %v961, %v961
        %v968 = vmul.f32 %v962, %v962
        %v969 = vmul.f32 %v963, %v963
        %v970 = vmul.f32 %v964, %v964
        %v971 = vmul.f32 %v965, %v965
        %v972 = vmul.f32 %v966, %v966
        %v973 = vsel %vm929, %v967, 0.0
        %974 = vadd.xlane.f32.xlu0 %v973
        %v975 = vpop.xlane.xlu0 %974
        %v976 = vsel %vm929, %v968, 0.0
        %977 = vadd.xlane.f32.xlu0 %v976
        %v978 = vpop.xlane.xlu0 %977
        %v979 = vsel %vm929, %v969, 0.0
        %980 = vadd.xlane.f32.xlu0 %v979
        %v981 = vpop.xlane.xlu0 %980
        %v982 = vsel %vm929, %v970, 0.0
        %983 = vadd.xlane.f32.xlu0 %v982
        %v984 = vpop.xlane.xlu0 %983
        %v985 = vsel %vm929, %v971, 0.0
        %986 = vadd.xlane.f32.xlu0 %v985
        %v987 = vpop.xlane.xlu0 %986
        %v988 = vsel %vm929, %v972, 0.0
        %989 = vadd.xlane.f32.xlu0 %v988
        %v990 = vpop.xlane.xlu0 %989
        %v991 = vmul.f32 %v975, %v954
        %v992 = vmul.f32 %v978, %v954
        %v993 = vmul.f32 %v981, %v954
        %v994 = vmul.f32 %v984, %v954
        %v995 = vmul.f32 %v987, %v954
        %v996 = vmul.f32 %v990, %v954
        %v997 = vadd.f32 %v991, 1e-05
        %v998 = vadd.f32 %v992, 1e-05
        %v999 = vadd.f32 %v993, 1e-05
        %v1000 = vadd.f32 %v994, 1e-05
        %v1001 = vadd.f32 %v995, 1e-05
        %v1002 = vadd.f32 %v996, 1e-05
        %v1003 = vrsqrt.pop %v997
        %v1004 = vmul.f32 %v1003, %v997
        %v1005 = vmul.f32 %v1004, %v1003
        %v1006 = vmul.f32 0.5, %v1005
        %v1007 = vsub.f32 1.5, %v1006
        %v1008 = vmul.f32 %v1003, %v1007
        %vm1009 = vweird.f32 %v997
        %vm1010 = vweird.f32 %v1003
        %vm1011 = vmor %vm1009, %vm1010
        %v1012 = vsel %vm1011, %v1003, %v1008
        %v1013 = vrsqrt.pop %v998
        %v1014 = vmul.f32 %v1013, %v998
        %v1015 = vmul.f32 %v1014, %v1013
        %v1016 = vmul.f32 0.5, %v1015
        %v1017 = vsub.f32 1.5, %v1016
        %v1018 = vmul.f32 %v1013, %v1017
        %vm1019 = vweird.f32 %v998
        %vm1020 = vweird.f32 %v1013
        %vm1021 = vmor %vm1019, %vm1020
        %v1022 = vsel %vm1021, %v1013, %v1018
        %v1023 = vrsqrt.pop %v999
        %v1024 = vmul.f32 %v1023, %v999
        %v1025 = vmul.f32 %v1024, %v1023
        %v1026 = vmul.f32 0.5, %v1025
        %v1027 = vsub.f32 1.5, %v1026
        %v1028 = vmul.f32 %v1023, %v1027
        %vm1029 = vweird.f32 %v999
        %vm1030 = vweird.f32 %v1023
        %vm1031 = vmor %vm1029, %vm1030
        %v1032 = vsel %vm1031, %v1023, %v1028
        %v1033 = vrsqrt.pop %v1000
        %v1034 = vmul.f32 %v1033, %v1000
        %v1035 = vmul.f32 %v1034, %v1033
        %v1036 = vmul.f32 0.5, %v1035
        %v1037 = vsub.f32 1.5, %v1036
        %v1038 = vmul.f32 %v1033, %v1037
        %vm1039 = vweird.f32 %v1000
        %vm1040 = vweird.f32 %v1033
        %vm1041 = vmor %vm1039, %vm1040
        %v1042 = vsel %vm1041, %v1033, %v1038
        %v1043 = vrsqrt.pop %v1001
        %v1044 = vmul.f32 %v1043, %v1001
        %v1045 = vmul.f32 %v1044, %v1043
        %v1046 = vmul.f32 0.5, %v1045
        %v1047 = vsub.f32 1.5, %v1046
        %v1048 = vmul.f32 %v1043, %v1047
        %vm1049 = vweird.f32 %v1001
        %vm1050 = vweird.f32 %v1043
        %vm1051 = vmor %vm1049, %vm1050
        %v1052 = vsel %vm1051, %v1043, %v1048
        %v1053 = vrsqrt.pop %v1002
        %v1054 = vmul.f32 %v1053, %v1002
        %v1055 = vmul.f32 %v1054, %v1053
        %v1056 = vmul.f32 0.5, %v1055
        %v1057 = vsub.f32 1.5, %v1056
        %v1058 = vmul.f32 %v1053, %v1057
        %vm1059 = vweird.f32 %v1002
        %vm1060 = vweird.f32 %v1053
        %vm1061 = vmor %vm1059, %vm1060
        %v1062 = vsel %vm1061, %v1053, %v1058
        %v1063 = vmul.f32 %v961, %v1012
        %v1064 = vmul.f32 %v962, %v1022
        %v1065 = vmul.f32 %v963, %v1032
        %v1066 = vmul.f32 %v964, %v1042
        %v1067 = vmul.f32 %v965, %v1052
        %v1068 = vmul.f32 %v966, %v1062
        %v1070 = vperm.slane %v927, 0
        %v1072 = vmul.f32 %v1063, %v1070
        %v1073 = vmul.f32 %v1064, %v1070
        %v1074 = vmul.f32 %v1065, %v1070
        %v1075 = vmul.f32 %v1066, %v1070
        %v1076 = vmul.f32 %v1067, %v1070
        %v1077 = vmul.f32 %v1068, %v1070
        %v1079 = vperm.slane %v928, 0
        %v1081 = vadd.f32 %v1072, %v1079
        %v1082 = vadd.f32 %v1073, %v1079
        %v1083 = vadd.f32 %v1074, %v1079
        %v1084 = vadd.f32 %v1075, %v1079
        %v1085 = vadd.f32 %v1076, %v1079
        %v1086 = vadd.f32 %v1077, %v1079
        %v1087 = vpack.c.bf16 %v1082, %v1081
        %v1088 = vpack.c.bf16 %v1084, %v1083
        %v1089 = vpack.c.bf16 %v1086, %v1085
        %v1090 = vld [vmem:[%s743] sm:$0xf]
        %v1091 = vld [vmem:[%s743 + $0x4] sm:$0xf]
        %v1092 = vld [vmem:[%s743 + $0x8] sm:$0xf]
        %v1093 = vld [vmem:[%s743 + $0xc] sm:$0xf]
        %v1094 = vld [vmem:[%s746] sm:$0x1]
        %v1096 = vperm.slane %v1094, 0
        %v1102 = vunpack.c.l.b16 %v1090
        %v1103 = vunpack.c.l.b16 %v1091
        %v1104 = vunpack.c.l.b16 %v1092
        %v1105 = vunpack.c.l.b16 %v1093
        %v1106 = vpack.c.b16 %v1103, %v1102
        %v1107 = vpack.c.b16 %v1105, %v1104
        %v1111 = vsel %vm929, %v1087, 0
        %v1114 = vsel %vm929, %v1088, 0
        %v1117 = vsel %vm929, %v1089, 0
        %1119 = vmatpush.bf16.msra.mxu0 0
        %1120 = vmatpush.bf16.msra.mxu0 0
        %1121 = vmatpush.bf16.msra.mxu0 0
        %1122 = vmatpush.bf16.msra.mxu0 0
        %1123 = vmatpush.bf16.msra.mxu0 0
        %1124 = vmatpush.bf16.msra.mxu0 0
        %1125 = vmatpush.bf16.msra.mxu0 %v1107
        %1126 = vmatpush.bf16.msra.mxu0 %v1106
        %1127 = vmatmul.bf16.gmra.mxu0 %v1111
        %v1128 = vpop.f32.mrf.mxu0
        %v1129 = vadd.f32 %v1096, %v1128
        %v1130 = vpop.f32.mrf.mxu0
        %v1131 = vadd.f32 %v1096, %v1130
        %1132 = vmatmul.bf16.gmra.mxu0 %v1114
        %v1133 = vpop.f32.mrf.mxu0
        %v1134 = vadd.f32 %v1096, %v1133
        %v1135 = vpop.f32.mrf.mxu0
        %v1136 = vadd.f32 %v1096, %v1135
        %1137 = vmatmul.bf16.gmra.mxu0 %v1117
        %v1138 = vpop.f32.mrf.mxu0
        %v1139 = vadd.f32 %v1096, %v1138
        %v1140 = vpop.f32.mrf.mxu0
        %v1141 = vadd.f32 %v1096, %v1140
        %1142 = vdwg.mxu0
        %v1143 = vpack.c.bf16 %v1131, %v1129
        %v1144 = vpack.c.bf16 %v1134, %v1134
        %1147 = vrot.lane.b32.xlu0 %v1143, 96
        %v1148 = vpop.permute.xlu0 %1147
        %1149 = vrot.lane.b32.xlu0 %v1144, 96
        %v1150 = vpop.permute.xlu0 %1149
        %vm1151 = vcmask 64512
        %v1153 = vsel %vm1151, %v1143, 0
        %v1156 = vsel %vm1151, %v1144, 0
        %v1159 = vsel %vm1151, %v1148, 0
        %v1162 = vsel %vm1151, %v1150, 0
        %1164 = vmatpush.bf16.xpose.msra.mxu0 0
        %1165 = vmatpush.bf16.xpose.msra.mxu0 0
        %1166 = vmatpush.bf16.xpose.msra.mxu0 0
        %1167 = vmatpush.bf16.xpose.msra.mxu0 0
        %1168 = vmatpush.bf16.xpose.msra.mxu0 0
        %1169 = vmatpush.bf16.xpose.msra.mxu0 0
        %1170 = vmatpush.bf16.xpose.msra.mxu0 %v1162
        %1171 = vmatpush.bf16.xpose.msra.mxu0 %v1159
        %1172 = vmatmul.bf16.gmra.mxu0 %v1153
        %v1173 = vpop.f32.mrf.mxu0
        %v1174 = vadd.f32 0.0, %v1173
        %v1175 = vpop.f32.mrf.mxu0
        %v1176 = vadd.f32 0.0, %v1175
        %1177 = vmatmul.bf16.gmra.mxu0 %v1156
        %v1178 = vpop.f32.mrf.mxu0
        %v1179 = vadd.f32 0.0, %v1178
        %v1180 = vpop.f32.mrf.mxu0
        %1181 = vdwg.mxu0
        %v1182 = vmul.f32 %v1174, 0.35355338
        %v1183 = vmul.f32 %v1176, 0.35355338
        %v1184 = vmul.f32 %v1179, 0.35355338
        %vm1185 = vcmask 138240
        %v1186 = vsel %vm1185, %v1182, -inf
        %1187 = vmax.xlane.f32.xlu0 %v1186
        %v1188 = vpop.xlane.xlu0 %1187
        %v1189 = vsel %vm1185, %v1183, -inf
        %1190 = vmax.xlane.f32.xlu0 %v1189
        %v1191 = vpop.xlane.xlu0 %1190
        %vm1192 = vcmask 131072
        %v1193 = vsel %vm1192, %v1184, -inf
        %1194 = vmax.xlane.f32.xlu0 %v1193
        %v1195 = vpop.xlane.xlu0 %1194
        %v1196 = vsub.f32 %v1182, %v1188
        %v1197 = vsub.f32 %v1183, %v1191
        %v1198 = vsub.f32 %v1184, %v1195
        %v1199 = vmul.f32 %v1196, 1.442695
        %v1200 = vpow.pop %v1199
        %v1201 = vmul.f32 %v1197, 1.442695
        %v1202 = vpow.pop %v1201
        %v1203 = vmul.f32 %v1198, 1.442695
        %v1204 = vpow.pop %v1203
        %v1205 = vsel %vm1185, %v1200, 0.0
        %1206 = vadd.xlane.f32.xlu0 %v1205
        %v1207 = vpop.xlane.xlu0 %1206
        %v1208 = vsel %vm1185, %v1202, 0.0
        %1209 = vadd.xlane.f32.xlu0 %v1208
        %v1210 = vpop.xlane.xlu0 %1209
        %v1211 = vsel %vm1192, %v1204, 0.0
        %1212 = vadd.xlane.f32.xlu0 %v1211
        %v1213 = vpop.xlane.xlu0 %1212
        %v1214 = vrcp.pop %v1207
        %v1215 = vrcp.pop %v1210
        %v1216 = vrcp.pop %v1213
        %v1217 = vmul.f32 %v1200, %v1214
        %v1218 = vmul.f32 %v1202, %v1215
        %v1219 = vmul.f32 %v1204, %v1216
        %v1220 = vpack.c.bf16 %v1218, %v1217
        %v1221 = vpack.c.bf16 %v1219, %v1219
        %1222 = vrot.lane.b32.xlu0 %v1143, 64
        %v1223 = vpop.permute.xlu0 %1222
        %1224 = vrot.lane.b32.xlu0 %v1144, 64
        %v1225 = vpop.permute.xlu0 %1224
        %v1228 = vsel %vm1185, %v1220, 0
        %v1231 = vsel %vm1185, %v1221, 0
        %vm1233 = vcmask 1040384
        %v1234 = vsel 0, 4294967295, 65535
        %v1235 = vsel %vm1233, %v1234, 0
        %v1237 = vand.u32 %v1225, %v1235
        %1239 = vmatpush.bf16.msra.mxu0 0
        %1240 = vmatpush.bf16.msra.mxu0 0
        %1241 = vmatpush.bf16.msra.mxu0 0
        %1242 = vmatpush.bf16.msra.mxu0 0
        %1243 = vmatpush.bf16.msra.mxu0 0
        %1244 = vmatpush.bf16.msra.mxu0 0
        %1245 = vmatpush.bf16.msra.mxu0 %v1237
        %1246 = vmatpush.bf16.msra.mxu0 %v1223
        %1247 = vmatmul.bf16.gmra.mxu0 %v1228
        %v1248 = vpop.f32.mrf.mxu0
        %v1249 = vadd.f32 0.0, %v1248
        %v1250 = vpop.f32.mrf.mxu0
        %v1251 = vadd.f32 0.0, %v1250
        %1252 = vmatmul.bf16.gmra.mxu0 %v1231
        %v1253 = vpop.f32.mrf.mxu0
        %v1254 = vadd.f32 0.0, %v1253
        %v1255 = vpop.f32.mrf.mxu0
        %1256 = vdwg.mxu0
        %1257 = vst.msk [vmem:[#allocation3] sm:$0xff] %vm1151, %v1249
        %1258 = vst.msk [vmem:[#allocation3 + $0x8] sm:$0xff] %vm1151, %v1251
        %vm1259 = vcmask 57344
        %1260 = vst.msk [vmem:[#allocation3 + $0x10] sm:$0x1] %vm1259, %v1254
        %1261 = vrot.lane.b32.xlu0 %v1143, 120
        %v1262 = vpop.permute.xlu0 %1261
        %1263 = vrot.lane.b32.xlu0 %v1144, 120
        %v1264 = vpop.permute.xlu0 %1263
        %1265 = vrot.lane.b32.xlu0 %v1143, 88
        %v1266 = vpop.permute.xlu0 %1265
        %1267 = vrot.lane.b32.xlu0 %v1144, 88
        %v1268 = vpop.permute.xlu0 %1267
        %v1270 = vsel %vm1151, %v1262, 0
        %v1273 = vsel %vm1151, %v1264, 0
        %v1276 = vsel %vm1151, %v1266, 0
        %v1279 = vsel %vm1151, %v1268, 0
        %1281 = vmatpush.bf16.xpose.msra.mxu0 0
        %1282 = vmatpush.bf16.xpose.msra.mxu0 0
        %1283 = vmatpush.bf16.xpose.msra.mxu0 0
        %1284 = vmatpush.bf16.xpose.msra.mxu0 0
        %1285 = vmatpush.bf16.xpose.msra.mxu0 0
        %1286 = vmatpush.bf16.xpose.msra.mxu0 0
        %1287 = vmatpush.bf16.xpose.msra.mxu0 %v1279
        %1288 = vmatpush.bf16.xpose.msra.mxu0 %v1276
        %1289 = vmatmul.bf16.gmra.mxu0 %v1270
        %v1290 = vpop.f32.mrf.mxu0
        %v1291 = vadd.f32 0.0, %v1290
        %v1292 = vpop.f32.mrf.mxu0
        %v1293 = vadd.f32 0.0, %v1292
        %1294 = vmatmul.bf16.gmra.mxu0 %v1273
        %v1295 = vpop.f32.mrf.mxu0
        %v1296 = vadd.f32 0.0, %v1295
        %v1297 = vpop.f32.mrf.mxu0
        %1298 = vdwg.mxu0
        %v1299 = vmul.f32 %v1291, 0.35355338
        %v1300 = vmul.f32 %v1293, 0.35355338
        %v1301 = vmul.f32 %v1296, 0.35355338
        %v1302 = vsel %vm1185, %v1299, -inf
        %1303 = vmax.xlane.f32.xlu0 %v1302
        %v1304 = vpop.xlane.xlu0 %1303
        %v1305 = vsel %vm1185, %v1300, -inf
        %1306 = vmax.xlane.f32.xlu0 %v1305
        %v1307 = vpop.xlane.xlu0 %1306
        %v1308 = vsel %vm1192, %v1301, -inf
        %1309 = vmax.xlane.f32.xlu0 %v1308
        %v1310 = vpop.xlane.xlu0 %1309
        %v1311 = vsub.f32 %v1299, %v1304
        %v1312 = vsub.f32 %v1300, %v1307
        %v1313 = vsub.f32 %v1301, %v1310
        %v1314 = vmul.f32 %v1311, 1.442695
        %v1315 = vpow.pop %v1314
        %v1316 = vmul.f32 %v1312, 1.442695
        %v1317 = vpow.pop %v1316
        %v1318 = vmul.f32 %v1313, 1.442695
        %v1319 = vpow.pop %v1318
        %v1320 = vsel %vm1185, %v1315, 0.0
        %1321 = vadd.xlane.f32.xlu0 %v1320
        %v1322 = vpop.xlane.xlu0 %1321
        %v1323 = vsel %vm1185, %v1317, 0.0
        %1324 = vadd.xlane.f32.xlu0 %v1323
        %v1325 = vpop.xlane.xlu0 %1324
        %v1326 = vsel %vm1192, %v1319, 0.0
        %1327 = vadd.xlane.f32.xlu0 %v1326
        %v1328 = vpop.xlane.xlu0 %1327
        %v1329 = vrcp.pop %v1322
        %v1330 = vrcp.pop %v1325
        %v1331 = vrcp.pop %v1328
        %v1332 = vmul.f32 %v1315, %v1329
        %v1333 = vmul.f32 %v1317, %v1330
        %v1334 = vmul.f32 %v1319, %v1331
        %v1335 = vpack.c.bf16 %v1333, %v1332
        %v1336 = vpack.c.bf16 %v1334, %v1334
        %1337 = vrot.lane.b32.xlu0 %v1143, 56
        %v1338 = vpop.permute.xlu0 %1337
        %1339 = vrot.lane.b32.xlu0 %v1144, 56
        %v1340 = vpop.permute.xlu0 %1339
        %v1343 = vsel %vm1185, %v1335, 0
        %v1346 = vsel %vm1185, %v1336, 0
        %v1349 = vand.u32 %v1340, %v1235
        %1351 = vmatpush.bf16.msra.mxu0 0
        %1352 = vmatpush.bf16.msra.mxu0 0
        %1353 = vmatpush.bf16.msra.mxu0 0
        %1354 = vmatpush.bf16.msra.mxu0 0
        %1355 = vmatpush.bf16.msra.mxu0 0
        %1356 = vmatpush.bf16.msra.mxu0 0
        %1357 = vmatpush.bf16.msra.mxu0 %v1349
        %1358 = vmatpush.bf16.msra.mxu0 %v1338
        %1359 = vmatmul.bf16.gmra.mxu0 %v1343
        %v1360 = vpop.f32.mrf.mxu0
        %v1361 = vadd.f32 0.0, %v1360
        %v1362 = vpop.f32.mrf.mxu0
        %v1363 = vadd.f32 0.0, %v1362
        %1364 = vmatmul.bf16.gmra.mxu0 %v1346
        %v1365 = vpop.f32.mrf.mxu0
        %v1366 = vadd.f32 0.0, %v1365
        %v1367 = vpop.f32.mrf.mxu0
        %1368 = vdwg.mxu0
        %1372 = vrot.lane.b32.xlu0 %v1361, 8
        %v1373 = vpop.permute.xlu0 %1372
        %1374 = vrot.lane.b32.xlu0 %v1363, 8
        %v1375 = vpop.permute.xlu0 %1374
        %1376 = vrot.lane.b32.xlu0 %v1366, 8
        %v1377 = vpop.permute.xlu0 %1376
        %vm1381 = vcmask 130112
        %1382 = vst.msk [vmem:[#allocation3] sm:$0xff] %vm1381, %v1373
        %1383 = vst.msk [vmem:[#allocation3 + $0x8] sm:$0xff] %vm1381, %v1375
        %vm1384 = vcmask 122944
        %1385 = vst.msk [vmem:[#allocation3 + $0x10] sm:$0x1] %vm1384, %v1377
        %1386 = vrot.lane.b32.xlu0 %v1143, 112
        %v1387 = vpop.permute.xlu0 %1386
        %1388 = vrot.lane.b32.xlu0 %v1144, 112
        %v1389 = vpop.permute.xlu0 %1388
        %1390 = vrot.lane.b32.xlu0 %v1143, 80
        %v1391 = vpop.permute.xlu0 %1390
        %1392 = vrot.lane.b32.xlu0 %v1144, 80
        %v1393 = vpop.permute.xlu0 %1392
        %v1395 = vsel %vm1151, %v1387, 0
        %v1398 = vsel %vm1151, %v1389, 0
        %v1401 = vsel %vm1151, %v1391, 0
        %v1404 = vsel %vm1151, %v1393, 0
        %1406 = vmatpush.bf16.xpose.msra.mxu0 0
        %1407 = vmatpush.bf16.xpose.msra.mxu0 0
        %1408 = vmatpush.bf16.xpose.msra.mxu0 0
        %1409 = vmatpush.bf16.xpose.msra.mxu0 0
        %1410 = vmatpush.bf16.xpose.msra.mxu0 0
        %1411 = vmatpush.bf16.xpose.msra.mxu0 0
        %1412 = vmatpush.bf16.xpose.msra.mxu0 %v1404
        %1413 = vmatpush.bf16.xpose.msra.mxu0 %v1401
        %1414 = vmatmul.bf16.gmra.mxu0 %v1395
        %v1415 = vpop.f32.mrf.mxu0
        %v1416 = vadd.f32 0.0, %v1415
        %v1417 = vpop.f32.mrf.mxu0
        %v1418 = vadd.f32 0.0, %v1417
        %1419 = vmatmul.bf16.gmra.mxu0 %v1398
        %v1420 = vpop.f32.mrf.mxu0
        %v1421 = vadd.f32 0.0, %v1420
        %v1422 = vpop.f32.mrf.mxu0
        %1423 = vdwg.mxu0
        %v1424 = vmul.f32 %v1416, 0.35355338
        %v1425 = vmul.f32 %v1418, 0.35355338
        %v1426 = vmul.f32 %v1421, 0.35355338
        %v1427 = vsel %vm1185, %v1424, -inf
        %1428 = vmax.xlane.f32.xlu0 %v1427
        %v1429 = vpop.xlane.xlu0 %1428
        %v1430 = vsel %vm1185, %v1425, -inf
        %1431 = vmax.xlane.f32.xlu0 %v1430
        %v1432 = vpop.xlane.xlu0 %1431
        %v1433 = vsel %vm1192, %v1426, -inf
        %1434 = vmax.xlane.f32.xlu0 %v1433
        %v1435 = vpop.xlane.xlu0 %1434
        %v1436 = vsub.f32 %v1424, %v1429
        %v1437 = vsub.f32 %v1425, %v1432
        %v1438 = vsub.f32 %v1426, %v1435
        %v1439 = vmul.f32 %v1436, 1.442695
        %v1440 = vpow.pop %v1439
        %v1441 = vmul.f32 %v1437, 1.442695
        %v1442 = vpow.pop %v1441
        %v1443 = vmul.f32 %v1438, 1.442695
        %v1444 = vpow.pop %v1443
        %v1445 = vsel %vm1185, %v1440, 0.0
        %1446 = vadd.xlane.f32.xlu0 %v1445
        %v1447 = vpop.xlane.xlu0 %1446
        %v1448 = vsel %vm1185, %v1442, 0.0
        %1449 = vadd.xlane.f32.xlu0 %v1448
        %v1450 = vpop.xlane.xlu0 %1449
        %v1451 = vsel %vm1192, %v1444, 0.0
        %1452 = vadd.xlane.f32.xlu0 %v1451
        %v1453 = vpop.xlane.xlu0 %1452
        %v1454 = vrcp.pop %v1447
        %v1455 = vrcp.pop %v1450
        %v1456 = vrcp.pop %v1453
        %v1457 = vmul.f32 %v1440, %v1454
        %v1458 = vmul.f32 %v1442, %v1455
        %v1459 = vmul.f32 %v1444, %v1456
        %v1460 = vpack.c.bf16 %v1458, %v1457
        %v1461 = vpack.c.bf16 %v1459, %v1459
        %1462 = vrot.lane.b32.xlu0 %v1143, 48
        %v1463 = vpop.permute.xlu0 %1462
        %1464 = vrot.lane.b32.xlu0 %v1144, 48
        %v1465 = vpop.permute.xlu0 %1464
        %v1468 = vsel %vm1185, %v1460, 0
        %v1471 = vsel %vm1185, %v1461, 0
        %v1474 = vand.u32 %v1465, %v1235
        %1476 = vmatpush.bf16.msra.mxu0 0
        %1477 = vmatpush.bf16.msra.mxu0 0
        %1478 = vmatpush.bf16.msra.mxu0 0
        %1479 = vmatpush.bf16.msra.mxu0 0
        %1480 = vmatpush.bf16.msra.mxu0 0
        %1481 = vmatpush.bf16.msra.mxu0 0
        %1482 = vmatpush.bf16.msra.mxu0 %v1474
        %1483 = vmatpush.bf16.msra.mxu0 %v1463
        %1484 = vmatmul.bf16.gmra.mxu0 %v1468
        %v1485 = vpop.f32.mrf.mxu0
        %v1486 = vadd.f32 0.0, %v1485
        %v1487 = vpop.f32.mrf.mxu0
        %v1488 = vadd.f32 0.0, %v1487
        %1489 = vmatmul.bf16.gmra.mxu0 %v1471
        %v1490 = vpop.f32.mrf.mxu0
        %v1491 = vadd.f32 0.0, %v1490
        %v1492 = vpop.f32.mrf.mxu0
        %1493 = vdwg.mxu0
        %1497 = vrot.lane.b32.xlu0 %v1486, 16
        %v1498 = vpop.permute.xlu0 %1497
        %1499 = vrot.lane.b32.xlu0 %v1488, 16
        %v1500 = vpop.permute.xlu0 %1499
        %1501 = vrot.lane.b32.xlu0 %v1491, 16
        %v1502 = vpop.permute.xlu0 %1501
        %vm1506 = vcmask 195712
        %1507 = vst.msk [vmem:[#allocation3] sm:$0xff] %vm1506, %v1498
        %1508 = vst.msk [vmem:[#allocation3 + $0x8] sm:$0xff] %vm1506, %v1500
        %vm1509 = vcmask 188544
        %1510 = vst.msk [vmem:[#allocation3 + $0x10] sm:$0x1] %vm1509, %v1502
        %1511 = vrot.lane.b32.xlu0 %v1143, 104
        %v1512 = vpop.permute.xlu0 %1511
        %1513 = vrot.lane.b32.xlu0 %v1144, 104
        %v1514 = vpop.permute.xlu0 %1513
        %1515 = vrot.lane.b32.xlu0 %v1143, 72
        %v1516 = vpop.permute.xlu0 %1515
        %1517 = vrot.lane.b32.xlu0 %v1144, 72
        %v1518 = vpop.permute.xlu0 %1517
        %v1520 = vsel %vm1151, %v1512, 0
        %v1523 = vsel %vm1151, %v1514, 0
        %v1526 = vsel %vm1151, %v1516, 0
        %v1529 = vsel %vm1151, %v1518, 0
        %1531 = vmatpush.bf16.xpose.msra.mxu0 0
        %1532 = vmatpush.bf16.xpose.msra.mxu0 0
        %1533 = vmatpush.bf16.xpose.msra.mxu0 0
        %1534 = vmatpush.bf16.xpose.msra.mxu0 0
        %1535 = vmatpush.bf16.xpose.msra.mxu0 0
        %1536 = vmatpush.bf16.xpose.msra.mxu0 0
        %1537 = vmatpush.bf16.xpose.msra.mxu0 %v1529
        %1538 = vmatpush.bf16.xpose.msra.mxu0 %v1526
        %1539 = vmatmul.bf16.gmra.mxu0 %v1520
        %v1540 = vpop.f32.mrf.mxu0
        %v1541 = vadd.f32 0.0, %v1540
        %v1542 = vpop.f32.mrf.mxu0
        %v1543 = vadd.f32 0.0, %v1542
        %1544 = vmatmul.bf16.gmra.mxu0 %v1523
        %v1545 = vpop.f32.mrf.mxu0
        %v1546 = vadd.f32 0.0, %v1545
        %v1547 = vpop.f32.mrf.mxu0
        %1548 = vdwg.mxu0
        %v1549 = vmul.f32 %v1541, 0.35355338
        %v1550 = vmul.f32 %v1543, 0.35355338
        %v1551 = vmul.f32 %v1546, 0.35355338
        %v1552 = vsel %vm1185, %v1549, -inf
        %1553 = vmax.xlane.f32.xlu0 %v1552
        %v1554 = vpop.xlane.xlu0 %1553
        %v1555 = vsel %vm1185, %v1550, -inf
        %1556 = vmax.xlane.f32.xlu0 %v1555
        %v1557 = vpop.xlane.xlu0 %1556
        %v1558 = vsel %vm1192, %v1551, -inf
        %1559 = vmax.xlane.f32.xlu0 %v1558
        %v1560 = vpop.xlane.xlu0 %1559
        %v1561 = vsub.f32 %v1549, %v1554
        %v1562 = vsub.f32 %v1550, %v1557
        %v1563 = vsub.f32 %v1551, %v1560
        %v1564 = vmul.f32 %v1561, 1.442695
        %v1565 = vpow.pop %v1564
        %v1566 = vmul.f32 %v1562, 1.442695
        %v1567 = vpow.pop %v1566
        %v1568 = vmul.f32 %v1563, 1.442695
        %v1569 = vpow.pop %v1568
        %v1570 = vsel %vm1185, %v1565, 0.0
        %1571 = vadd.xlane.f32.xlu0 %v1570
        %v1572 = vpop.xlane.xlu0 %1571
        %v1573 = vsel %vm1185, %v1567, 0.0
        %1574 = vadd.xlane.f32.xlu0 %v1573
        %v1575 = vpop.xlane.xlu0 %1574
        %v1576 = vsel %vm1192, %v1569, 0.0
        %1577 = vadd.xlane.f32.xlu0 %v1576
        %v1578 = vpop.xlane.xlu0 %1577
        %v1579 = vrcp.pop %v1572
        %v1580 = vrcp.pop %v1575
        %v1581 = vrcp.pop %v1578
        %v1582 = vmul.f32 %v1565, %v1579
        %v1583 = vmul.f32 %v1567, %v1580
        %v1584 = vmul.f32 %v1569, %v1581
        %v1585 = vpack.c.bf16 %v1583, %v1582
        %v1586 = vpack.c.bf16 %v1584, %v1584
        %1587 = vrot.lane.b32.xlu0 %v1143, 40
        %v1588 = vpop.permute.xlu0 %1587
        %1589 = vrot.lane.b32.xlu0 %v1144, 40
        %v1590 = vpop.permute.xlu0 %1589
        %v1593 = vsel %vm1185, %v1585, 0
        %v1596 = vsel %vm1185, %v1586, 0
        %v1599 = vand.u32 %v1590, %v1235
        %1601 = vmatpush.bf16.msra.mxu0 0
        %1602 = vmatpush.bf16.msra.mxu0 0
        %1603 = vmatpush.bf16.msra.mxu0 0
        %1604 = vmatpush.bf16.msra.mxu0 0
        %1605 = vmatpush.bf16.msra.mxu0 0
        %1606 = vmatpush.bf16.msra.mxu0 0
        %1607 = vmatpush.bf16.msra.mxu0 %v1599
        %1608 = vmatpush.bf16.msra.mxu0 %v1588
        %1609 = vmatmul.bf16.gmra.mxu0 %v1593
        %v1610 = vpop.f32.mrf.mxu0
        %v1611 = vadd.f32 0.0, %v1610
        %v1612 = vpop.f32.mrf.mxu0
        %v1613 = vadd.f32 0.0, %v1612
        %1614 = vmatmul.bf16.gmra.mxu0 %v1596
        %v1615 = vpop.f32.mrf.mxu0
        %v1616 = vadd.f32 0.0, %v1615
        %v1617 = vpop.f32.mrf.mxu0
        %1618 = vdwg.mxu0
        %1622 = vrot.lane.b32.xlu0 %v1611, 24
        %v1623 = vpop.permute.xlu0 %1622
        %1624 = vrot.lane.b32.xlu0 %v1613, 24
        %v1625 = vpop.permute.xlu0 %1624
        %1626 = vrot.lane.b32.xlu0 %v1616, 24
        %v1627 = vpop.permute.xlu0 %1626
        %vm1631 = vcmask 261312
        %1632 = vst.msk [vmem:[#allocation3] sm:$0xff] %vm1631, %v1623
        %1633 = vst.msk [vmem:[#allocation3 + $0x8] sm:$0xff] %vm1631, %v1625
        %vm1634 = vcmask 254144
        %1635 = vst.msk [vmem:[#allocation3 + $0x10] sm:$0x1] %vm1634, %v1627
        %v1636 = vpack.c.bf16 %v1139, %v1136
        %v1637 = vpack.c.bf16 %v1141, %v1141
        %1640 = vrot.lane.b32.xlu0 %v1636, 96
        %v1641 = vpop.permute.xlu0 %1640
        %1642 = vrot.lane.b32.xlu0 %v1637, 96
        %v1643 = vpop.permute.xlu0 %1642
        %v1645 = vsel %vm1151, %v1636, 0
        %v1648 = vsel %vm1151, %v1637, 0
        %v1651 = vsel %vm1151, %v1641, 0
        %v1654 = vsel %vm1151, %v1643, 0
        %1656 = vmatpush.bf16.xpose.msra.mxu0 0
        %1657 = vmatpush.bf16.xpose.msra.mxu0 0
        %1658 = vmatpush.bf16.xpose.msra.mxu0 0
        %1659 = vmatpush.bf16.xpose.msra.mxu0 0
        %1660 = vmatpush.bf16.xpose.msra.mxu0 0
        %1661 = vmatpush.bf16.xpose.msra.mxu0 0
        %1662 = vmatpush.bf16.xpose.msra.mxu0 %v1654
        %1663 = vmatpush.bf16.xpose.msra.mxu0 %v1651
        %1664 = vmatmul.bf16.gmra.mxu0 %v1645
        %v1665 = vpop.f32.mrf.mxu0
        %v1666 = vadd.f32 0.0, %v1665
        %v1667 = vpop.f32.mrf.mxu0
        %v1668 = vadd.f32 0.0, %v1667
        %1669 = vmatmul.bf16.gmra.mxu0 %v1648
        %v1670 = vpop.f32.mrf.mxu0
        %v1671 = vadd.f32 0.0, %v1670
        %v1672 = vpop.f32.mrf.mxu0
        %1673 = vdwg.mxu0
        %v1674 = vmul.f32 %v1666, 0.35355338
        %v1675 = vmul.f32 %v1668, 0.35355338
        %v1676 = vmul.f32 %v1671, 0.35355338
        %v1677 = vsel %vm1185, %v1674, -inf
        %1678 = vmax.xlane.f32.xlu0 %v1677
        %v1679 = vpop.xlane.xlu0 %1678
        %v1680 = vsel %vm1185, %v1675, -inf
        %1681 = vmax.xlane.f32.xlu0 %v1680
        %v1682 = vpop.xlane.xlu0 %1681
        %v1683 = vsel %vm1192, %v1676, -inf
        %1684 = vmax.xlane.f32.xlu0 %v1683
        %v1685 = vpop.xlane.xlu0 %1684
        %v1686 = vsub.f32 %v1674, %v1679
        %v1687 = vsub.f32 %v1675, %v1682
        %v1688 = vsub.f32 %v1676, %v1685
        %v1689 = vmul.f32 %v1686, 1.442695
        %v1690 = vpow.pop %v1689
        %v1691 = vmul.f32 %v1687, 1.442695
        %v1692 = vpow.pop %v1691
        %v1693 = vmul.f32 %v1688, 1.442695
        %v1694 = vpow.pop %v1693
        %v1695 = vsel %vm1185, %v1690, 0.0
        %1696 = vadd.xlane.f32.xlu0 %v1695
        %v1697 = vpop.xlane.xlu0 %1696
        %v1698 = vsel %vm1185, %v1692, 0.0
        %1699 = vadd.xlane.f32.xlu0 %v1698
        %v1700 = vpop.xlane.xlu0 %1699
        %v1701 = vsel %vm1192, %v1694, 0.0
        %1702 = vadd.xlane.f32.xlu0 %v1701
        %v1703 = vpop.xlane.xlu0 %1702
        %v1704 = vrcp.pop %v1697
        %v1705 = vrcp.pop %v1700
        %v1706 = vrcp.pop %v1703
        %v1707 = vmul.f32 %v1690, %v1704
        %v1708 = vmul.f32 %v1692, %v1705
        %v1709 = vmul.f32 %v1694, %v1706
        %v1710 = vpack.c.bf16 %v1708, %v1707
        %v1711 = vpack.c.bf16 %v1709, %v1709
        %1712 = vrot.lane.b32.xlu0 %v1636, 64
        %v1713 = vpop.permute.xlu0 %1712
        %1714 = vrot.lane.b32.xlu0 %v1637, 64
        %v1715 = vpop.permute.xlu0 %1714
        %v1718 = vsel %vm1185, %v1710, 0
        %v1721 = vsel %vm1185, %v1711, 0
        %v1724 = vand.u32 %v1715, %v1235
        %1726 = vmatpush.bf16.msra.mxu0 0
        %1727 = vmatpush.bf16.msra.mxu0 0
        %1728 = vmatpush.bf16.msra.mxu0 0
        %1729 = vmatpush.bf16.msra.mxu0 0
        %1730 = vmatpush.bf16.msra.mxu0 0
        %1731 = vmatpush.bf16.msra.mxu0 0
        %1732 = vmatpush.bf16.msra.mxu0 %v1724
        %1733 = vmatpush.bf16.msra.mxu0 %v1713
        %1734 = vmatmul.bf16.gmra.mxu0 %v1718
        %v1735 = vpop.f32.mrf.mxu0
        %v1736 = vadd.f32 0.0, %v1735
        %v1737 = vpop.f32.mrf.mxu0
        %v1738 = vadd.f32 0.0, %v1737
        %1739 = vmatmul.bf16.gmra.mxu0 %v1721
        %v1740 = vpop.f32.mrf.mxu0
        %v1741 = vadd.f32 0.0, %v1740
        %v1742 = vpop.f32.mrf.mxu0
        %1743 = vdwg.mxu0
        %1744 = vst.msk [vmem:[#allocation3 + $0x18] sm:$0xff] %vm1151, %v1736
        %1745 = vst.msk [vmem:[#allocation3 + $0x20] sm:$0xff] %vm1151, %v1738
        %1746 = vst.msk [vmem:[#allocation3 + $0x28] sm:$0x1] %vm1259, %v1741
        %1747 = vrot.lane.b32.xlu0 %v1636, 120
        %v1748 = vpop.permute.xlu0 %1747
        %1749 = vrot.lane.b32.xlu0 %v1637, 120
        %v1750 = vpop.permute.xlu0 %1749
        %1751 = vrot.lane.b32.xlu0 %v1636, 88
        %v1752 = vpop.permute.xlu0 %1751
        %1753 = vrot.lane.b32.xlu0 %v1637, 88
        %v1754 = vpop.permute.xlu0 %1753
        %v1756 = vsel %vm1151, %v1748, 0
        %v1759 = vsel %vm1151, %v1750, 0
        %v1762 = vsel %vm1151, %v1752, 0
        %v1765 = vsel %vm1151, %v1754, 0
        %1767 = vmatpush.bf16.xpose.msra.mxu0 0
        %1768 = vmatpush.bf16.xpose.msra.mxu0 0
        %1769 = vmatpush.bf16.xpose.msra.mxu0 0
        %1770 = vmatpush.bf16.xpose.msra.mxu0 0
        %1771 = vmatpush.bf16.xpose.msra.mxu0 0
        %1772 = vmatpush.bf16.xpose.msra.mxu0 0
        %1773 = vmatpush.bf16.xpose.msra.mxu0 %v1765
        %1774 = vmatpush.bf16.xpose.msra.mxu0 %v1762
        %1775 = vmatmul.bf16.gmra.mxu0 %v1756
        %v1776 = vpop.f32.mrf.mxu0
        %v1777 = vadd.f32 0.0, %v1776
        %v1778 = vpop.f32.mrf.mxu0
        %v1779 = vadd.f32 0.0, %v1778
        %1780 = vmatmul.bf16.gmra.mxu0 %v1759
        %v1781 = vpop.f32.mrf.mxu0
        %v1782 = vadd.f32 0.0, %v1781
        %v1783 = vpop.f32.mrf.mxu0
        %1784 = vdwg.mxu0
        %v1785 = vmul.f32 %v1777, 0.35355338
        %v1786 = vmul.f32 %v1779, 0.35355338
        %v1787 = vmul.f32 %v1782, 0.35355338
        %v1788 = vsel %vm1185, %v1785, -inf
        %1789 = vmax.xlane.f32.xlu0 %v1788
        %v1790 = vpop.xlane.xlu0 %1789
        %v1791 = vsel %vm1185, %v1786, -inf
        %1792 = vmax.xlane.f32.xlu0 %v1791
        %v1793 = vpop.xlane.xlu0 %1792
        %v1794 = vsel %vm1192, %v1787, -inf
        %1795 = vmax.xlane.f32.xlu0 %v1794
        %v1796 = vpop.xlane.xlu0 %1795
        %v1797 = vsub.f32 %v1785, %v1790
        %v1798 = vsub.f32 %v1786, %v1793
        %v1799 = vsub.f32 %v1787, %v1796
        %v1800 = vmul.f32 %v1797, 1.442695
        %v1801 = vpow.pop %v1800
        %v1802 = vmul.f32 %v1798, 1.442695
        %v1803 = vpow.pop %v1802
        %v1804 = vmul.f32 %v1799, 1.442695
        %v1805 = vpow.pop %v1804
        %v1806 = vsel %vm1185, %v1801, 0.0
        %1807 = vadd.xlane.f32.xlu0 %v1806
        %v1808 = vpop.xlane.xlu0 %1807
        %v1809 = vsel %vm1185, %v1803, 0.0
        %1810 = vadd.xlane.f32.xlu0 %v1809
        %v1811 = vpop.xlane.xlu0 %1810
        %v1812 = vsel %vm1192, %v1805, 0.0
        %1813 = vadd.xlane.f32.xlu0 %v1812
        %v1814 = vpop.xlane.xlu0 %1813
        %v1815 = vrcp.pop %v1808
        %v1816 = vrcp.pop %v1811
        %v1817 = vrcp.pop %v1814
        %v1818 = vmul.f32 %v1801, %v1815
        %v1819 = vmul.f32 %v1803, %v1816
        %v1820 = vmul.f32 %v1805, %v1817
        %v1821 = vpack.c.bf16 %v1819, %v1818
        %v1822 = vpack.c.bf16 %v1820, %v1820
        %1823 = vrot.lane.b32.xlu0 %v1636, 56
        %v1824 = vpop.permute.xlu0 %1823
        %1825 = vrot.lane.b32.xlu0 %v1637, 56
        %v1826 = vpop.permute.xlu0 %1825
        %v1829 = vsel %vm1185, %v1821, 0
        %v1832 = vsel %vm1185, %v1822, 0
        %v1835 = vand.u32 %v1826, %v1235
        %1837 = vmatpush.bf16.msra.mxu0 0
        %1838 = vmatpush.bf16.msra.mxu0 0
        %1839 = vmatpush.bf16.msra.mxu0 0
        %1840 = vmatpush.bf16.msra.mxu0 0
        %1841 = vmatpush.bf16.msra.mxu0 0
        %1842 = vmatpush.bf16.msra.mxu0 0
        %1843 = vmatpush.bf16.msra.mxu0 %v1835
        %1844 = vmatpush.bf16.msra.mxu0 %v1824
        %1845 = vmatmul.bf16.gmra.mxu0 %v1829
        %v1846 = vpop.f32.mrf.mxu0
        %v1847 = vadd.f32 0.0, %v1846
        %v1848 = vpop.f32.mrf.mxu0
        %v1849 = vadd.f32 0.0, %v1848
        %1850 = vmatmul.bf16.gmra.mxu0 %v1832
        %v1851 = vpop.f32.mrf.mxu0
        %v1852 = vadd.f32 0.0, %v1851
        %v1853 = vpop.f32.mrf.mxu0
        %1854 = vdwg.mxu0
        %1858 = vrot.lane.b32.xlu0 %v1847, 8
        %v1859 = vpop.permute.xlu0 %1858
        %1860 = vrot.lane.b32.xlu0 %v1849, 8
        %v1861 = vpop.permute.xlu0 %1860
        %1862 = vrot.lane.b32.xlu0 %v1852, 8
        %v1863 = vpop.permute.xlu0 %1862
        %1867 = vst.msk [vmem:[#allocation3 + $0x18] sm:$0xff] %vm1381, %v1859
        %1868 = vst.msk [vmem:[#allocation3 + $0x20] sm:$0xff] %vm1381, %v1861
        %1869 = vst.msk [vmem:[#allocation3 + $0x28] sm:$0x1] %vm1384, %v1863
        %1870 = vrot.lane.b32.xlu0 %v1636, 112
        %v1871 = vpop.permute.xlu0 %1870
        %1872 = vrot.lane.b32.xlu0 %v1637, 112
        %v1873 = vpop.permute.xlu0 %1872
        %1874 = vrot.lane.b32.xlu0 %v1636, 80
        %v1875 = vpop.permute.xlu0 %1874
        %1876 = vrot.lane.b32.xlu0 %v1637, 80
        %v1877 = vpop.permute.xlu0 %1876
        %v1879 = vsel %vm1151, %v1871, 0
        %v1882 = vsel %vm1151, %v1873, 0
        %v1885 = vsel %vm1151, %v1875, 0
        %v1888 = vsel %vm1151, %v1877, 0
        %1890 = vmatpush.bf16.xpose.msra.mxu0 0
        %1891 = vmatpush.bf16.xpose.msra.mxu0 0
        %1892 = vmatpush.bf16.xpose.msra.mxu0 0
        %1893 = vmatpush.bf16.xpose.msra.mxu0 0
        %1894 = vmatpush.bf16.xpose.msra.mxu0 0
        %1895 = vmatpush.bf16.xpose.msra.mxu0 0
        %1896 = vmatpush.bf16.xpose.msra.mxu0 %v1888
        %1897 = vmatpush.bf16.xpose.msra.mxu0 %v1885
        %1898 = vmatmul.bf16.gmra.mxu0 %v1879
        %v1899 = vpop.f32.mrf.mxu0
        %v1900 = vadd.f32 0.0, %v1899
        %v1901 = vpop.f32.mrf.mxu0
        %v1902 = vadd.f32 0.0, %v1901
        %1903 = vmatmul.bf16.gmra.mxu0 %v1882
        %v1904 = vpop.f32.mrf.mxu0
        %v1905 = vadd.f32 0.0, %v1904
        %v1906 = vpop.f32.mrf.mxu0
        %1907 = vdwg.mxu0
        %v1908 = vmul.f32 %v1900, 0.35355338
        %v1909 = vmul.f32 %v1902, 0.35355338
        %v1910 = vmul.f32 %v1905, 0.35355338
        %v1911 = vsel %vm1185, %v1908, -inf
        %1912 = vmax.xlane.f32.xlu0 %v1911
        %v1913 = vpop.xlane.xlu0 %1912
        %v1914 = vsel %vm1185, %v1909, -inf
        %1915 = vmax.xlane.f32.xlu0 %v1914
        %v1916 = vpop.xlane.xlu0 %1915
        %v1917 = vsel %vm1192, %v1910, -inf
        %1918 = vmax.xlane.f32.xlu0 %v1917
        %v1919 = vpop.xlane.xlu0 %1918
        %v1920 = vsub.f32 %v1908, %v1913
        %v1921 = vsub.f32 %v1909, %v1916
        %v1922 = vsub.f32 %v1910, %v1919
        %v1923 = vmul.f32 %v1920, 1.442695
        %v1924 = vpow.pop %v1923
        %v1925 = vmul.f32 %v1921, 1.442695
        %v1926 = vpow.pop %v1925
        %v1927 = vmul.f32 %v1922, 1.442695
        %v1928 = vpow.pop %v1927
        %v1929 = vsel %vm1185, %v1924, 0.0
        %1930 = vadd.xlane.f32.xlu0 %v1929
        %v1931 = vpop.xlane.xlu0 %1930
        %v1932 = vsel %vm1185, %v1926, 0.0
        %1933 = vadd.xlane.f32.xlu0 %v1932
        %v1934 = vpop.xlane.xlu0 %1933
        %v1935 = vsel %vm1192, %v1928, 0.0
        %1936 = vadd.xlane.f32.xlu0 %v1935
        %v1937 = vpop.xlane.xlu0 %1936
        %v1938 = vrcp.pop %v1931
        %v1939 = vrcp.pop %v1934
        %v1940 = vrcp.pop %v1937
        %v1941 = vmul.f32 %v1924, %v1938
        %v1942 = vmul.f32 %v1926, %v1939
        %v1943 = vmul.f32 %v1928, %v1940
        %v1944 = vpack.c.bf16 %v1942, %v1941
        %v1945 = vpack.c.bf16 %v1943, %v1943
        %1946 = vrot.lane.b32.xlu0 %v1636, 48
        %v1947 = vpop.permute.xlu0 %1946
        %1948 = vrot.lane.b32.xlu0 %v1637, 48
        %v1949 = vpop.permute.xlu0 %1948
        %v1952 = vsel %vm1185, %v1944, 0
        %v1955 = vsel %vm1185, %v1945, 0
        %v1958 = vand.u32 %v1949, %v1235
        %1960 = vmatpush.bf16.msra.mxu0 0
        %1961 = vmatpush.bf16.msra.mxu0 0
        %1962 = vmatpush.bf16.msra.mxu0 0
        %1963 = vmatpush.bf16.msra.mxu0 0
        %1964 = vmatpush.bf16.msra.mxu0 0
        %1965 = vmatpush.bf16.msra.mxu0 0
        %1966 = vmatpush.bf16.msra.mxu0 %v1958
        %1967 = vmatpush.bf16.msra.mxu0 %v1947
        %1968 = vmatmul.bf16.gmra.mxu0 %v1952
        %v1969 = vpop.f32.mrf.mxu0
        %v1970 = vadd.f32 0.0, %v1969
        %v1971 = vpop.f32.mrf.mxu0
        %v1972 = vadd.f32 0.0, %v1971
        %1973 = vmatmul.bf16.gmra.mxu0 %v1955
        %v1974 = vpop.f32.mrf.mxu0
        %v1975 = vadd.f32 0.0, %v1974
        %v1976 = vpop.f32.mrf.mxu0
        %1977 = vdwg.mxu0
        %1981 = vrot.lane.b32.xlu0 %v1970, 16
        %v1982 = vpop.permute.xlu0 %1981
        %1983 = vrot.lane.b32.xlu0 %v1972, 16
        %v1984 = vpop.permute.xlu0 %1983
        %1985 = vrot.lane.b32.xlu0 %v1975, 16
        %v1986 = vpop.permute.xlu0 %1985
        %1990 = vst.msk [vmem:[#allocation3 + $0x18] sm:$0xff] %vm1506, %v1982
        %1991 = vst.msk [vmem:[#allocation3 + $0x20] sm:$0xff] %vm1506, %v1984
        %1992 = vst.msk [vmem:[#allocation3 + $0x28] sm:$0x1] %vm1509, %v1986
        %1993 = vrot.lane.b32.xlu0 %v1636, 104
        %v1994 = vpop.permute.xlu0 %1993
        %1995 = vrot.lane.b32.xlu0 %v1637, 104
        %v1996 = vpop.permute.xlu0 %1995
        %1997 = vrot.lane.b32.xlu0 %v1636, 72
        %v1998 = vpop.permute.xlu0 %1997
        %1999 = vrot.lane.b32.xlu0 %v1637, 72
        %v2000 = vpop.permute.xlu0 %1999
        %v2002 = vsel %vm1151, %v1994, 0
        %v2005 = vsel %vm1151, %v1996, 0
        %v2008 = vsel %vm1151, %v1998, 0
        %v2011 = vsel %vm1151, %v2000, 0
        %2013 = vmatpush.bf16.xpose.msra.mxu0 0
        %2014 = vmatpush.bf16.xpose.msra.mxu0 0
        %2015 = vmatpush.bf16.xpose.msra.mxu0 0
        %2016 = vmatpush.bf16.xpose.msra.mxu0 0
        %2017 = vmatpush.bf16.xpose.msra.mxu0 0
        %2018 = vmatpush.bf16.xpose.msra.mxu0 0
        %2019 = vmatpush.bf16.xpose.msra.mxu0 %v2011
        %2020 = vmatpush.bf16.xpose.msra.mxu0 %v2008
        %2021 = vmatmul.bf16.gmra.mxu0 %v2002
        %v2022 = vpop.f32.mrf.mxu0
        %v2023 = vadd.f32 0.0, %v2022
        %v2024 = vpop.f32.mrf.mxu0
        %v2025 = vadd.f32 0.0, %v2024
        %2026 = vmatmul.bf16.gmra.mxu0 %v2005
        %v2027 = vpop.f32.mrf.mxu0
        %v2028 = vadd.f32 0.0, %v2027
        %v2029 = vpop.f32.mrf.mxu0
        %2030 = vdwg.mxu0
        %v2031 = vmul.f32 %v2023, 0.35355338
        %v2032 = vmul.f32 %v2025, 0.35355338
        %v2033 = vmul.f32 %v2028, 0.35355338
        %v2034 = vsel %vm1185, %v2031, -inf
        %2035 = vmax.xlane.f32.xlu0 %v2034
        %v2036 = vpop.xlane.xlu0 %2035
        %v2037 = vsel %vm1185, %v2032, -inf
        %2038 = vmax.xlane.f32.xlu0 %v2037
        %v2039 = vpop.xlane.xlu0 %2038
        %v2040 = vsel %vm1192, %v2033, -inf
        %2041 = vmax.xlane.f32.xlu0 %v2040
        %v2042 = vpop.xlane.xlu0 %2041
        %v2043 = vsub.f32 %v2031, %v2036
        %v2044 = vsub.f32 %v2032, %v2039
        %v2045 = vsub.f32 %v2033, %v2042
        %v2046 = vmul.f32 %v2043, 1.442695
        %v2047 = vpow.pop %v2046
        %v2048 = vmul.f32 %v2044, 1.442695
        %v2049 = vpow.pop %v2048
        %v2050 = vmul.f32 %v2045, 1.442695
        %v2051 = vpow.pop %v2050
        %v2052 = vsel %vm1185, %v2047, 0.0
        %2053 = vadd.xlane.f32.xlu0 %v2052
        %v2054 = vpop.xlane.xlu0 %2053
        %v2055 = vsel %vm1185, %v2049, 0.0
        %2056 = vadd.xlane.f32.xlu0 %v2055
        %v2057 = vpop.xlane.xlu0 %2056
        %v2058 = vsel %vm1192, %v2051, 0.0
        %2059 = vadd.xlane.f32.xlu0 %v2058
        %v2060 = vpop.xlane.xlu0 %2059
        %v2061 = vrcp.pop %v2054
        %v2062 = vrcp.pop %v2057
        %v2063 = vrcp.pop %v2060
        %v2064 = vmul.f32 %v2047, %v2061
        %v2065 = vmul.f32 %v2049, %v2062
        %v2066 = vmul.f32 %v2051, %v2063
        %v2067 = vpack.c.bf16 %v2065, %v2064
        %v2068 = vpack.c.bf16 %v2066, %v2066
        %2069 = vrot.lane.b32.xlu0 %v1636, 40
        %v2070 = vpop.permute.xlu0 %2069
        %2071 = vrot.lane.b32.xlu0 %v1637, 40
        %v2072 = vpop.permute.xlu0 %2071
        %v2075 = vsel %vm1185, %v2067, 0
        %v2078 = vsel %vm1185, %v2068, 0
        %v2081 = vand.u32 %v2072, %v1235
        %2083 = vmatpush.bf16.msra.mxu0 0
        %2084 = vmatpush.bf16.msra.mxu0 0
        %2085 = vmatpush.bf16.msra.mxu0 0
        %2086 = vmatpush.bf16.msra.mxu0 0
        %2087 = vmatpush.bf16.msra.mxu0 0
        %2088 = vmatpush.bf16.msra.mxu0 0
        %2089 = vmatpush.bf16.msra.mxu0 %v2081
        %2090 = vmatpush.bf16.msra.mxu0 %v2070
        %2091 = vmatmul.bf16.gmra.mxu0 %v2075
        %v2092 = vpop.f32.mrf.mxu0
        %v2093 = vadd.f32 0.0, %v2092
        %v2094 = vpop.f32.mrf.mxu0
        %v2095 = vadd.f32 0.0, %v2094
        %2096 = vmatmul.bf16.gmra.mxu0 %v2078
        %v2097 = vpop.f32.mrf.mxu0
        %v2098 = vadd.f32 0.0, %v2097
        %v2099 = vpop.f32.mrf.mxu0
        %2100 = vdwg.mxu0
        %2104 = vrot.lane.b32.xlu0 %v2093, 24
        %v2105 = vpop.permute.xlu0 %2104
        %2106 = vrot.lane.b32.xlu0 %v2095, 24
        %v2107 = vpop.permute.xlu0 %2106
        %2108 = vrot.lane.b32.xlu0 %v2098, 24
        %v2109 = vpop.permute.xlu0 %2108
        %2113 = vst.msk [vmem:[#allocation3 + $0x18] sm:$0xff] %vm1631, %v2105
        %2114 = vst.msk [vmem:[#allocation3 + $0x20] sm:$0xff] %vm1631, %v2107
        %2115 = vst.msk [vmem:[#allocation3 + $0x28] sm:$0x1] %vm1634, %v2109
        %v2116 = vld [vmem:[#allocation3] sm:$0xff]
        %v2117 = vld [vmem:[#allocation3 + $0x8] sm:$0xff]
        %v2118 = vld [vmem:[#allocation3 + $0x10] sm:$0xff]
        %v2119 = vld [vmem:[#allocation3 + $0x18] sm:$0xff]
        %v2120 = vld [vmem:[#allocation3 + $0x20] sm:$0xff]
        %v2121 = vld [vmem:[#allocation3 + $0x28] sm:$0xff]
        %v2122 = vadd.f32 %v921, %v2116
        %v2123 = vadd.f32 %v922, %v2117
        %v2124 = vadd.f32 %v923, %v2118
        %v2125 = vadd.f32 %v924, %v2119
        %v2126 = vadd.f32 %v925, %v2120
        %v2127 = vadd.f32 %v926, %v2121
        %v2128 = vld [vmem:[%s749] sm:$0x1]
        %v2129 = vld [vmem:[%s752] sm:$0x1]
        %v2130 = vsel %vm929, %v2122, 0.0
        %2131 = vadd.xlane.f32.xlu0 %v2130
        %v2132 = vpop.xlane.xlu0 %2131
        %v2133 = vsel %vm929, %v2123, 0.0
        %2134 = vadd.xlane.f32.xlu0 %v2133
        %v2135 = vpop.xlane.xlu0 %2134
        %v2136 = vsel %vm929, %v2124, 0.0
        %2137 = vadd.xlane.f32.xlu0 %v2136
        %v2138 = vpop.xlane.xlu0 %2137
        %v2139 = vsel %vm929, %v2125, 0.0
        %2140 = vadd.xlane.f32.xlu0 %v2139
        %v2141 = vpop.xlane.xlu0 %2140
        %v2142 = vsel %vm929, %v2126, 0.0
        %2143 = vadd.xlane.f32.xlu0 %v2142
        %v2144 = vpop.xlane.xlu0 %2143
        %v2145 = vsel %vm929, %v2127, 0.0
        %2146 = vadd.xlane.f32.xlu0 %v2145
        %v2147 = vpop.xlane.xlu0 %2146
        %v2148 = vmul.f32 %v2132, %v954
        %v2149 = vmul.f32 %v2135, %v954
        %v2150 = vmul.f32 %v2138, %v954
        %v2151 = vmul.f32 %v2141, %v954
        %v2152 = vmul.f32 %v2144, %v954
        %v2153 = vmul.f32 %v2147, %v954
        %v2154 = vsub.f32 %v2122, %v2148
        %v2155 = vsub.f32 %v2123, %v2149
        %v2156 = vsub.f32 %v2124, %v2150
        %v2157 = vsub.f32 %v2125, %v2151
        %v2158 = vsub.f32 %v2126, %v2152
        %v2159 = vsub.f32 %v2127, %v2153
        %v2160 = vmul.f32 %v2154, %v2154
        %v2161 = vmul.f32 %v2155, %v2155
        %v2162 = vmul.f32 %v2156, %v2156
        %v2163 = vmul.f32 %v2157, %v2157
        %v2164 = vmul.f32 %v2158, %v2158
        %v2165 = vmul.f32 %v2159, %v2159
        %v2166 = vsel %vm929, %v2160, 0.0
        %2167 = vadd.xlane.f32.xlu0 %v2166
        %v2168 = vpop.xlane.xlu0 %2167
        %v2169 = vsel %vm929, %v2161, 0.0
        %2170 = vadd.xlane.f32.xlu0 %v2169
        %v2171 = vpop.xlane.xlu0 %2170
        %v2172 = vsel %vm929, %v2162, 0.0
        %2173 = vadd.xlane.f32.xlu0 %v2172
        %v2174 = vpop.xlane.xlu0 %2173
        %v2175 = vsel %vm929, %v2163, 0.0
        %2176 = vadd.xlane.f32.xlu0 %v2175
        %v2177 = vpop.xlane.xlu0 %2176
        %v2178 = vsel %vm929, %v2164, 0.0
        %2179 = vadd.xlane.f32.xlu0 %v2178
        %v2180 = vpop.xlane.xlu0 %2179
        %v2181 = vsel %vm929, %v2165, 0.0
        %2182 = vadd.xlane.f32.xlu0 %v2181
        %v2183 = vpop.xlane.xlu0 %2182
        %v2184 = vmul.f32 %v2168, %v954
        %v2185 = vmul.f32 %v2171, %v954
        %v2186 = vmul.f32 %v2174, %v954
        %v2187 = vmul.f32 %v2177, %v954
        %v2188 = vmul.f32 %v2180, %v954
        %v2189 = vmul.f32 %v2183, %v954
        %v2190 = vadd.f32 %v2184, 1e-05
        %v2191 = vadd.f32 %v2185, 1e-05
        %v2192 = vadd.f32 %v2186, 1e-05
        %v2193 = vadd.f32 %v2187, 1e-05
        %v2194 = vadd.f32 %v2188, 1e-05
        %v2195 = vadd.f32 %v2189, 1e-05
        %v2196 = vrsqrt.pop %v2190
        %v2197 = vmul.f32 %v2196, %v2190
        %v2198 = vmul.f32 %v2197, %v2196
        %v2199 = vmul.f32 0.5, %v2198
        %v2200 = vsub.f32 1.5, %v2199
        %v2201 = vmul.f32 %v2196, %v2200
        %vm2202 = vweird.f32 %v2190
        %vm2203 = vweird.f32 %v2196
        %vm2204 = vmor %vm2202, %vm2203
        %v2205 = vsel %vm2204, %v2196, %v2201
        %v2206 = vrsqrt.pop %v2191
        %v2207 = vmul.f32 %v2206, %v2191
        %v2208 = vmul.f32 %v2207, %v2206
        %v2209 = vmul.f32 0.5, %v2208
        %v2210 = vsub.f32 1.5, %v2209
        %v2211 = vmul.f32 %v2206, %v2210
        %vm2212 = vweird.f32 %v2191
        %vm2213 = vweird.f32 %v2206
        %vm2214 = vmor %vm2212, %vm2213
        %v2215 = vsel %vm2214, %v2206, %v2211
        %v2216 = vrsqrt.pop %v2192
        %v2217 = vmul.f32 %v2216, %v2192
        %v2218 = vmul.f32 %v2217, %v2216
        %v2219 = vmul.f32 0.5, %v2218
        %v2220 = vsub.f32 1.5, %v2219
        %v2221 = vmul.f32 %v2216, %v2220
        %vm2222 = vweird.f32 %v2192
        %vm2223 = vweird.f32 %v2216
        %vm2224 = vmor %vm2222, %vm2223
        %v2225 = vsel %vm2224, %v2216, %v2221
        %v2226 = vrsqrt.pop %v2193
        %v2227 = vmul.f32 %v2226, %v2193
        %v2228 = vmul.f32 %v2227, %v2226
        %v2229 = vmul.f32 0.5, %v2228
        %v2230 = vsub.f32 1.5, %v2229
        %v2231 = vmul.f32 %v2226, %v2230
        %vm2232 = vweird.f32 %v2193
        %vm2233 = vweird.f32 %v2226
        %vm2234 = vmor %vm2232, %vm2233
        %v2235 = vsel %vm2234, %v2226, %v2231
        %v2236 = vrsqrt.pop %v2194
        %v2237 = vmul.f32 %v2236, %v2194
        %v2238 = vmul.f32 %v2237, %v2236
        %v2239 = vmul.f32 0.5, %v2238
        %v2240 = vsub.f32 1.5, %v2239
        %v2241 = vmul.f32 %v2236, %v2240
        %vm2242 = vweird.f32 %v2194
        %vm2243 = vweird.f32 %v2236
        %vm2244 = vmor %vm2242, %vm2243
        %v2245 = vsel %vm2244, %v2236, %v2241
        %v2246 = vrsqrt.pop %v2195
        %v2247 = vmul.f32 %v2246, %v2195
        %v2248 = vmul.f32 %v2247, %v2246
        %v2249 = vmul.f32 0.5, %v2248
        %v2250 = vsub.f32 1.5, %v2249
        %v2251 = vmul.f32 %v2246, %v2250
        %vm2252 = vweird.f32 %v2195
        %vm2253 = vweird.f32 %v2246
        %vm2254 = vmor %vm2252, %vm2253
        %v2255 = vsel %vm2254, %v2246, %v2251
        %v2256 = vmul.f32 %v2154, %v2205
        %v2257 = vmul.f32 %v2155, %v2215
        %v2258 = vmul.f32 %v2156, %v2225
        %v2259 = vmul.f32 %v2157, %v2235
        %v2260 = vmul.f32 %v2158, %v2245
        %v2261 = vmul.f32 %v2159, %v2255
        %v2263 = vperm.slane %v2128, 0
        %v2265 = vmul.f32 %v2256, %v2263
        %v2266 = vmul.f32 %v2257, %v2263
        %v2267 = vmul.f32 %v2258, %v2263
        %v2268 = vmul.f32 %v2259, %v2263
        %v2269 = vmul.f32 %v2260, %v2263
        %v2270 = vmul.f32 %v2261, %v2263
        %v2272 = vperm.slane %v2129, 0
        %v2274 = vadd.f32 %v2265, %v2272
        %v2275 = vadd.f32 %v2266, %v2272
        %v2276 = vadd.f32 %v2267, %v2272
        %v2277 = vadd.f32 %v2268, %v2272
        %v2278 = vadd.f32 %v2269, %v2272
        %v2279 = vadd.f32 %v2270, %v2272
        %v2280 = vpack.c.bf16 %v2275, %v2274
        %v2281 = vpack.c.bf16 %v2277, %v2276
        %v2282 = vpack.c.bf16 %v2279, %v2278
        %v2283 = vld [vmem:[%s757] sm:$0xf]
        %v2284 = vld [vmem:[%s757 + $0x4] sm:$0xf]
        %v2285 = vld [vmem:[%s757 + $0x8] sm:$0xf]
        %v2286 = vld [vmem:[%s757 + $0xc] sm:$0xf]
        %v2287 = vld [vmem:[%s760] sm:$0x1]
        %v2289 = vperm.slane %v2287, 0
        %v2295 = vunpack.c.l.b16 %v2283
        %v2296 = vunpack.c.l.b16 %v2284
        %v2297 = vunpack.c.l.b16 %v2285
        %v2298 = vunpack.c.l.b16 %v2286
        %v2299 = vpack.c.b16 %v2296, %v2295
        %v2300 = vpack.c.b16 %v2298, %v2297
        %v2304 = vsel %vm929, %v2280, 0
        %v2307 = vsel %vm929, %v2281, 0
        %v2310 = vsel %vm929, %v2282, 0
        %2312 = vmatpush.bf16.msra.mxu0 0
        %2313 = vmatpush.bf16.msra.mxu0 0
        %2314 = vmatpush.bf16.msra.mxu0 0
        %2315 = vmatpush.bf16.msra.mxu0 0
        %2316 = vmatpush.bf16.msra.mxu0 0
        %2317 = vmatpush.bf16.msra.mxu0 0
        %2318 = vmatpush.bf16.msra.mxu0 %v2300
        %2319 = vmatpush.bf16.msra.mxu0 %v2299
        %2320 = vmatmul.bf16.gmra.mxu0 %v2304
        %v2321 = vpop.f32.mrf.mxu0
        %v2322 = vadd.f32 %v2289, %v2321
        %v2323 = vpop.f32.mrf.mxu0
        %v2324 = vadd.f32 %v2289, %v2323
        %2325 = vmatmul.bf16.gmra.mxu0 %v2307
        %v2326 = vpop.f32.mrf.mxu0
        %v2327 = vadd.f32 %v2289, %v2326
        %v2328 = vpop.f32.mrf.mxu0
        %v2329 = vadd.f32 %v2289, %v2328
        %2330 = vmatmul.bf16.gmra.mxu0 %v2310
        %v2331 = vpop.f32.mrf.mxu0
        %v2332 = vadd.f32 %v2289, %v2331
        %v2333 = vpop.f32.mrf.mxu0
        %v2334 = vadd.f32 %v2289, %v2333
        %2335 = vdwg.mxu0
        %v2336 = vmul.f32 %v2322, 0.5
        %v2337 = vmul.f32 %v2324, 0.5
        %v2338 = vmul.f32 %v2327, 0.5
        %v2339 = vmul.f32 %v2329, 0.5
        %v2340 = vmul.f32 %v2332, 0.5
        %v2341 = vmul.f32 %v2334, 0.5
        %v2342 = vmul.f32 %v2322, 0.70710677
        %v2343 = vmul.f32 %v2324, 0.70710677
        %v2344 = vmul.f32 %v2327, 0.70710677
        %v2345 = vmul.f32 %v2329, 0.70710677
        %v2346 = vmul.f32 %v2332, 0.70710677
        %v2347 = vmul.f32 %v2334, 0.70710677
        %v2348 = vmul.f32 %v2342, %v2342
        %v2349 = vmin.f32 16.0, %v2348
        %v2350 = vmul.f32 %v2349, 2.1237322e-06
        %v2351 = vadd.f32 %v2350, 0.00028619796
        %v2352 = vmul.f32 %v2349, %v2351
        %v2353 = vadd.f32 %v2352, 0.0036580483
        %v2354 = vmul.f32 %v2349, %v2353
        %v2355 = vadd.f32 %v2354, 0.05243302
        %v2356 = vmul.f32 %v2349, %v2355
        %v2357 = vadd.f32 %v2356, 0.18741608
        %v2358 = vmul.f32 %v2349, %v2357
        %v2359 = vadd.f32 %v2358, 1.1283791
        %v2360 = vmul.f32 %v2342, %v2359
        %v2361 = vmul.f32 %v2349, 3.8918573e-05
        %v2362 = vadd.f32 %v2361, 0.001143296
        %v2363 = vmul.f32 %v2349, %v2362
        %v2364 = vadd.f32 %v2363, 0.014752088
        %v2365 = vmul.f32 %v2349, %v2364
        %v2366 = vadd.f32 %v2365, 0.112945676
        %v2367 = vmul.f32 %v2349, %v2366
        %v2368 = vadd.f32 %v2367, 0.4994258
        %v2369 = vmul.f32 %v2349, %v2368
        %v2370 = vadd.f32 %v2369, 1.0
        %v2371 = vrcp.pop %v2370
        %v2372 = vmul.f32 %v2370, %v2371
        %v2373 = vsub.f32 1.0, %v2372
        %v2374 = vmul.f32 %v2371, %v2373
        %v2375 = vadd.f32 %v2371, %v2374
        %vm2376 = vweird.f32 %v2370
        %vm2377 = vweird.f32 %v2371
        %vm2378 = vmor %vm2376, %vm2377
        %v2379 = vsel %vm2378, %v2371, %v2375
        %v2380 = vand.u32 2147483647, %v2370
        %vm2381 = vcmp.eq.f32.partialorder %v2380, 8.507059e+37
        %v2382 = vand.u32 %v2370, 2147483648
        %v2383 = vor.u32 1.1754944e-38, %v2382
        %v2384 = vsel %vm2381, %v2383, %v2379
        %v2385 = vmul.f32 %v2360, %v2384
        %v2386 = vmin.f32 %v2385, 1.0
        %v2387 = vmax.f32 %v2386, -1.0
        %v2388 = vmul.f32 %v2343, %v2343
        %v2389 = vmin.f32 16.0, %v2388
        %v2390 = vmul.f32 %v2389, 2.1237322e-06
        %v2391 = vadd.f32 %v2390, 0.00028619796
        %v2392 = vmul.f32 %v2389, %v2391
        %v2393 = vadd.f32 %v2392, 0.0036580483
        %v2394 = vmul.f32 %v2389, %v2393
        %v2395 = vadd.f32 %v2394, 0.05243302
        %v2396 = vmul.f32 %v2389, %v2395
        %v2397 = vadd.f32 %v2396, 0.18741608
        %v2398 = vmul.f32 %v2389, %v2397
        %v2399 = vadd.f32 %v2398, 1.1283791
        %v2400 = vmul.f32 %v2343, %v2399
        %v2401 = vmul.f32 %v2389, 3.8918573e-05
        %v2402 = vadd.f32 %v2401, 0.001143296
        %v2403 = vmul.f32 %v2389, %v2402
        %v2404 = vadd.f32 %v2403, 0.014752088
        %v2405 = vmul.f32 %v2389, %v2404
        %v2406 = vadd.f32 %v2405, 0.112945676
        %v2407 = vmul.f32 %v2389, %v2406
        %v2408 = vadd.f32 %v2407, 0.4994258
        %v2409 = vmul.f32 %v2389, %v2408
        %v2410 = vadd.f32 %v2409, 1.0
        %v2411 = vrcp.pop %v2410
        %v2412 = vmul.f32 %v2410, %v2411
        %v2413 = vsub.f32 1.0, %v2412
        %v2414 = vmul.f32 %v2411, %v2413
        %v2415 = vadd.f32 %v2411, %v2414
        %vm2416 = vweird.f32 %v2410
        %vm2417 = vweird.f32 %v2411
        %vm2418 = vmor %vm2416, %vm2417
        %v2419 = vsel %vm2418, %v2411, %v2415
        %v2420 = vand.u32 2147483647, %v2410
        %vm2421 = vcmp.eq.f32.partialorder %v2420, 8.507059e+37
        %v2422 = vand.u32 %v2410, 2147483648
        %v2423 = vor.u32 1.1754944e-38, %v2422
        %v2424 = vsel %vm2421, %v2423, %v2419
        %v2425 = vmul.f32 %v2400, %v2424
        %v2426 = vmin.f32 %v2425, 1.0
        %v2427 = vmax.f32 %v2426, -1.0
        %v2428 = vmul.f32 %v2344, %v2344
        %v2429 = vmin.f32 16.0, %v2428
        %v2430 = vmul.f32 %v2429, 2.1237322e-06
        %v2431 = vadd.f32 %v2430, 0.00028619796
        %v2432 = vmul.f32 %v2429, %v2431
        %v2433 = vadd.f32 %v2432, 0.0036580483
        %v2434 = vmul.f32 %v2429, %v2433
        %v2435 = vadd.f32 %v2434, 0.05243302
        %v2436 = vmul.f32 %v2429, %v2435
        %v2437 = vadd.f32 %v2436, 0.18741608
        %v2438 = vmul.f32 %v2429, %v2437
        %v2439 = vadd.f32 %v2438, 1.1283791
        %v2440 = vmul.f32 %v2344, %v2439
        %v2441 = vmul.f32 %v2429, 3.8918573e-05
        %v2442 = vadd.f32 %v2441, 0.001143296
        %v2443 = vmul.f32 %v2429, %v2442
        %v2444 = vadd.f32 %v2443, 0.014752088
        %v2445 = vmul.f32 %v2429, %v2444
        %v2446 = vadd.f32 %v2445, 0.112945676
        %v2447 = vmul.f32 %v2429, %v2446
        %v2448 = vadd.f32 %v2447, 0.4994258
        %v2449 = vmul.f32 %v2429, %v2448
        %v2450 = vadd.f32 %v2449, 1.0
        %v2451 = vrcp.pop %v2450
        %v2452 = vmul.f32 %v2450, %v2451
        %v2453 = vsub.f32 1.0, %v2452
        %v2454 = vmul.f32 %v2451, %v2453
        %v2455 = vadd.f32 %v2451, %v2454
        %vm2456 = vweird.f32 %v2450
        %vm2457 = vweird.f32 %v2451
        %vm2458 = vmor %vm2456, %vm2457
        %v2459 = vsel %vm2458, %v2451, %v2455
        %v2460 = vand.u32 2147483647, %v2450
        %vm2461 = vcmp.eq.f32.partialorder %v2460, 8.507059e+37
        %v2462 = vand.u32 %v2450, 2147483648
        %v2463 = vor.u32 1.1754944e-38, %v2462
        %v2464 = vsel %vm2461, %v2463, %v2459
        %v2465 = vmul.f32 %v2440, %v2464
        %v2466 = vmin.f32 %v2465, 1.0
        %v2467 = vmax.f32 %v2466, -1.0
        %v2468 = vmul.f32 %v2345, %v2345
        %v2469 = vmin.f32 16.0, %v2468
        %v2470 = vmul.f32 %v2469, 2.1237322e-06
        %v2471 = vadd.f32 %v2470, 0.00028619796
        %v2472 = vmul.f32 %v2469, %v2471
        %v2473 = vadd.f32 %v2472, 0.0036580483
        %v2474 = vmul.f32 %v2469, %v2473
        %v2475 = vadd.f32 %v2474, 0.05243302
        %v2476 = vmul.f32 %v2469, %v2475
        %v2477 = vadd.f32 %v2476, 0.18741608
        %v2478 = vmul.f32 %v2469, %v2477
        %v2479 = vadd.f32 %v2478, 1.1283791
        %v2480 = vmul.f32 %v2345, %v2479
        %v2481 = vmul.f32 %v2469, 3.8918573e-05
        %v2482 = vadd.f32 %v2481, 0.001143296
        %v2483 = vmul.f32 %v2469, %v2482
        %v2484 = vadd.f32 %v2483, 0.014752088
        %v2485 = vmul.f32 %v2469, %v2484
        %v2486 = vadd.f32 %v2485, 0.112945676
        %v2487 = vmul.f32 %v2469, %v2486
        %v2488 = vadd.f32 %v2487, 0.4994258
        %v2489 = vmul.f32 %v2469, %v2488
        %v2490 = vadd.f32 %v2489, 1.0
        %v2491 = vrcp.pop %v2490
        %v2492 = vmul.f32 %v2490, %v2491
        %v2493 = vsub.f32 1.0, %v2492
        %v2494 = vmul.f32 %v2491, %v2493
        %v2495 = vadd.f32 %v2491, %v2494
        %vm2496 = vweird.f32 %v2490
        %vm2497 = vweird.f32 %v2491
        %vm2498 = vmor %vm2496, %vm2497
        %v2499 = vsel %vm2498, %v2491, %v2495
        %v2500 = vand.u32 2147483647, %v2490
        %vm2501 = vcmp.eq.f32.partialorder %v2500, 8.507059e+37
        %v2502 = vand.u32 %v2490, 2147483648
        %v2503 = vor.u32 1.1754944e-38, %v2502
        %v2504 = vsel %vm2501, %v2503, %v2499
        %v2505 = vmul.f32 %v2480, %v2504
        %v2506 = vmin.f32 %v2505, 1.0
        %v2507 = vmax.f32 %v2506, -1.0
        %v2508 = vmul.f32 %v2346, %v2346
        %v2509 = vmin.f32 16.0, %v2508
        %v2510 = vmul.f32 %v2509, 2.1237322e-06
        %v2511 = vadd.f32 %v2510, 0.00028619796
        %v2512 = vmul.f32 %v2509, %v2511
        %v2513 = vadd.f32 %v2512, 0.0036580483
        %v2514 = vmul.f32 %v2509, %v2513
        %v2515 = vadd.f32 %v2514, 0.05243302
        %v2516 = vmul.f32 %v2509, %v2515
        %v2517 = vadd.f32 %v2516, 0.18741608
        %v2518 = vmul.f32 %v2509, %v2517
        %v2519 = vadd.f32 %v2518, 1.1283791
        %v2520 = vmul.f32 %v2346, %v2519
        %v2521 = vmul.f32 %v2509, 3.8918573e-05
        %v2522 = vadd.f32 %v2521, 0.001143296
        %v2523 = vmul.f32 %v2509, %v2522
        %v2524 = vadd.f32 %v2523, 0.014752088
        %v2525 = vmul.f32 %v2509, %v2524
        %v2526 = vadd.f32 %v2525, 0.112945676
        %v2527 = vmul.f32 %v2509, %v2526
        %v2528 = vadd.f32 %v2527, 0.4994258
        %v2529 = vmul.f32 %v2509, %v2528
        %v2530 = vadd.f32 %v2529, 1.0
        %v2531 = vrcp.pop %v2530
        %v2532 = vmul.f32 %v2530, %v2531
        %v2533 = vsub.f32 1.0, %v2532
        %v2534 = vmul.f32 %v2531, %v2533
        %v2535 = vadd.f32 %v2531, %v2534
        %vm2536 = vweird.f32 %v2530
        %vm2537 = vweird.f32 %v2531
        %vm2538 = vmor %vm2536, %vm2537
        %v2539 = vsel %vm2538, %v2531, %v2535
        %v2540 = vand.u32 2147483647, %v2530
        %vm2541 = vcmp.eq.f32.partialorder %v2540, 8.507059e+37
        %v2542 = vand.u32 %v2530, 2147483648
        %v2543 = vor.u32 1.1754944e-38, %v2542
        %v2544 = vsel %vm2541, %v2543, %v2539
        %v2545 = vmul.f32 %v2520, %v2544
        %v2546 = vmin.f32 %v2545, 1.0
        %v2547 = vmax.f32 %v2546, -1.0
        %v2548 = vmul.f32 %v2347, %v2347
        %v2549 = vmin.f32 16.0, %v2548
        %v2550 = vmul.f32 %v2549, 2.1237322e-06
        %v2551 = vadd.f32 %v2550, 0.00028619796
        %v2552 = vmul.f32 %v2549, %v2551
        %v2553 = vadd.f32 %v2552, 0.0036580483
        %v2554 = vmul.f32 %v2549, %v2553
        %v2555 = vadd.f32 %v2554, 0.05243302
        %v2556 = vmul.f32 %v2549, %v2555
        %v2557 = vadd.f32 %v2556, 0.18741608
        %v2558 = vmul.f32 %v2549, %v2557
        %v2559 = vadd.f32 %v2558, 1.1283791
        %v2560 = vmul.f32 %v2347, %v2559
        %v2561 = vmul.f32 %v2549, 3.8918573e-05
        %v2562 = vadd.f32 %v2561, 0.001143296
        %v2563 = vmul.f32 %v2549, %v2562
        %v2564 = vadd.f32 %v2563, 0.014752088
        %v2565 = vmul.f32 %v2549, %v2564
        %v2566 = vadd.f32 %v2565, 0.112945676
        %v2567 = vmul.f32 %v2549, %v2566
        %v2568 = vadd.f32 %v2567, 0.4994258
        %v2569 = vmul.f32 %v2549, %v2568
        %v2570 = vadd.f32 %v2569, 1.0
        %v2571 = vrcp.pop %v2570
        %v2572 = vmul.f32 %v2570, %v2571
        %v2573 = vsub.f32 1.0, %v2572
        %v2574 = vmul.f32 %v2571, %v2573
        %v2575 = vadd.f32 %v2571, %v2574
        %vm2576 = vweird.f32 %v2570
        %vm2577 = vweird.f32 %v2571
        %vm2578 = vmor %vm2576, %vm2577
        %v2579 = vsel %vm2578, %v2571, %v2575
        %v2580 = vand.u32 2147483647, %v2570
        %vm2581 = vcmp.eq.f32.partialorder %v2580, 8.507059e+37
        %v2582 = vand.u32 %v2570, 2147483648
        %v2583 = vor.u32 1.1754944e-38, %v2582
        %v2584 = vsel %vm2581, %v2583, %v2579
        %v2585 = vmul.f32 %v2560, %v2584
        %v2586 = vmin.f32 %v2585, 1.0
        %v2587 = vmax.f32 %v2586, -1.0
        %v2588 = vadd.f32 %v2387, 1.0
        %v2589 = vadd.f32 %v2427, 1.0
        %v2590 = vadd.f32 %v2467, 1.0
        %v2591 = vadd.f32 %v2507, 1.0
        %v2592 = vadd.f32 %v2547, 1.0
        %v2593 = vadd.f32 %v2587, 1.0
        %v2594 = vmul.f32 %v2336, %v2588
        %v2595 = vmul.f32 %v2337, %v2589
        %v2596 = vmul.f32 %v2338, %v2590
        %v2597 = vmul.f32 %v2339, %v2591
        %v2598 = vmul.f32 %v2340, %v2592
        %v2599 = vmul.f32 %v2341, %v2593
        %v2600 = vpack.c.bf16 %v2595, %v2594
        %v2601 = vpack.c.bf16 %v2597, %v2596
        %v2602 = vpack.c.bf16 %v2599, %v2598
        %v2603 = vld [vmem:[%s765] sm:$0xf]
        %v2604 = vld [vmem:[%s765 + $0x4] sm:$0xf]
        %v2605 = vld [vmem:[%s765 + $0x8] sm:$0xf]
        %v2606 = vld [vmem:[%s765 + $0xc] sm:$0xf]
        %v2607 = vld [vmem:[%s765 + $0x10] sm:$0xf]
        %v2608 = vld [vmem:[%s765 + $0x14] sm:$0xf]
        %v2609 = vld [vmem:[%s765 + $0x18] sm:$0xf]
        %v2610 = vld [vmem:[%s765 + $0x1c] sm:$0xf]
        %v2619 = vunpack.c.l.b16 %v2603
        %v2620 = vunpack.c.l.b16 %v2604
        %v2621 = vunpack.c.l.b16 %v2605
        %v2622 = vunpack.c.l.b16 %v2606
        %v2623 = vunpack.c.l.b16 %v2607
        %v2624 = vunpack.c.l.b16 %v2608
        %v2625 = vunpack.c.l.b16 %v2609
        %v2626 = vunpack.c.l.b16 %v2610
        %v2627 = vpack.c.b16 %v2620, %v2619
        %v2628 = vpack.c.b16 %v2622, %v2621
        %v2629 = vpack.c.b16 %v2624, %v2623
        %v2630 = vpack.c.b16 %v2626, %v2625
        %vm2635 = vcmask 523264
        %v2637 = vsel %vm2635, %v2600, 0
        %v2640 = vsel %vm2635, %v2601, 0
        %v2643 = vsel %vm2635, %v2602, 0
        %2645 = vmatpush.bf16.msra.mxu0 0
        %2646 = vmatpush.bf16.msra.mxu0 0
        %2647 = vmatpush.bf16.msra.mxu0 0
        %2648 = vmatpush.bf16.msra.mxu0 0
        %2649 = vmatpush.bf16.msra.mxu0 %v2630
        %2650 = vmatpush.bf16.msra.mxu0 %v2629
        %2651 = vmatpush.bf16.msra.mxu0 %v2628
        %2652 = vmatpush.bf16.msra.mxu0 %v2627
        %2653 = vmatmul.bf16.gmra.mxu0 %v2637
        %v2654 = vpop.f32.mrf.mxu0
        %v2655 = vadd.f32 0.0, %v2654
        %v2656 = vpop.f32.mrf.mxu0
        %v2657 = vadd.f32 0.0, %v2656
        %2658 = vmatmul.bf16.gmra.mxu0 %v2640
        %v2659 = vpop.f32.mrf.mxu0
        %v2660 = vadd.f32 0.0, %v2659
        %v2661 = vpop.f32.mrf.mxu0
        %v2662 = vadd.f32 0.0, %v2661
        %2663 = vmatmul.bf16.gmra.mxu0 %v2643
        %v2664 = vpop.f32.mrf.mxu0
        %v2665 = vadd.f32 0.0, %v2664
        %v2666 = vpop.f32.mrf.mxu0
        %v2667 = vadd.f32 0.0, %v2666
        %2668 = vdwg.mxu0
        %v2669 = vadd.f32 %v2122, %v2655
        %v2670 = vadd.f32 %v2123, %v2657
        %v2671 = vadd.f32 %v2124, %v2660
        %v2672 = vadd.f32 %v2125, %v2662
        %v2673 = vadd.f32 %v2126, %v2665
        %v2674 = vadd.f32 %v2127, %v2667
        %v2675 = vld [vmem:[%s768] sm:$0x1]
        %v2677 = vperm.slane %v2675, 0
        %v2679 = vadd.f32 %v2669, %v2677
        %v2680 = vadd.f32 %v2670, %v2677
        %v2681 = vadd.f32 %v2671, %v2677
        %v2682 = vadd.f32 %v2672, %v2677
        %v2683 = vadd.f32 %v2673, %v2677
        %v2684 = vadd.f32 %v2674, %v2677
        %2685 = vst.msk [vmem:[#allocation2] sm:$0xff] %vm929, %v2679
        %2686 = vst.msk [vmem:[#allocation2 + $0x8] sm:$0xff] %vm929, %v2680
        %2687 = vst.msk [vmem:[#allocation2 + $0x10] sm:$0xff] %vm929, %v2681
        %2688 = vst.msk [vmem:[#allocation2 + $0x18] sm:$0xff] %vm929, %v2682
        %2689 = vst.msk [vmem:[#allocation2 + $0x20] sm:$0xff] %vm929, %v2683
        %2690 = vst.msk [vmem:[#allocation2 + $0x28] sm:$0xff] %vm929, %v2684
        %p2691 = scmp.eq.s32.totalorder %s36, 1
        // Predicated region
        $region101: #{vit_forward.1} parent=95 // pred_check
          %p2692 = pneg %p2691
        $region102: #{vit_forward.1} parent=95 // pred_check_branch
          %2694 = sbr.rel (%p2692) target = $region104
        $region103: #{vit_forward.1} parent=95 // pred_region
          %v2695 = vld [vmem:[%s15] sm:$0x1]
          %v2696 = vld [vmem:[%s16] sm:$0x1]
          %vm2697 = vcmask 253952
          %v2698 = vsel %vm2697, %v2679, 0.0
          %2699 = vadd.xlane.f32.xlu0 %v2698
          %v2700 = vpop.xlane.xlu0 %2699
          %v2701 = vmul.f32 %v2700, %v954
          %v2702 = vsub.f32 %v2679, %v2701
          %v2703 = vmul.f32 %v2702, %v2702
          %v2704 = vsel %vm2697, %v2703, 0.0
          %2705 = vadd.xlane.f32.xlu0 %v2704
          %v2706 = vpop.xlane.xlu0 %2705
          %v2707 = vmul.f32 %v2706, %v954
          %v2708 = vadd.f32 %v2707, 1e-05
          %v2709 = vrsqrt.pop %v2708
          %v2710 = vmul.f32 %v2709, %v2708
          %v2711 = vmul.f32 %v2710, %v2709
          %v2712 = vmul.f32 0.5, %v2711
          %v2713 = vsub.f32 1.5, %v2712
          %v2714 = vmul.f32 %v2709, %v2713
          %vm2715 = vweird.f32 %v2708
          %vm2716 = vweird.f32 %v2709
          %vm2717 = vmor %vm2715, %vm2716
          %v2718 = vsel %vm2717, %v2709, %v2714
          %v2719 = vmul.f32 %v2702, %v2718
          %v2720 = vmul.f32 %v2719, %v2695
          %v2721 = vadd.f32 %v2720, %v2696
          %v2722 = vpack.c.bf16 %v2721, %v2721
          %v2723 = vld [vmem:[%s17] sm:$0xf]
          %v2724 = vld [vmem:[%s17 + $0x4] sm:$0xf]
          %v2725 = vld [vmem:[%s17 + $0x8] sm:$0xf]
          %v2726 = vld [vmem:[%s17 + $0xc] sm:$0xf]
          %v2727 = vld [vmem:[%s18] sm:$0x1]
          %v2732 = vunpack.c.l.b16 %v2723
          %v2733 = vunpack.c.l.b16 %v2724
          %v2734 = vunpack.c.l.b16 %v2725
          %v2735 = vunpack.c.l.b16 %v2726
          %v2736 = vpack.c.b16 %v2733, %v2732
          %v2737 = vpack.c.b16 %v2735, %v2734
          %v2741 = vsel %vm929, %v2722, 0
          %2743 = vmatpush.bf16.msra.mxu0 0
          %2744 = vmatpush.bf16.msra.mxu0 0
          %2745 = vmatpush.bf16.msra.mxu0 0
          %2746 = vmatpush.bf16.msra.mxu0 0
          %2747 = vmatpush.bf16.msra.mxu0 0
          %2748 = vmatpush.bf16.msra.mxu0 0
          %2749 = vmatpush.bf16.msra.mxu0 %v2737
          %2750 = vmatpush.bf16.msra.mxu0 %v2736
          %2751 = vmatmul.bf16.gmra.mxu0 %v2741
          %v2752 = vpop.f32.mrf.mxu0
          %v2753 = vadd.f32 %v2727, %v2752
          %v2754 = vpop.f32.mrf.mxu0
          %2755 = vdwg.mxu0
          %2756 = vst.msk [vmem:[#allocation4] sm:$0x1] %vm1259, %v2753
          %v2757 = vld [vmem:[%s15] sm:$0x1]
          %v2758 = vld [vmem:[%s16] sm:$0x1]
          %v2759 = vsel %vm2697, %v2682, 0.0
          %2760 = vadd.xlane.f32.xlu0 %v2759
          %v2761 = vpop.xlane.xlu0 %2760
          %v2762 = vmul.f32 %v2761, %v954
          %v2763 = vsub.f32 %v2682, %v2762
          %v2764 = vmul.f32 %v2763, %v2763
          %v2765 = vsel %vm2697, %v2764, 0.0
          %2766 = vadd.xlane.f32.xlu0 %v2765
          %v2767 = vpop.xlane.xlu0 %2766
          %v2768 = vmul.f32 %v2767, %v954
          %v2769 = vadd.f32 %v2768, 1e-05
          %v2770 = vrsqrt.pop %v2769
          %v2771 = vmul.f32 %v2770, %v2769
          %v2772 = vmul.f32 %v2771, %v2770
          %v2773 = vmul.f32 0.5, %v2772
          %v2774 = vsub.f32 1.5, %v2773
          %v2775 = vmul.f32 %v2770, %v2774
          %vm2776 = vweird.f32 %v2769
          %vm2777 = vweird.f32 %v2770
          %vm2778 = vmor %vm2776, %vm2777
          %v2779 = vsel %vm2778, %v2770, %v2775
          %v2780 = vmul.f32 %v2763, %v2779
          %v2781 = vmul.f32 %v2780, %v2757
          %v2782 = vadd.f32 %v2781, %v2758
          %v2783 = vpack.c.bf16 %v2782, %v2782
          %v2784 = vld [vmem:[%s17] sm:$0xf]
          %v2785 = vld [vmem:[%s17 + $0x4] sm:$0xf]
          %v2786 = vld [vmem:[%s17 + $0x8] sm:$0xf]
          %v2787 = vld [vmem:[%s17 + $0xc] sm:$0xf]
          %v2788 = vld [vmem:[%s18] sm:$0x1]
          %v2793 = vunpack.c.l.b16 %v2784
          %v2794 = vunpack.c.l.b16 %v2785
          %v2795 = vunpack.c.l.b16 %v2786
          %v2796 = vunpack.c.l.b16 %v2787
          %v2797 = vpack.c.b16 %v2794, %v2793
          %v2798 = vpack.c.b16 %v2796, %v2795
          %v2802 = vsel %vm929, %v2783, 0
          %2804 = vmatpush.bf16.msra.mxu0 0
          %2805 = vmatpush.bf16.msra.mxu0 0
          %2806 = vmatpush.bf16.msra.mxu0 0
          %2807 = vmatpush.bf16.msra.mxu0 0
          %2808 = vmatpush.bf16.msra.mxu0 0
          %2809 = vmatpush.bf16.msra.mxu0 0
          %2810 = vmatpush.bf16.msra.mxu0 %v2798
          %2811 = vmatpush.bf16.msra.mxu0 %v2797
          %2812 = vmatmul.bf16.gmra.mxu0 %v2802
          %v2813 = vpop.f32.mrf.mxu0
          %v2814 = vadd.f32 %v2788, %v2813
          %v2815 = vpop.f32.mrf.mxu0
          %2816 = vdwg.mxu0
          %s2817 = scalar_lea.vmem [#allocation4], 1
          %2818 = vst.msk [vmem:[%s2817] sm:$0x1] %vm1259, %v2814
        $region104: #{vit_forward.1} parent=95 // pred_fallthru
          _
        // Predicated region
        $region105: #{vit_forward.1} parent=95 // pred_check
          %p2819 = pneg %p515
        $region106: #{vit_forward.1} parent=95 // pred_check_branch
          %2821 = sbr.rel (%p2819) target = $region108
        $region107: #{vit_forward.1} parent=95 // pred_region
          %s2822 = smul.u32 2, %s35
          %2824 = vsyncadd [#allocation5], 0
          %s2825 = scalar_lea.hbm %s19, %s2822
          %s2826 = sshll.u32 [#allocation4], 4
          %s2827 = int_to_ptr.vmem [resolvable:$true] %s2826
          %s2828 = sshll.u32 %s2825, 4
          %s2829 = int_to_ptr.hbm [resolvable:$true] %s2828
          %2834 = dma.vmem_to_hbm [thread:$0]  %s2827, 32, %s2829, [#allocation5], 16, 16, 1
        $region108: #{vit_forward.1} parent=95 // pred_fallthru
          _
        // Predicated region
        $region109: #{vit_forward.1} parent=95 // pred_check
          %p2835 = pneg %p515
        $region110: #{vit_forward.1} parent=95 // pred_check_branch
          %2837 = sbr.rel (%p2835) target = $region112
        $region111: #{vit_forward.1} parent=95 // pred_region
          %2839 = dma.done [#allocation5], 32
        $region112: #{vit_forward.1} parent=95 // pred_fallthru
          _
      $region96: #{vit_forward.1} parent=5 // pred_fallthru
        _
      %p2840 = scmp.le.s32.totalorder 2, %s26
      // Predicated region
      $region113: #{vit_forward.1} parent=5 // pred_check
        %p2841 = pneg %p2840
      $region114: #{vit_forward.1} parent=5 // pred_check_branch
        %2843 = sbr.rel (%p2841) target = $region116
      $region115: #{vit_forward.1} parent=5 // pred_region
        %s2844 = ssub.s32 %s26, 2
      $region116: #{vit_forward.1} parent=5 // pred_fallthru
        _
    $region6: #{vit_forward.1} parent=1 // loop_footer
      %s30 = sadd.s32 1, %s26
    $region7: #{vit_forward.1} parent=1 // loop_footer_branch
      %25 = sbr.rel target = $region3
    $region8: #{vit_forward.1} parent=1 // loop_exit
      _
    %2845 = vsyncpa [#allocation5], 1
    %s2846 = scalar_lea.sflag [#allocation5], 1
    %2847 = vsyncpa %s2846, 1

</llo_original>
